<compile_context>
chip_gen: v6e
topology: v6e:2x2x1
jax: 0.10.0
libtpu: 0.0.40
codegen_flags: <defaults>
</compile_context>

<pallas_src>
import functools

import jax
import jax.numpy as jnp
from jax.experimental import pallas as pl
from jax.experimental.pallas import tpu as pltpu


def _softplus(x):
    # PyTorch nn.Softplus(): beta=1, threshold=20.
    return jnp.where(x > 20.0, x, jnp.log1p(jnp.exp(jnp.minimum(x, 20.0))))


def _stage_halo_channel(halo_ref, ci, val, pad):
    """Write one channel's (Lv, Nb) activation into its zero-padded halo slot."""
    lv, nb = val.shape
    zrow = jnp.zeros((pad, nb), jnp.float32)
    halo_ref[ci, pl.ds(0, pad), :] = zrow
    halo_ref[ci, pl.ds(pad, lv), :] = val
    halo_ref[ci, pl.ds(pad + lv, pad), :] = zrow


def _conv_pool_softplus(halo_ref, w_ref, c_in, c_out, ksize, length, cbufs):
    """One block: Conv1d('same', stride 1) -> MaxPool1d(2,2) -> Softplus.

    Softplus is monotonic, so pooling the raw conv output first is exact and
    halves the transcendental (EUP) work versus softplus-then-pool.

    halo_ref: VMEM (c_in, length + 2*pad, Nb) zero-padded input activations.
    w_ref   : SMEM flat (c_out*c_in*ksize,) weights in PyTorch (C_out, C_in, K) order.
    cbufs   : two (>= length, Nb) VMEM staging buffers, rotated per output channel
              so consecutive channels' pool compactions do not serialize on one
              buffer (frees the vector-store slot, especially on v5e).
    Returns : list of c_out pooled+softplus activations, each (length // 2, Nb).
    """
    l_half = length // 2

    # Hoisted tap loads: c_in * ksize static-offset reads from the halo buffer,
    # shared by every output channel. This replaces the old in-register
    # concatenate shifts (full-tile copies) with cheap vld-slot work.
    taps = [[halo_ref[ci, pl.ds(k, length), :] for k in range(ksize)]
            for ci in range(c_in)]

    outs = []
    for co in range(c_out):
        base = co * c_in * ksize
        # Initialize the accumulator with the first tap product (saves one VALU
        # add per element per output channel).
        acc = w_ref[base] * taps[0][0]
        for ci in range(c_in):
            for k in range(ksize):
                if ci == 0 and k == 0:
                    continue
                # Scalar weight from SMEM, broadcast multiply-add on the VPU.
                acc = acc + w_ref[base + ci * ksize + k] * taps[ci][k]

        # MaxPool1d(2, 2): even/odd stride-2 compaction through a VMEM staging
        # buffer, pairwise max on the already-halved tile, then softplus.
        buf = cbufs[co % 2]
        buf[pl.ds(0, length), :] = acc
        even = buf[pl.ds(0, l_half, stride=2), :]
        odd = buf[pl.ds(1, l_half, stride=2), :]
        outs.append(_softplus(jnp.maximum(even, odd)))
    return outs


def _fused_stack_kernel(x_ref, w1_ref, w2_ref, w3_ref, o_ref,
                        halo1, halo2, halo3, cbuf_a, cbuf_b, *,
                        ksize, pad, channels):
    """Fused 3x [BBBConv1d -> MaxPool1d(2,2) -> Softplus] for one batch block.

    x_ref  : (1, Nb, L)          input block in natural batch-major order (f32 VMEM)
    w*_ref : flat f32 SMEM refs (PyTorch (C_out, C_in, K) order, flattened)
    o_ref  : (1, Nb, C3*L//8)    batch-major flattened output block
    halo*  : zero-padded per-layer activation buffers (C, L_layer + 2*pad, Nb)
    cbuf*  : pool-compaction staging buffers (L, Nb)
    """
    c1, c2, c3 = channels
    length = x_ref.shape[2]
    cbufs = (cbuf_a, cbuf_b)

    # One in-kernel XLU transpose establishes the batch-on-lanes / length-on-
    # sublanes layout (no wrapper-side HBM transpose of the input).
    x_lnb = jnp.transpose(x_ref[0], (1, 0))                      # (L, Nb)
    _stage_halo_channel(halo1, 0, x_lnb, pad)

    h = _conv_pool_softplus(halo1, w1_ref, 1, c1, ksize, length, cbufs)
    for ci, v in enumerate(h):
        _stage_halo_channel(halo2, ci, v, pad)

    h = _conv_pool_softplus(halo2, w2_ref, c1, c2, ksize, length // 2, cbufs)
    for ci, v in enumerate(h):
        _stage_halo_channel(halo3, ci, v, pad)

    h = _conv_pool_softplus(halo3, w3_ref, c2, c3, ksize, length // 4, cbufs)

    # PyTorch FlattenLayer order out[n, co*Lf + l]: assemble channel-major along
    # sublanes, one XLU transpose to batch-major, single lane-dense store
    # (no wrapper-side HBM transpose of the output).
    flat = jnp.concatenate(h, axis=0)                            # (C3*Lf, Nb)
    o_ref[0, :, :] = jnp.transpose(flat, (1, 0))                 # (Nb, C3*Lf)


def one_d_stack_bayesian_forward(x_ncl, sampled_layers, kernel_size, padding):
    """Forward pass of OneD_Stack_Bayesian.

    x_ncl: (N, 1, L) in PyTorch NCL layout.
    sampled_layers: list of (weight (C_out, C_in, K), kl_scalar).
    Returns (flattened (N, C_out_last * L//8) output, total KL) like the module.
    """
    n, c0, length = x_ncl.shape
    assert c0 == 1, "first BBBConv1d has a single input channel"
    assert 2 * padding == kernel_size - 1, "fused path assumes 'same' conv length"
    assert length % 8 == 0, "three MaxPool1d(2,2) stages need L divisible by 8"
    assert len(sampled_layers) == 3

    channels = tuple(int(w.shape[0]) for (w, _) in sampled_layers)
    c_last = channels[-1]
    lf = length // 8

    # Always run with a full 128-wide batch block (lane-dense stores); pad N up.
    nb = 128
    n_pad = (-n) % nb
    x2 = x_ncl.reshape(n, length)
    if n_pad:
        x2 = jnp.concatenate([x2, jnp.zeros((n_pad, length), x2.dtype)], axis=0)
    g = (n + n_pad) // nb
    x_blk = x2.reshape(g, nb, length)          # natural order: no wrapper transpose

    # Flattened weights go to SMEM and are read as broadcast scalars in-kernel.
    w_flat = [jnp.asarray(w, jnp.float32).reshape(-1) for (w, _) in sampled_layers]

    kern = functools.partial(_fused_stack_kernel, ksize=kernel_size, pad=padding,
                             channels=channels)

    out_blk = pl.pallas_call(
        kern,
        out_shape=jax.ShapeDtypeStruct((g, nb, c_last * lf), jnp.float32),
        grid_spec=pltpu.PrefetchScalarGridSpec(
            num_scalar_prefetch=0,
            grid=(g,),
            in_specs=[
                pl.BlockSpec((1, nb, length), lambda i: (i, 0, 0)),
                pl.BlockSpec(memory_space=pltpu.MemorySpace.SMEM),
                pl.BlockSpec(memory_space=pltpu.MemorySpace.SMEM),
                pl.BlockSpec(memory_space=pltpu.MemorySpace.SMEM),
            ],
            out_specs=pl.BlockSpec((1, nb, c_last * lf), lambda i: (i, 0, 0)),
            scratch_shapes=[
                # Zero-padded halo buffers for each layer's input channels.
                pltpu.VMEM((1, length + 2 * padding, nb), jnp.float32),
                pltpu.VMEM((channels[0], length // 2 + 2 * padding, nb), jnp.float32),
                pltpu.VMEM((channels[1], length // 4 + 2 * padding, nb), jnp.float32),
                # Two pool-compaction staging buffers (rotated per output channel).
                pltpu.VMEM((length, nb), jnp.float32),
                pltpu.VMEM((length, nb), jnp.float32),
            ],
        ),
        compiler_params=pltpu.CompilerParams(
            dimension_semantics=("parallel",),
            vmem_limit_bytes=32 * 1024 * 1024,
        ),
    )(x_blk, *w_flat)

    # (G, Nb, C*Lf) -> (N, C*Lf): a free reshape, no HBM transpose.
    out = out_blk.reshape(g * nb, c_last * lf)[:n]
    kl_total = sum(kl for (_, kl) in sampled_layers)
    return out, kl_total


def sample_bbb_weight(key, c_out, c_in, k, prior_sigma=1.0):
    """Bayes-by-Backprop conv weight: w = mu + exp(log_sigma) * eps, plus KL term.

    KL(q||p) with p = N(0, prior_sigma^2), summed over all weight entries
    (matches the closed-form used by BBBConv layers' convprobforward).
    """
    k_mu, k_ls, k_eps = jax.random.split(key, 3)
    shape = (c_out, c_in, k)
    mu = 0.1 * jax.random.normal(k_mu, shape, jnp.float32)
    log_sigma = -3.0 + 0.1 * jax.random.normal(k_ls, shape, jnp.float32)
    eps = jax.random.normal(k_eps, shape, jnp.float32)
    sigma = jnp.exp(log_sigma)
    weight = mu + sigma * eps                                  # (C_out, C_in, K)
    kl = jnp.sum(jnp.log(prior_sigma) - log_sigma
                 + (sigma ** 2 + mu ** 2) / (2.0 * prior_sigma ** 2) - 0.5)
    return weight, kl


def _reference(x_ncl, sampled_layers, padding):
    """Pure-JAX reference (NCL layout throughout) for correctness checking."""
    h = x_ncl
    kl_total = jnp.zeros((), jnp.float32)
    for w_oik, kl in sampled_layers:
        y = jax.lax.conv_general_dilated(
            h, w_oik, window_strides=(1,), padding=[(padding, padding)],
            dimension_numbers=("NCH", "OIH", "NCH"),
            precision=jax.lax.Precision.HIGHEST)
        y = jnp.where(y > 20.0, y, jnp.log1p(jnp.exp(jnp.minimum(y, 20.0))))
        n, c, l = y.shape
        lh = l // 2
        y = y[:, :, :2 * lh].reshape(n, c, lh, 2).max(axis=-1)
        h = y
        kl_total = kl_total + kl
    return h.reshape(h.shape[0], -1), kl_total


if __name__ == "__main__":
    # Small-shape analog of the module: feature_maps=2, kernel_size=3, padding=1.
    # (Original uses L=2000 -> flatten(250*8); here L=128 -> flatten(16*8)=128,
    #  which keeps every in-kernel transpose and store perfectly (8,128)-aligned.)
    # N=256 gives two full 128-wide batch blocks -> g=2 parallel grid steps.
    kernel_size, feature_maps, padding = 3, 2, 1
    N, L = 256, 128

    key = jax.random.PRNGKey(0)
    kx, k1, k2, k3 = jax.random.split(key, 4)
    x = jax.random.normal(kx, (N, 1, L), jnp.float32)        # PyTorch NCL input

    sampled_layers = [
        sample_bbb_weight(k1, feature_maps ** 1, 1, kernel_size),
        sample_bbb_weight(k2, feature_maps ** 2, feature_maps ** 1, kernel_size),
        sample_bbb_weight(k3, feature_maps ** 3, feature_maps ** 2, kernel_size),
    ]

    out, kl = one_d_stack_bayesian_forward(x, sampled_layers, kernel_size, padding)
    out = jax.block_until_ready(out)
    kl = jax.block_until_ready(kl)

    ref_out, ref_kl = _reference(x, sampled_layers, padding)

    assert out.shape == (N, (feature_maps ** 3) * (L // 8)), out.shape
    assert jnp.allclose(out, ref_out, rtol=1e-3, atol=1e-3), (
        "mismatch", float(jnp.max(jnp.abs(out - ref_out))))
    assert jnp.allclose(kl, ref_kl, rtol=1e-5, atol=1e-5)

    print("KERNEL_OK")
</pallas_src>

<mosaic_0001>
module attributes {stable_mosaic.version = 11 : i64} {
  func.func @_fused_stack_kernel(%arg0: i32, %arg1: memref<1x128x128xf32, #tpu.memory_space<vmem>>, %arg2: memref<6xf32, #tpu.memory_space<smem>>, %arg3: memref<24xf32, #tpu.memory_space<smem>>, %arg4: memref<96xf32, #tpu.memory_space<smem>>, %arg5: memref<1x128x128xf32, #tpu.memory_space<vmem>>, %arg6: memref<1x130x128xf32, #tpu.memory_space<vmem>>, %arg7: memref<2x66x128xf32, #tpu.memory_space<vmem>>, %arg8: memref<4x34x128xf32, #tpu.memory_space<vmem>>, %arg9: memref<128x128xf32, #tpu.memory_space<vmem>>, %arg10: memref<128x128xf32, #tpu.memory_space<vmem>>) attributes {dimension_semantics = [#tpu.dimension_semantics<parallel>], iteration_bounds = array<i64: 2>, scalar_prefetch = 0 : i64, scratch_operands = 5 : i64, tpu.core_type = #tpu.core_type<tc>, window_params = [{transform_indices = @transform_0, window_bounds = array<i64: 1, 128, 128>}, {transform_indices = @transform_1, window_bounds = array<i64: 6>}, {transform_indices = @transform_2, window_bounds = array<i64: 24>}, {transform_indices = @transform_3, window_bounds = array<i64: 96>}, {transform_indices = @transform_4, window_bounds = array<i64: 1, 128, 128>}]} {
    %c0 = arith.constant 0 : index
    %c0_0 = arith.constant 0 : index
    %c0_1 = arith.constant 0 : index
    %0 = vector.load %arg1[%c0, %c0_0, %c0_1] : memref<1x128x128xf32, #tpu.memory_space<vmem>>, vector<1x128x128xf32>
    %1 = vector.shape_cast %0 : vector<1x128x128xf32> to vector<128x128xf32>
    %2 = tpu.transpose %1, [1, 0] : vector<128x128xf32> -> vector<128x128xf32>
    %cst = arith.constant 0.000000e+00 : f32
    %3 = vector.broadcast %cst : f32 to vector<1x128xf32>
    %c0_2 = arith.constant 0 : index
    %c0_3 = arith.constant 0 : index
    %c0_4 = arith.constant 0 : index
    %4 = vector.load %arg6[%c0_2, %c0_3, %c0_4] : memref<1x130x128xf32, #tpu.memory_space<vmem>>, vector<1x1x128xf32>
    %5 = vector.shape_cast %4 : vector<1x1x128xf32> to vector<1x128xf32>
    %6 = vector.shape_cast %3 : vector<1x128xf32> to vector<1x1x128xf32>
    tpu.vector_store %arg6[%c0_2, %c0_3, %c0_4], %6 {strides = array<i32>} : memref<1x130x128xf32, #tpu.memory_space<vmem>>, vector<1x1x128xf32>,
    %c0_5 = arith.constant 0 : index
    %c1 = arith.constant 1 : index
    %c0_6 = arith.constant 0 : index
    %7 = vector.load %arg6[%c0_5, %c1, %c0_6] : memref<1x130x128xf32, #tpu.memory_space<vmem>>, vector<1x128x128xf32>
    %8 = vector.shape_cast %7 : vector<1x128x128xf32> to vector<128x128xf32>
    %9 = vector.shape_cast %2 : vector<128x128xf32> to vector<1x128x128xf32>
    tpu.vector_store %arg6[%c0_5, %c1, %c0_6], %9 {strides = array<i32>} : memref<1x130x128xf32, #tpu.memory_space<vmem>>, vector<1x128x128xf32>,
    %c0_7 = arith.constant 0 : index
    %c129 = arith.constant 129 : index
    %c0_8 = arith.constant 0 : index
    %10 = vector.load %arg6[%c0_7, %c129, %c0_8] : memref<1x130x128xf32, #tpu.memory_space<vmem>>, vector<1x1x128xf32>
    %11 = vector.shape_cast %10 : vector<1x1x128xf32> to vector<1x128xf32>
    %12 = vector.shape_cast %3 : vector<1x128xf32> to vector<1x1x128xf32>
    tpu.vector_store %arg6[%c0_7, %c129, %c0_8], %12 {strides = array<i32>} : memref<1x130x128xf32, #tpu.memory_space<vmem>>, vector<1x1x128xf32>,
    %c0_9 = arith.constant 0 : index
    %c0_10 = arith.constant 0 : index
    %c0_11 = arith.constant 0 : index
    %13 = vector.load %arg6[%c0_9, %c0_10, %c0_11] : memref<1x130x128xf32, #tpu.memory_space<vmem>>, vector<1x128x128xf32>
    %14 = vector.shape_cast %13 : vector<1x128x128xf32> to vector<128x128xf32>
    %c0_12 = arith.constant 0 : index
    %c1_13 = arith.constant 1 : index
    %c0_14 = arith.constant 0 : index
    %15 = vector.load %arg6[%c0_12, %c1_13, %c0_14] : memref<1x130x128xf32, #tpu.memory_space<vmem>>, vector<1x128x128xf32>
    %16 = vector.shape_cast %15 : vector<1x128x128xf32> to vector<128x128xf32>
    %c0_15 = arith.constant 0 : index
    %c2 = arith.constant 2 : index
    %c0_16 = arith.constant 0 : index
    %17 = vector.load %arg6[%c0_15, %c2, %c0_16] : memref<1x130x128xf32, #tpu.memory_space<vmem>>, vector<1x128x128xf32>
    %18 = vector.shape_cast %17 : vector<1x128x128xf32> to vector<128x128xf32>
    %c0_17 = arith.constant 0 : index
    %19 = memref.load %arg2[%c0_17] : memref<6xf32, #tpu.memory_space<smem>>
    %20 = vector.broadcast %19 : f32 to vector<128x128xf32>
    %21 = arith.mulf %20, %14 : vector<128x128xf32>
    %c1_18 = arith.constant 1 : index
    %22 = memref.load %arg2[%c1_18] : memref<6xf32, #tpu.memory_space<smem>>
    %23 = vector.broadcast %22 : f32 to vector<128x128xf32>
    %24 = arith.mulf %23, %16 : vector<128x128xf32>
    %25 = arith.addf %21, %24 : vector<128x128xf32>
    %c2_19 = arith.constant 2 : index
    %26 = memref.load %arg2[%c2_19] : memref<6xf32, #tpu.memory_space<smem>>
    %27 = vector.broadcast %26 : f32 to vector<128x128xf32>
    %28 = arith.mulf %27, %18 : vector<128x128xf32>
    %29 = arith.addf %25, %28 : vector<128x128xf32>
    %c0_20 = arith.constant 0 : index
    %c0_21 = arith.constant 0 : index
    %30 = vector.load %arg9[%c0_20, %c0_21] : memref<128x128xf32, #tpu.memory_space<vmem>>, vector<128x128xf32>
    tpu.vector_store %arg9[%c0_20, %c0_21], %29 {strides = array<i32>} : memref<128x128xf32, #tpu.memory_space<vmem>>, vector<128x128xf32>,
    %c0_22 = arith.constant 0 : index
    %c0_23 = arith.constant 0 : index
    %31 = tpu.strided_load %arg9[%c0_22, %c0_23] {strides = array<i32: 2, 1>} : memref<128x128xf32, #tpu.memory_space<vmem>>, vector<64x128xf32>
    %c1_24 = arith.constant 1 : index
    %c0_25 = arith.constant 0 : index
    %32 = tpu.strided_load %arg9[%c1_24, %c0_25] {strides = array<i32: 2, 1>} : memref<128x128xf32, #tpu.memory_space<vmem>>, vector<64x128xf32>
    %33 = arith.maximumf %31, %32 : vector<64x128xf32>
    %cst_26 = arith.constant 2.000000e+01 : f32
    %34 = vector.broadcast %cst_26 : f32 to vector<64x128xf32>
    %35 = arith.cmpf ogt, %33, %34 : vector<64x128xf32>
    %cst_27 = arith.constant 2.000000e+01 : f32
    %36 = vector.broadcast %cst_27 : f32 to vector<64x128xf32>
    %37 = arith.minimumf %33, %36 : vector<64x128xf32>
    %38 = math.exp %37 : vector<64x128xf32>
    %39 = math.log1p %38 : vector<64x128xf32>
    %40 = arith.select %35, %33, %39 : vector<64x128xi1>, vector<64x128xf32>
    %c3 = arith.constant 3 : index
    %41 = memref.load %arg2[%c3] : memref<6xf32, #tpu.memory_space<smem>>
    %42 = vector.broadcast %41 : f32 to vector<128x128xf32>
    %43 = arith.mulf %42, %14 : vector<128x128xf32>
    %c4 = arith.constant 4 : index
    %44 = memref.load %arg2[%c4] : memref<6xf32, #tpu.memory_space<smem>>
    %45 = vector.broadcast %44 : f32 to vector<128x128xf32>
    %46 = arith.mulf %45, %16 : vector<128x128xf32>
    %47 = arith.addf %43, %46 : vector<128x128xf32>
    %c5 = arith.constant 5 : index
    %48 = memref.load %arg2[%c5] : memref<6xf32, #tpu.memory_space<smem>>
    %49 = vector.broadcast %48 : f32 to vector<128x128xf32>
    %50 = arith.mulf %49, %18 : vector<128x128xf32>
    %51 = arith.addf %47, %50 : vector<128x128xf32>
    %c0_28 = arith.constant 0 : index
    %c0_29 = arith.constant 0 : index
    %52 = vector.load %arg10[%c0_28, %c0_29] : memref<128x128xf32, #tpu.memory_space<vmem>>, vector<128x128xf32>
    tpu.vector_store %arg10[%c0_28, %c0_29], %51 {strides = array<i32>} : memref<128x128xf32, #tpu.memory_space<vmem>>, vector<128x128xf32>,
    %c0_30 = arith.constant 0 : index
    %c0_31 = arith.constant 0 : index
    %53 = tpu.strided_load %arg10[%c0_30, %c0_31] {strides = array<i32: 2, 1>} : memref<128x128xf32, #tpu.memory_space<vmem>>, vector<64x128xf32>
    %c1_32 = arith.constant 1 : index
    %c0_33 = arith.constant 0 : index
    %54 = tpu.strided_load %arg10[%c1_32, %c0_33] {strides = array<i32: 2, 1>} : memref<128x128xf32, #tpu.memory_space<vmem>>, vector<64x128xf32>
    %55 = arith.maximumf %53, %54 : vector<64x128xf32>
    %cst_34 = arith.constant 2.000000e+01 : f32
    %56 = vector.broadcast %cst_34 : f32 to vector<64x128xf32>
    %57 = arith.cmpf ogt, %55, %56 : vector<64x128xf32>
    %cst_35 = arith.constant 2.000000e+01 : f32
    %58 = vector.broadcast %cst_35 : f32 to vector<64x128xf32>
    %59 = arith.minimumf %55, %58 : vector<64x128xf32>
    %60 = math.exp %59 : vector<64x128xf32>
    %61 = math.log1p %60 : vector<64x128xf32>
    %62 = arith.select %57, %55, %61 : vector<64x128xi1>, vector<64x128xf32>
    %cst_36 = arith.constant 0.000000e+00 : f32
    %63 = vector.broadcast %cst_36 : f32 to vector<1x128xf32>
    %c0_37 = arith.constant 0 : index
    %c0_38 = arith.constant 0 : index
    %c0_39 = arith.constant 0 : index
    %64 = vector.load %arg7[%c0_37, %c0_38, %c0_39] : memref<2x66x128xf32, #tpu.memory_space<vmem>>, vector<1x1x128xf32>
    %65 = vector.shape_cast %64 : vector<1x1x128xf32> to vector<1x128xf32>
    %66 = vector.shape_cast %63 : vector<1x128xf32> to vector<1x1x128xf32>
    tpu.vector_store %arg7[%c0_37, %c0_38, %c0_39], %66 {strides = array<i32>} : memref<2x66x128xf32, #tpu.memory_space<vmem>>, vector<1x1x128xf32>,
    %c0_40 = arith.constant 0 : index
    %c1_41 = arith.constant 1 : index
    %c0_42 = arith.constant 0 : index
    %67 = vector.load %arg7[%c0_40, %c1_41, %c0_42] : memref<2x66x128xf32, #tpu.memory_space<vmem>>, vector<1x64x128xf32>
    %68 = vector.shape_cast %67 : vector<1x64x128xf32> to vector<64x128xf32>
    %69 = vector.shape_cast %40 : vector<64x128xf32> to vector<1x64x128xf32>
    tpu.vector_store %arg7[%c0_40, %c1_41, %c0_42], %69 {strides = array<i32>} : memref<2x66x128xf32, #tpu.memory_space<vmem>>, vector<1x64x128xf32>,
    %c0_43 = arith.constant 0 : index
    %c65 = arith.constant 65 : index
    %c0_44 = arith.constant 0 : index
    %70 = vector.load %arg7[%c0_43, %c65, %c0_44] : memref<2x66x128xf32, #tpu.memory_space<vmem>>, vector<1x1x128xf32>
    %71 = vector.shape_cast %70 : vector<1x1x128xf32> to vector<1x128xf32>
    %72 = vector.shape_cast %63 : vector<1x128xf32> to vector<1x1x128xf32>
    tpu.vector_store %arg7[%c0_43, %c65, %c0_44], %72 {strides = array<i32>} : memref<2x66x128xf32, #tpu.memory_space<vmem>>, vector<1x1x128xf32>,
    %cst_45 = arith.constant 0.000000e+00 : f32
    %73 = vector.broadcast %cst_45 : f32 to vector<1x128xf32>
    %c1_46 = arith.constant 1 : index
    %c0_47 = arith.constant 0 : index
    %c0_48 = arith.constant 0 : index
    %74 = vector.load %arg7[%c1_46, %c0_47, %c0_48] : memref<2x66x128xf32, #tpu.memory_space<vmem>>, vector<1x1x128xf32>
    %75 = vector.shape_cast %74 : vector<1x1x128xf32> to vector<1x128xf32>
    %76 = vector.shape_cast %73 : vector<1x128xf32> to vector<1x1x128xf32>
    tpu.vector_store %arg7[%c1_46, %c0_47, %c0_48], %76 {strides = array<i32>} : memref<2x66x128xf32, #tpu.memory_space<vmem>>, vector<1x1x128xf32>,
    %c1_49 = arith.constant 1 : index
    %c1_50 = arith.constant 1 : index
    %c0_51 = arith.constant 0 : index
    %77 = vector.load %arg7[%c1_49, %c1_50, %c0_51] : memref<2x66x128xf32, #tpu.memory_space<vmem>>, vector<1x64x128xf32>
    %78 = vector.shape_cast %77 : vector<1x64x128xf32> to vector<64x128xf32>
    %79 = vector.shape_cast %62 : vector<64x128xf32> to vector<1x64x128xf32>
    tpu.vector_store %arg7[%c1_49, %c1_50, %c0_51], %79 {strides = array<i32>} : memref<2x66x128xf32, #tpu.memory_space<vmem>>, vector<1x64x128xf32>,
    %c1_52 = arith.constant 1 : index
    %c65_53 = arith.constant 65 : index
    %c0_54 = arith.constant 0 : index
    %80 = vector.load %arg7[%c1_52, %c65_53, %c0_54] : memref<2x66x128xf32, #tpu.memory_space<vmem>>, vector<1x1x128xf32>
    %81 = vector.shape_cast %80 : vector<1x1x128xf32> to vector<1x128xf32>
    %82 = vector.shape_cast %73 : vector<1x128xf32> to vector<1x1x128xf32>
    tpu.vector_store %arg7[%c1_52, %c65_53, %c0_54], %82 {strides = array<i32>} : memref<2x66x128xf32, #tpu.memory_space<vmem>>, vector<1x1x128xf32>,
    %c0_55 = arith.constant 0 : index
    %c0_56 = arith.constant 0 : index
    %c0_57 = arith.constant 0 : index
    %83 = vector.load %arg7[%c0_55, %c0_56, %c0_57] : memref<2x66x128xf32, #tpu.memory_space<vmem>>, vector<1x64x128xf32>
    %84 = vector.shape_cast %83 : vector<1x64x128xf32> to vector<64x128xf32>
    %c0_58 = arith.constant 0 : index
    %c1_59 = arith.constant 1 : index
    %c0_60 = arith.constant 0 : index
    %85 = vector.load %arg7[%c0_58, %c1_59, %c0_60] : memref<2x66x128xf32, #tpu.memory_space<vmem>>, vector<1x64x128xf32>
    %86 = vector.shape_cast %85 : vector<1x64x128xf32> to vector<64x128xf32>
    %c0_61 = arith.constant 0 : index
    %c2_62 = arith.constant 2 : index
    %c0_63 = arith.constant 0 : index
    %87 = vector.load %arg7[%c0_61, %c2_62, %c0_63] : memref<2x66x128xf32, #tpu.memory_space<vmem>>, vector<1x64x128xf32>
    %88 = vector.shape_cast %87 : vector<1x64x128xf32> to vector<64x128xf32>
    %c1_64 = arith.constant 1 : index
    %c0_65 = arith.constant 0 : index
    %c0_66 = arith.constant 0 : index
    %89 = vector.load %arg7[%c1_64, %c0_65, %c0_66] : memref<2x66x128xf32, #tpu.memory_space<vmem>>, vector<1x64x128xf32>
    %90 = vector.shape_cast %89 : vector<1x64x128xf32> to vector<64x128xf32>
    %c1_67 = arith.constant 1 : index
    %c1_68 = arith.constant 1 : index
    %c0_69 = arith.constant 0 : index
    %91 = vector.load %arg7[%c1_67, %c1_68, %c0_69] : memref<2x66x128xf32, #tpu.memory_space<vmem>>, vector<1x64x128xf32>
    %92 = vector.shape_cast %91 : vector<1x64x128xf32> to vector<64x128xf32>
    %c1_70 = arith.constant 1 : index
    %c2_71 = arith.constant 2 : index
    %c0_72 = arith.constant 0 : index
    %93 = vector.load %arg7[%c1_70, %c2_71, %c0_72] : memref<2x66x128xf32, #tpu.memory_space<vmem>>, vector<1x64x128xf32>
    %94 = vector.shape_cast %93 : vector<1x64x128xf32> to vector<64x128xf32>
    %c0_73 = arith.constant 0 : index
    %95 = memref.load %arg3[%c0_73] : memref<24xf32, #tpu.memory_space<smem>>
    %96 = vector.broadcast %95 : f32 to vector<64x128xf32>
    %97 = arith.mulf %96, %84 : vector<64x128xf32>
    %c1_74 = arith.constant 1 : index
    %98 = memref.load %arg3[%c1_74] : memref<24xf32, #tpu.memory_space<smem>>
    %99 = vector.broadcast %98 : f32 to vector<64x128xf32>
    %100 = arith.mulf %99, %86 : vector<64x128xf32>
    %101 = arith.addf %97, %100 : vector<64x128xf32>
    %c2_75 = arith.constant 2 : index
    %102 = memref.load %arg3[%c2_75] : memref<24xf32, #tpu.memory_space<smem>>
    %103 = vector.broadcast %102 : f32 to vector<64x128xf32>
    %104 = arith.mulf %103, %88 : vector<64x128xf32>
    %105 = arith.addf %101, %104 : vector<64x128xf32>
    %c3_76 = arith.constant 3 : index
    %106 = memref.load %arg3[%c3_76] : memref<24xf32, #tpu.memory_space<smem>>
    %107 = vector.broadcast %106 : f32 to vector<64x128xf32>
    %108 = arith.mulf %107, %90 : vector<64x128xf32>
    %109 = arith.addf %105, %108 : vector<64x128xf32>
    %c4_77 = arith.constant 4 : index
    %110 = memref.load %arg3[%c4_77] : memref<24xf32, #tpu.memory_space<smem>>
    %111 = vector.broadcast %110 : f32 to vector<64x128xf32>
    %112 = arith.mulf %111, %92 : vector<64x128xf32>
    %113 = arith.addf %109, %112 : vector<64x128xf32>
    %c5_78 = arith.constant 5 : index
    %114 = memref.load %arg3[%c5_78] : memref<24xf32, #tpu.memory_space<smem>>
    %115 = vector.broadcast %114 : f32 to vector<64x128xf32>
    %116 = arith.mulf %115, %94 : vector<64x128xf32>
    %117 = arith.addf %113, %116 : vector<64x128xf32>
    %c0_79 = arith.constant 0 : index
    %c0_80 = arith.constant 0 : index
    %118 = vector.load %arg9[%c0_79, %c0_80] : memref<128x128xf32, #tpu.memory_space<vmem>>, vector<64x128xf32>
    tpu.vector_store %arg9[%c0_79, %c0_80], %117 {strides = array<i32>} : memref<128x128xf32, #tpu.memory_space<vmem>>, vector<64x128xf32>,
    %c0_81 = arith.constant 0 : index
    %c0_82 = arith.constant 0 : index
    %119 = tpu.strided_load %arg9[%c0_81, %c0_82] {strides = array<i32: 2, 1>} : memref<128x128xf32, #tpu.memory_space<vmem>>, vector<32x128xf32>
    %c1_83 = arith.constant 1 : index
    %c0_84 = arith.constant 0 : index
    %120 = tpu.strided_load %arg9[%c1_83, %c0_84] {strides = array<i32: 2, 1>} : memref<128x128xf32, #tpu.memory_space<vmem>>, vector<32x128xf32>
    %121 = arith.maximumf %119, %120 : vector<32x128xf32>
    %cst_85 = arith.constant 2.000000e+01 : f32
    %122 = vector.broadcast %cst_85 : f32 to vector<32x128xf32>
    %123 = arith.cmpf ogt, %121, %122 : vector<32x128xf32>
    %cst_86 = arith.constant 2.000000e+01 : f32
    %124 = vector.broadcast %cst_86 : f32 to vector<32x128xf32>
    %125 = arith.minimumf %121, %124 : vector<32x128xf32>
    %126 = math.exp %125 : vector<32x128xf32>
    %127 = math.log1p %126 : vector<32x128xf32>
    %128 = arith.select %123, %121, %127 : vector<32x128xi1>, vector<32x128xf32>
    %c6 = arith.constant 6 : index
    %129 = memref.load %arg3[%c6] : memref<24xf32, #tpu.memory_space<smem>>
    %130 = vector.broadcast %129 : f32 to vector<64x128xf32>
    %131 = arith.mulf %130, %84 : vector<64x128xf32>
    %c7 = arith.constant 7 : index
    %132 = memref.load %arg3[%c7] : memref<24xf32, #tpu.memory_space<smem>>
    %133 = vector.broadcast %132 : f32 to vector<64x128xf32>
    %134 = arith.mulf %133, %86 : vector<64x128xf32>
    %135 = arith.addf %131, %134 : vector<64x128xf32>
    %c8 = arith.constant 8 : index
    %136 = memref.load %arg3[%c8] : memref<24xf32, #tpu.memory_space<smem>>
    %137 = vector.broadcast %136 : f32 to vector<64x128xf32>
    %138 = arith.mulf %137, %88 : vector<64x128xf32>
    %139 = arith.addf %135, %138 : vector<64x128xf32>
    %c9 = arith.constant 9 : index
    %140 = memref.load %arg3[%c9] : memref<24xf32, #tpu.memory_space<smem>>
    %141 = vector.broadcast %140 : f32 to vector<64x128xf32>
    %142 = arith.mulf %141, %90 : vector<64x128xf32>
    %143 = arith.addf %139, %142 : vector<64x128xf32>
    %c10 = arith.constant 10 : index
    %144 = memref.load %arg3[%c10] : memref<24xf32, #tpu.memory_space<smem>>
    %145 = vector.broadcast %144 : f32 to vector<64x128xf32>
    %146 = arith.mulf %145, %92 : vector<64x128xf32>
    %147 = arith.addf %143, %146 : vector<64x128xf32>
    %c11 = arith.constant 11 : index
    %148 = memref.load %arg3[%c11] : memref<24xf32, #tpu.memory_space<smem>>
    %149 = vector.broadcast %148 : f32 to vector<64x128xf32>
    %150 = arith.mulf %149, %94 : vector<64x128xf32>
    %151 = arith.addf %147, %150 : vector<64x128xf32>
    %c0_87 = arith.constant 0 : index
    %c0_88 = arith.constant 0 : index
    %152 = vector.load %arg10[%c0_87, %c0_88] : memref<128x128xf32, #tpu.memory_space<vmem>>, vector<64x128xf32>
    tpu.vector_store %arg10[%c0_87, %c0_88], %151 {strides = array<i32>} : memref<128x128xf32, #tpu.memory_space<vmem>>, vector<64x128xf32>,
    %c0_89 = arith.constant 0 : index
    %c0_90 = arith.constant 0 : index
    %153 = tpu.strided_load %arg10[%c0_89, %c0_90] {strides = array<i32: 2, 1>} : memref<128x128xf32, #tpu.memory_space<vmem>>, vector<32x128xf32>
    %c1_91 = arith.constant 1 : index
    %c0_92 = arith.constant 0 : index
    %154 = tpu.strided_load %arg10[%c1_91, %c0_92] {strides = array<i32: 2, 1>} : memref<128x128xf32, #tpu.memory_space<vmem>>, vector<32x128xf32>
    %155 = arith.maximumf %153, %154 : vector<32x128xf32>
    %cst_93 = arith.constant 2.000000e+01 : f32
    %156 = vector.broadcast %cst_93 : f32 to vector<32x128xf32>
    %157 = arith.cmpf ogt, %155, %156 : vector<32x128xf32>
    %cst_94 = arith.constant 2.000000e+01 : f32
    %158 = vector.broadcast %cst_94 : f32 to vector<32x128xf32>
    %159 = arith.minimumf %155, %158 : vector<32x128xf32>
    %160 = math.exp %159 : vector<32x128xf32>
    %161 = math.log1p %160 : vector<32x128xf32>
    %162 = arith.select %157, %155, %161 : vector<32x128xi1>, vector<32x128xf32>
    %c12 = arith.constant 12 : index
    %163 = memref.load %arg3[%c12] : memref<24xf32, #tpu.memory_space<smem>>
    %164 = vector.broadcast %163 : f32 to vector<64x128xf32>
    %165 = arith.mulf %164, %84 : vector<64x128xf32>
    %c13 = arith.constant 13 : index
    %166 = memref.load %arg3[%c13] : memref<24xf32, #tpu.memory_space<smem>>
    %167 = vector.broadcast %166 : f32 to vector<64x128xf32>
    %168 = arith.mulf %167, %86 : vector<64x128xf32>
    %169 = arith.addf %165, %168 : vector<64x128xf32>
    %c14 = arith.constant 14 : index
    %170 = memref.load %arg3[%c14] : memref<24xf32, #tpu.memory_space<smem>>
    %171 = vector.broadcast %170 : f32 to vector<64x128xf32>
    %172 = arith.mulf %171, %88 : vector<64x128xf32>
    %173 = arith.addf %169, %172 : vector<64x128xf32>
    %c15 = arith.constant 15 : index
    %174 = memref.load %arg3[%c15] : memref<24xf32, #tpu.memory_space<smem>>
    %175 = vector.broadcast %174 : f32 to vector<64x128xf32>
    %176 = arith.mulf %175, %90 : vector<64x128xf32>
    %177 = arith.addf %173, %176 : vector<64x128xf32>
    %c16 = arith.constant 16 : index
    %178 = memref.load %arg3[%c16] : memref<24xf32, #tpu.memory_space<smem>>
    %179 = vector.broadcast %178 : f32 to vector<64x128xf32>
    %180 = arith.mulf %179, %92 : vector<64x128xf32>
    %181 = arith.addf %177, %180 : vector<64x128xf32>
    %c17 = arith.constant 17 : index
    %182 = memref.load %arg3[%c17] : memref<24xf32, #tpu.memory_space<smem>>
    %183 = vector.broadcast %182 : f32 to vector<64x128xf32>
    %184 = arith.mulf %183, %94 : vector<64x128xf32>
    %185 = arith.addf %181, %184 : vector<64x128xf32>
    %c0_95 = arith.constant 0 : index
    %c0_96 = arith.constant 0 : index
    %186 = vector.load %arg9[%c0_95, %c0_96] : memref<128x128xf32, #tpu.memory_space<vmem>>, vector<64x128xf32>
    tpu.vector_store %arg9[%c0_95, %c0_96], %185 {strides = array<i32>} : memref<128x128xf32, #tpu.memory_space<vmem>>, vector<64x128xf32>,
    %c0_97 = arith.constant 0 : index
    %c0_98 = arith.constant 0 : index
    %187 = tpu.strided_load %arg9[%c0_97, %c0_98] {strides = array<i32: 2, 1>} : memref<128x128xf32, #tpu.memory_space<vmem>>, vector<32x128xf32>
    %c1_99 = arith.constant 1 : index
    %c0_100 = arith.constant 0 : index
    %188 = tpu.strided_load %arg9[%c1_99, %c0_100] {strides = array<i32: 2, 1>} : memref<128x128xf32, #tpu.memory_space<vmem>>, vector<32x128xf32>
    %189 = arith.maximumf %187, %188 : vector<32x128xf32>
    %cst_101 = arith.constant 2.000000e+01 : f32
    %190 = vector.broadcast %cst_101 : f32 to vector<32x128xf32>
    %191 = arith.cmpf ogt, %189, %190 : vector<32x128xf32>
    %cst_102 = arith.constant 2.000000e+01 : f32
    %192 = vector.broadcast %cst_102 : f32 to vector<32x128xf32>
    %193 = arith.minimumf %189, %192 : vector<32x128xf32>
    %194 = math.exp %193 : vector<32x128xf32>
    %195 = math.log1p %194 : vector<32x128xf32>
    %196 = arith.select %191, %189, %195 : vector<32x128xi1>, vector<32x128xf32>
    %c18 = arith.constant 18 : index
    %197 = memref.load %arg3[%c18] : memref<24xf32, #tpu.memory_space<smem>>
    %198 = vector.broadcast %197 : f32 to vector<64x128xf32>
    %199 = arith.mulf %198, %84 : vector<64x128xf32>
    %c19 = arith.constant 19 : index
    %200 = memref.load %arg3[%c19] : memref<24xf32, #tpu.memory_space<smem>>
    %201 = vector.broadcast %200 : f32 to vector<64x128xf32>
    %202 = arith.mulf %201, %86 : vector<64x128xf32>
    %203 = arith.addf %199, %202 : vector<64x128xf32>
    %c20 = arith.constant 20 : index
    %204 = memref.load %arg3[%c20] : memref<24xf32, #tpu.memory_space<smem>>
    %205 = vector.broadcast %204 : f32 to vector<64x128xf32>
    %206 = arith.mulf %205, %88 : vector<64x128xf32>
    %207 = arith.addf %203, %206 : vector<64x128xf32>
    %c21 = arith.constant 21 : index
    %208 = memref.load %arg3[%c21] : memref<24xf32, #tpu.memory_space<smem>>
    %209 = vector.broadcast %208 : f32 to vector<64x128xf32>
    %210 = arith.mulf %209, %90 : vector<64x128xf32>
    %211 = arith.addf %207, %210 : vector<64x128xf32>
    %c22 = arith.constant 22 : index
    %212 = memref.load %arg3[%c22] : memref<24xf32, #tpu.memory_space<smem>>
    %213 = vector.broadcast %212 : f32 to vector<64x128xf32>
    %214 = arith.mulf %213, %92 : vector<64x128xf32>
    %215 = arith.addf %211, %214 : vector<64x128xf32>
    %c23 = arith.constant 23 : index
    %216 = memref.load %arg3[%c23] : memref<24xf32, #tpu.memory_space<smem>>
    %217 = vector.broadcast %216 : f32 to vector<64x128xf32>
    %218 = arith.mulf %217, %94 : vector<64x128xf32>
    %219 = arith.addf %215, %218 : vector<64x128xf32>
    %c0_103 = arith.constant 0 : index
    %c0_104 = arith.constant 0 : index
    %220 = vector.load %arg10[%c0_103, %c0_104] : memref<128x128xf32, #tpu.memory_space<vmem>>, vector<64x128xf32>
    tpu.vector_store %arg10[%c0_103, %c0_104], %219 {strides = array<i32>} : memref<128x128xf32, #tpu.memory_space<vmem>>, vector<64x128xf32>,
    %c0_105 = arith.constant 0 : index
    %c0_106 = arith.constant 0 : index
    %221 = tpu.strided_load %arg10[%c0_105, %c0_106] {strides = array<i32: 2, 1>} : memref<128x128xf32, #tpu.memory_space<vmem>>, vector<32x128xf32>
    %c1_107 = arith.constant 1 : index
    %c0_108 = arith.constant 0 : index
    %222 = tpu.strided_load %arg10[%c1_107, %c0_108] {strides = array<i32: 2, 1>} : memref<128x128xf32, #tpu.memory_space<vmem>>, vector<32x128xf32>
    %223 = arith.maximumf %221, %222 : vector<32x128xf32>
    %cst_109 = arith.constant 2.000000e+01 : f32
    %224 = vector.broadcast %cst_109 : f32 to vector<32x128xf32>
    %225 = arith.cmpf ogt, %223, %224 : vector<32x128xf32>
    %cst_110 = arith.constant 2.000000e+01 : f32
    %226 = vector.broadcast %cst_110 : f32 to vector<32x128xf32>
    %227 = arith.minimumf %223, %226 : vector<32x128xf32>
    %228 = math.exp %227 : vector<32x128xf32>
    %229 = math.log1p %228 : vector<32x128xf32>
    %230 = arith.select %225, %223, %229 : vector<32x128xi1>, vector<32x128xf32>
    %cst_111 = arith.constant 0.000000e+00 : f32
    %231 = vector.broadcast %cst_111 : f32 to vector<1x128xf32>
    %c0_112 = arith.constant 0 : index
    %c0_113 = arith.constant 0 : index
    %c0_114 = arith.constant 0 : index
    %232 = vector.load %arg8[%c0_112, %c0_113, %c0_114] : memref<4x34x128xf32, #tpu.memory_space<vmem>>, vector<1x1x128xf32>
    %233 = vector.shape_cast %232 : vector<1x1x128xf32> to vector<1x128xf32>
    %234 = vector.shape_cast %231 : vector<1x128xf32> to vector<1x1x128xf32>
    tpu.vector_store %arg8[%c0_112, %c0_113, %c0_114], %234 {strides = array<i32>} : memref<4x34x128xf32, #tpu.memory_space<vmem>>, vector<1x1x128xf32>,
    %c0_115 = arith.constant 0 : index
    %c1_116 = arith.constant 1 : index
    %c0_117 = arith.constant 0 : index
    %235 = vector.load %arg8[%c0_115, %c1_116, %c0_117] : memref<4x34x128xf32, #tpu.memory_space<vmem>>, vector<1x32x128xf32>
    %236 = vector.shape_cast %235 : vector<1x32x128xf32> to vector<32x128xf32>
    %237 = vector.shape_cast %128 : vector<32x128xf32> to vector<1x32x128xf32>
    tpu.vector_store %arg8[%c0_115, %c1_116, %c0_117], %237 {strides = array<i32>} : memref<4x34x128xf32, #tpu.memory_space<vmem>>, vector<1x32x128xf32>,
    %c0_118 = arith.constant 0 : index
    %c33 = arith.constant 33 : index
    %c0_119 = arith.constant 0 : index
    %238 = vector.load %arg8[%c0_118, %c33, %c0_119] : memref<4x34x128xf32, #tpu.memory_space<vmem>>, vector<1x1x128xf32>
    %239 = vector.shape_cast %238 : vector<1x1x128xf32> to vector<1x128xf32>
    %240 = vector.shape_cast %231 : vector<1x128xf32> to vector<1x1x128xf32>
    tpu.vector_store %arg8[%c0_118, %c33, %c0_119], %240 {strides = array<i32>} : memref<4x34x128xf32, #tpu.memory_space<vmem>>, vector<1x1x128xf32>,
    %cst_120 = arith.constant 0.000000e+00 : f32
    %241 = vector.broadcast %cst_120 : f32 to vector<1x128xf32>
    %c1_121 = arith.constant 1 : index
    %c0_122 = arith.constant 0 : index
    %c0_123 = arith.constant 0 : index
    %242 = vector.load %arg8[%c1_121, %c0_122, %c0_123] : memref<4x34x128xf32, #tpu.memory_space<vmem>>, vector<1x1x128xf32>
    %243 = vector.shape_cast %242 : vector<1x1x128xf32> to vector<1x128xf32>
    %244 = vector.shape_cast %241 : vector<1x128xf32> to vector<1x1x128xf32>
    tpu.vector_store %arg8[%c1_121, %c0_122, %c0_123], %244 {strides = array<i32>} : memref<4x34x128xf32, #tpu.memory_space<vmem>>, vector<1x1x128xf32>,
    %c1_124 = arith.constant 1 : index
    %c1_125 = arith.constant 1 : index
    %c0_126 = arith.constant 0 : index
    %245 = vector.load %arg8[%c1_124, %c1_125, %c0_126] : memref<4x34x128xf32, #tpu.memory_space<vmem>>, vector<1x32x128xf32>
    %246 = vector.shape_cast %245 : vector<1x32x128xf32> to vector<32x128xf32>
    %247 = vector.shape_cast %162 : vector<32x128xf32> to vector<1x32x128xf32>
    tpu.vector_store %arg8[%c1_124, %c1_125, %c0_126], %247 {strides = array<i32>} : memref<4x34x128xf32, #tpu.memory_space<vmem>>, vector<1x32x128xf32>,
    %c1_127 = arith.constant 1 : index
    %c33_128 = arith.constant 33 : index
    %c0_129 = arith.constant 0 : index
    %248 = vector.load %arg8[%c1_127, %c33_128, %c0_129] : memref<4x34x128xf32, #tpu.memory_space<vmem>>, vector<1x1x128xf32>
    %249 = vector.shape_cast %248 : vector<1x1x128xf32> to vector<1x128xf32>
    %250 = vector.shape_cast %241 : vector<1x128xf32> to vector<1x1x128xf32>
    tpu.vector_store %arg8[%c1_127, %c33_128, %c0_129], %250 {strides = array<i32>} : memref<4x34x128xf32, #tpu.memory_space<vmem>>, vector<1x1x128xf32>,
    %cst_130 = arith.constant 0.000000e+00 : f32
    %251 = vector.broadcast %cst_130 : f32 to vector<1x128xf32>
    %c2_131 = arith.constant 2 : index
    %c0_132 = arith.constant 0 : index
    %c0_133 = arith.constant 0 : index
    %252 = vector.load %arg8[%c2_131, %c0_132, %c0_133] : memref<4x34x128xf32, #tpu.memory_space<vmem>>, vector<1x1x128xf32>
    %253 = vector.shape_cast %252 : vector<1x1x128xf32> to vector<1x128xf32>
    %254 = vector.shape_cast %251 : vector<1x128xf32> to vector<1x1x128xf32>
    tpu.vector_store %arg8[%c2_131, %c0_132, %c0_133], %254 {strides = array<i32>} : memref<4x34x128xf32, #tpu.memory_space<vmem>>, vector<1x1x128xf32>,
    %c2_134 = arith.constant 2 : index
    %c1_135 = arith.constant 1 : index
    %c0_136 = arith.constant 0 : index
    %255 = vector.load %arg8[%c2_134, %c1_135, %c0_136] : memref<4x34x128xf32, #tpu.memory_space<vmem>>, vector<1x32x128xf32>
    %256 = vector.shape_cast %255 : vector<1x32x128xf32> to vector<32x128xf32>
    %257 = vector.shape_cast %196 : vector<32x128xf32> to vector<1x32x128xf32>
    tpu.vector_store %arg8[%c2_134, %c1_135, %c0_136], %257 {strides = array<i32>} : memref<4x34x128xf32, #tpu.memory_space<vmem>>, vector<1x32x128xf32>,
    %c2_137 = arith.constant 2 : index
    %c33_138 = arith.constant 33 : index
    %c0_139 = arith.constant 0 : index
    %258 = vector.load %arg8[%c2_137, %c33_138, %c0_139] : memref<4x34x128xf32, #tpu.memory_space<vmem>>, vector<1x1x128xf32>
    %259 = vector.shape_cast %258 : vector<1x1x128xf32> to vector<1x128xf32>
    %260 = vector.shape_cast %251 : vector<1x128xf32> to vector<1x1x128xf32>
    tpu.vector_store %arg8[%c2_137, %c33_138, %c0_139], %260 {strides = array<i32>} : memref<4x34x128xf32, #tpu.memory_space<vmem>>, vector<1x1x128xf32>,
    %cst_140 = arith.constant 0.000000e+00 : f32
    %261 = vector.broadcast %cst_140 : f32 to vector<1x128xf32>
    %c3_141 = arith.constant 3 : index
    %c0_142 = arith.constant 0 : index
    %c0_143 = arith.constant 0 : index
    %262 = vector.load %arg8[%c3_141, %c0_142, %c0_143] : memref<4x34x128xf32, #tpu.memory_space<vmem>>, vector<1x1x128xf32>
    %263 = vector.shape_cast %262 : vector<1x1x128xf32> to vector<1x128xf32>
    %264 = vector.shape_cast %261 : vector<1x128xf32> to vector<1x1x128xf32>
    tpu.vector_store %arg8[%c3_141, %c0_142, %c0_143], %264 {strides = array<i32>} : memref<4x34x128xf32, #tpu.memory_space<vmem>>, vector<1x1x128xf32>,
    %c3_144 = arith.constant 3 : index
    %c1_145 = arith.constant 1 : index
    %c0_146 = arith.constant 0 : index
    %265 = vector.load %arg8[%c3_144, %c1_145, %c0_146] : memref<4x34x128xf32, #tpu.memory_space<vmem>>, vector<1x32x128xf32>
    %266 = vector.shape_cast %265 : vector<1x32x128xf32> to vector<32x128xf32>
    %267 = vector.shape_cast %230 : vector<32x128xf32> to vector<1x32x128xf32>
    tpu.vector_store %arg8[%c3_144, %c1_145, %c0_146], %267 {strides = array<i32>} : memref<4x34x128xf32, #tpu.memory_space<vmem>>, vector<1x32x128xf32>,
    %c3_147 = arith.constant 3 : index
    %c33_148 = arith.constant 33 : index
    %c0_149 = arith.constant 0 : index
    %268 = vector.load %arg8[%c3_147, %c33_148, %c0_149] : memref<4x34x128xf32, #tpu.memory_space<vmem>>, vector<1x1x128xf32>
    %269 = vector.shape_cast %268 : vector<1x1x128xf32> to vector<1x128xf32>
    %270 = vector.shape_cast %261 : vector<1x128xf32> to vector<1x1x128xf32>
    tpu.vector_store %arg8[%c3_147, %c33_148, %c0_149], %270 {strides = array<i32>} : memref<4x34x128xf32, #tpu.memory_space<vmem>>, vector<1x1x128xf32>,
    %c0_150 = arith.constant 0 : index
    %c0_151 = arith.constant 0 : index
    %c0_152 = arith.constant 0 : index
    %271 = vector.load %arg8[%c0_150, %c0_151, %c0_152] : memref<4x34x128xf32, #tpu.memory_space<vmem>>, vector<1x32x128xf32>
    %272 = vector.shape_cast %271 : vector<1x32x128xf32> to vector<32x128xf32>
    %c0_153 = arith.constant 0 : index
    %c1_154 = arith.constant 1 : index
    %c0_155 = arith.constant 0 : index
    %273 = vector.load %arg8[%c0_153, %c1_154, %c0_155] : memref<4x34x128xf32, #tpu.memory_space<vmem>>, vector<1x32x128xf32>
    %274 = vector.shape_cast %273 : vector<1x32x128xf32> to vector<32x128xf32>
    %c0_156 = arith.constant 0 : index
    %c2_157 = arith.constant 2 : index
    %c0_158 = arith.constant 0 : index
    %275 = vector.load %arg8[%c0_156, %c2_157, %c0_158] : memref<4x34x128xf32, #tpu.memory_space<vmem>>, vector<1x32x128xf32>
    %276 = vector.shape_cast %275 : vector<1x32x128xf32> to vector<32x128xf32>
    %c1_159 = arith.constant 1 : index
    %c0_160 = arith.constant 0 : index
    %c0_161 = arith.constant 0 : index
    %277 = vector.load %arg8[%c1_159, %c0_160, %c0_161] : memref<4x34x128xf32, #tpu.memory_space<vmem>>, vector<1x32x128xf32>
    %278 = vector.shape_cast %277 : vector<1x32x128xf32> to vector<32x128xf32>
    %c1_162 = arith.constant 1 : index
    %c1_163 = arith.constant 1 : index
    %c0_164 = arith.constant 0 : index
    %279 = vector.load %arg8[%c1_162, %c1_163, %c0_164] : memref<4x34x128xf32, #tpu.memory_space<vmem>>, vector<1x32x128xf32>
    %280 = vector.shape_cast %279 : vector<1x32x128xf32> to vector<32x128xf32>
    %c1_165 = arith.constant 1 : index
    %c2_166 = arith.constant 2 : index
    %c0_167 = arith.constant 0 : index
    %281 = vector.load %arg8[%c1_165, %c2_166, %c0_167] : memref<4x34x128xf32, #tpu.memory_space<vmem>>, vector<1x32x128xf32>
    %282 = vector.shape_cast %281 : vector<1x32x128xf32> to vector<32x128xf32>
    %c2_168 = arith.constant 2 : index
    %c0_169 = arith.constant 0 : index
    %c0_170 = arith.constant 0 : index
    %283 = vector.load %arg8[%c2_168, %c0_169, %c0_170] : memref<4x34x128xf32, #tpu.memory_space<vmem>>, vector<1x32x128xf32>
    %284 = vector.shape_cast %283 : vector<1x32x128xf32> to vector<32x128xf32>
    %c2_171 = arith.constant 2 : index
    %c1_172 = arith.constant 1 : index
    %c0_173 = arith.constant 0 : index
    %285 = vector.load %arg8[%c2_171, %c1_172, %c0_173] : memref<4x34x128xf32, #tpu.memory_space<vmem>>, vector<1x32x128xf32>
    %286 = vector.shape_cast %285 : vector<1x32x128xf32> to vector<32x128xf32>
    %c2_174 = arith.constant 2 : index
    %c2_175 = arith.constant 2 : index
    %c0_176 = arith.constant 0 : index
    %287 = vector.load %arg8[%c2_174, %c2_175, %c0_176] : memref<4x34x128xf32, #tpu.memory_space<vmem>>, vector<1x32x128xf32>
    %288 = vector.shape_cast %287 : vector<1x32x128xf32> to vector<32x128xf32>
    %c3_177 = arith.constant 3 : index
    %c0_178 = arith.constant 0 : index
    %c0_179 = arith.constant 0 : index
    %289 = vector.load %arg8[%c3_177, %c0_178, %c0_179] : memref<4x34x128xf32, #tpu.memory_space<vmem>>, vector<1x32x128xf32>
    %290 = vector.shape_cast %289 : vector<1x32x128xf32> to vector<32x128xf32>
    %c3_180 = arith.constant 3 : index
    %c1_181 = arith.constant 1 : index
    %c0_182 = arith.constant 0 : index
    %291 = vector.load %arg8[%c3_180, %c1_181, %c0_182] : memref<4x34x128xf32, #tpu.memory_space<vmem>>, vector<1x32x128xf32>
    %292 = vector.shape_cast %291 : vector<1x32x128xf32> to vector<32x128xf32>
    %c3_183 = arith.constant 3 : index
    %c2_184 = arith.constant 2 : index
    %c0_185 = arith.constant 0 : index
    %293 = vector.load %arg8[%c3_183, %c2_184, %c0_185] : memref<4x34x128xf32, #tpu.memory_space<vmem>>, vector<1x32x128xf32>
    %294 = vector.shape_cast %293 : vector<1x32x128xf32> to vector<32x128xf32>
    %c0_186 = arith.constant 0 : index
    %295 = memref.load %arg4[%c0_186] : memref<96xf32, #tpu.memory_space<smem>>
    %296 = vector.broadcast %295 : f32 to vector<32x128xf32>
    %297 = arith.mulf %296, %272 : vector<32x128xf32>
    %c1_187 = arith.constant 1 : index
    %298 = memref.load %arg4[%c1_187] : memref<96xf32, #tpu.memory_space<smem>>
    %299 = vector.broadcast %298 : f32 to vector<32x128xf32>
    %300 = arith.mulf %299, %274 : vector<32x128xf32>
    %301 = arith.addf %297, %300 : vector<32x128xf32>
    %c2_188 = arith.constant 2 : index
    %302 = memref.load %arg4[%c2_188] : memref<96xf32, #tpu.memory_space<smem>>
    %303 = vector.broadcast %302 : f32 to vector<32x128xf32>
    %304 = arith.mulf %303, %276 : vector<32x128xf32>
    %305 = arith.addf %301, %304 : vector<32x128xf32>
    %c3_189 = arith.constant 3 : index
    %306 = memref.load %arg4[%c3_189] : memref<96xf32, #tpu.memory_space<smem>>
    %307 = vector.broadcast %306 : f32 to vector<32x128xf32>
    %308 = arith.mulf %307, %278 : vector<32x128xf32>
    %309 = arith.addf %305, %308 : vector<32x128xf32>
    %c4_190 = arith.constant 4 : index
    %310 = memref.load %arg4[%c4_190] : memref<96xf32, #tpu.memory_space<smem>>
    %311 = vector.broadcast %310 : f32 to vector<32x128xf32>
    %312 = arith.mulf %311, %280 : vector<32x128xf32>
    %313 = arith.addf %309, %312 : vector<32x128xf32>
    %c5_191 = arith.constant 5 : index
    %314 = memref.load %arg4[%c5_191] : memref<96xf32, #tpu.memory_space<smem>>
    %315 = vector.broadcast %314 : f32 to vector<32x128xf32>
    %316 = arith.mulf %315, %282 : vector<32x128xf32>
    %317 = arith.addf %313, %316 : vector<32x128xf32>
    %c6_192 = arith.constant 6 : index
    %318 = memref.load %arg4[%c6_192] : memref<96xf32, #tpu.memory_space<smem>>
    %319 = vector.broadcast %318 : f32 to vector<32x128xf32>
    %320 = arith.mulf %319, %284 : vector<32x128xf32>
    %321 = arith.addf %317, %320 : vector<32x128xf32>
    %c7_193 = arith.constant 7 : index
    %322 = memref.load %arg4[%c7_193] : memref<96xf32, #tpu.memory_space<smem>>
    %323 = vector.broadcast %322 : f32 to vector<32x128xf32>
    %324 = arith.mulf %323, %286 : vector<32x128xf32>
    %325 = arith.addf %321, %324 : vector<32x128xf32>
    %c8_194 = arith.constant 8 : index
    %326 = memref.load %arg4[%c8_194] : memref<96xf32, #tpu.memory_space<smem>>
    %327 = vector.broadcast %326 : f32 to vector<32x128xf32>
    %328 = arith.mulf %327, %288 : vector<32x128xf32>
    %329 = arith.addf %325, %328 : vector<32x128xf32>
    %c9_195 = arith.constant 9 : index
    %330 = memref.load %arg4[%c9_195] : memref<96xf32, #tpu.memory_space<smem>>
    %331 = vector.broadcast %330 : f32 to vector<32x128xf32>
    %332 = arith.mulf %331, %290 : vector<32x128xf32>
    %333 = arith.addf %329, %332 : vector<32x128xf32>
    %c10_196 = arith.constant 10 : index
    %334 = memref.load %arg4[%c10_196] : memref<96xf32, #tpu.memory_space<smem>>
    %335 = vector.broadcast %334 : f32 to vector<32x128xf32>
    %336 = arith.mulf %335, %292 : vector<32x128xf32>
    %337 = arith.addf %333, %336 : vector<32x128xf32>
    %c11_197 = arith.constant 11 : index
    %338 = memref.load %arg4[%c11_197] : memref<96xf32, #tpu.memory_space<smem>>
    %339 = vector.broadcast %338 : f32 to vector<32x128xf32>
    %340 = arith.mulf %339, %294 : vector<32x128xf32>
    %341 = arith.addf %337, %340 : vector<32x128xf32>
    %c0_198 = arith.constant 0 : index
    %c0_199 = arith.constant 0 : index
    %342 = vector.load %arg9[%c0_198, %c0_199] : memref<128x128xf32, #tpu.memory_space<vmem>>, vector<32x128xf32>
    tpu.vector_store %arg9[%c0_198, %c0_199], %341 {strides = array<i32>} : memref<128x128xf32, #tpu.memory_space<vmem>>, vector<32x128xf32>,
    %c0_200 = arith.constant 0 : index
    %c0_201 = arith.constant 0 : index
    %343 = tpu.strided_load %arg9[%c0_200, %c0_201] {strides = array<i32: 2, 1>} : memref<128x128xf32, #tpu.memory_space<vmem>>, vector<16x128xf32>
    %c1_202 = arith.constant 1 : index
    %c0_203 = arith.constant 0 : index
    %344 = tpu.strided_load %arg9[%c1_202, %c0_203] {strides = array<i32: 2, 1>} : memref<128x128xf32, #tpu.memory_space<vmem>>, vector<16x128xf32>
    %345 = arith.maximumf %343, %344 : vector<16x128xf32>
    %cst_204 = arith.constant 2.000000e+01 : f32
    %346 = vector.broadcast %cst_204 : f32 to vector<16x128xf32>
    %347 = arith.cmpf ogt, %345, %346 : vector<16x128xf32>
    %cst_205 = arith.constant 2.000000e+01 : f32
    %348 = vector.broadcast %cst_205 : f32 to vector<16x128xf32>
    %349 = arith.minimumf %345, %348 : vector<16x128xf32>
    %350 = math.exp %349 : vector<16x128xf32>
    %351 = math.log1p %350 : vector<16x128xf32>
    %352 = arith.select %347, %345, %351 : vector<16x128xi1>, vector<16x128xf32>
    %c12_206 = arith.constant 12 : index
    %353 = memref.load %arg4[%c12_206] : memref<96xf32, #tpu.memory_space<smem>>
    %354 = vector.broadcast %353 : f32 to vector<32x128xf32>
    %355 = arith.mulf %354, %272 : vector<32x128xf32>
    %c13_207 = arith.constant 13 : index
    %356 = memref.load %arg4[%c13_207] : memref<96xf32, #tpu.memory_space<smem>>
    %357 = vector.broadcast %356 : f32 to vector<32x128xf32>
    %358 = arith.mulf %357, %274 : vector<32x128xf32>
    %359 = arith.addf %355, %358 : vector<32x128xf32>
    %c14_208 = arith.constant 14 : index
    %360 = memref.load %arg4[%c14_208] : memref<96xf32, #tpu.memory_space<smem>>
    %361 = vector.broadcast %360 : f32 to vector<32x128xf32>
    %362 = arith.mulf %361, %276 : vector<32x128xf32>
    %363 = arith.addf %359, %362 : vector<32x128xf32>
    %c15_209 = arith.constant 15 : index
    %364 = memref.load %arg4[%c15_209] : memref<96xf32, #tpu.memory_space<smem>>
    %365 = vector.broadcast %364 : f32 to vector<32x128xf32>
    %366 = arith.mulf %365, %278 : vector<32x128xf32>
    %367 = arith.addf %363, %366 : vector<32x128xf32>
    %c16_210 = arith.constant 16 : index
    %368 = memref.load %arg4[%c16_210] : memref<96xf32, #tpu.memory_space<smem>>
    %369 = vector.broadcast %368 : f32 to vector<32x128xf32>
    %370 = arith.mulf %369, %280 : vector<32x128xf32>
    %371 = arith.addf %367, %370 : vector<32x128xf32>
    %c17_211 = arith.constant 17 : index
    %372 = memref.load %arg4[%c17_211] : memref<96xf32, #tpu.memory_space<smem>>
    %373 = vector.broadcast %372 : f32 to vector<32x128xf32>
    %374 = arith.mulf %373, %282 : vector<32x128xf32>
    %375 = arith.addf %371, %374 : vector<32x128xf32>
    %c18_212 = arith.constant 18 : index
    %376 = memref.load %arg4[%c18_212] : memref<96xf32, #tpu.memory_space<smem>>
    %377 = vector.broadcast %376 : f32 to vector<32x128xf32>
    %378 = arith.mulf %377, %284 : vector<32x128xf32>
    %379 = arith.addf %375, %378 : vector<32x128xf32>
    %c19_213 = arith.constant 19 : index
    %380 = memref.load %arg4[%c19_213] : memref<96xf32, #tpu.memory_space<smem>>
    %381 = vector.broadcast %380 : f32 to vector<32x128xf32>
    %382 = arith.mulf %381, %286 : vector<32x128xf32>
    %383 = arith.addf %379, %382 : vector<32x128xf32>
    %c20_214 = arith.constant 20 : index
    %384 = memref.load %arg4[%c20_214] : memref<96xf32, #tpu.memory_space<smem>>
    %385 = vector.broadcast %384 : f32 to vector<32x128xf32>
    %386 = arith.mulf %385, %288 : vector<32x128xf32>
    %387 = arith.addf %383, %386 : vector<32x128xf32>
    %c21_215 = arith.constant 21 : index
    %388 = memref.load %arg4[%c21_215] : memref<96xf32, #tpu.memory_space<smem>>
    %389 = vector.broadcast %388 : f32 to vector<32x128xf32>
    %390 = arith.mulf %389, %290 : vector<32x128xf32>
    %391 = arith.addf %387, %390 : vector<32x128xf32>
    %c22_216 = arith.constant 22 : index
    %392 = memref.load %arg4[%c22_216] : memref<96xf32, #tpu.memory_space<smem>>
    %393 = vector.broadcast %392 : f32 to vector<32x128xf32>
    %394 = arith.mulf %393, %292 : vector<32x128xf32>
    %395 = arith.addf %391, %394 : vector<32x128xf32>
    %c23_217 = arith.constant 23 : index
    %396 = memref.load %arg4[%c23_217] : memref<96xf32, #tpu.memory_space<smem>>
    %397 = vector.broadcast %396 : f32 to vector<32x128xf32>
    %398 = arith.mulf %397, %294 : vector<32x128xf32>
    %399 = arith.addf %395, %398 : vector<32x128xf32>
    %c0_218 = arith.constant 0 : index
    %c0_219 = arith.constant 0 : index
    %400 = vector.load %arg10[%c0_218, %c0_219] : memref<128x128xf32, #tpu.memory_space<vmem>>, vector<32x128xf32>
    tpu.vector_store %arg10[%c0_218, %c0_219], %399 {strides = array<i32>} : memref<128x128xf32, #tpu.memory_space<vmem>>, vector<32x128xf32>,
    %c0_220 = arith.constant 0 : index
    %c0_221 = arith.constant 0 : index
    %401 = tpu.strided_load %arg10[%c0_220, %c0_221] {strides = array<i32: 2, 1>} : memref<128x128xf32, #tpu.memory_space<vmem>>, vector<16x128xf32>
    %c1_222 = arith.constant 1 : index
    %c0_223 = arith.constant 0 : index
    %402 = tpu.strided_load %arg10[%c1_222, %c0_223] {strides = array<i32: 2, 1>} : memref<128x128xf32, #tpu.memory_space<vmem>>, vector<16x128xf32>
    %403 = arith.maximumf %401, %402 : vector<16x128xf32>
    %cst_224 = arith.constant 2.000000e+01 : f32
    %404 = vector.broadcast %cst_224 : f32 to vector<16x128xf32>
    %405 = arith.cmpf ogt, %403, %404 : vector<16x128xf32>
    %cst_225 = arith.constant 2.000000e+01 : f32
    %406 = vector.broadcast %cst_225 : f32 to vector<16x128xf32>
    %407 = arith.minimumf %403, %406 : vector<16x128xf32>
    %408 = math.exp %407 : vector<16x128xf32>
    %409 = math.log1p %408 : vector<16x128xf32>
    %410 = arith.select %405, %403, %409 : vector<16x128xi1>, vector<16x128xf32>
    %c24 = arith.constant 24 : index
    %411 = memref.load %arg4[%c24] : memref<96xf32, #tpu.memory_space<smem>>
    %412 = vector.broadcast %411 : f32 to vector<32x128xf32>
    %413 = arith.mulf %412, %272 : vector<32x128xf32>
    %c25 = arith.constant 25 : index
    %414 = memref.load %arg4[%c25] : memref<96xf32, #tpu.memory_space<smem>>
    %415 = vector.broadcast %414 : f32 to vector<32x128xf32>
    %416 = arith.mulf %415, %274 : vector<32x128xf32>
    %417 = arith.addf %413, %416 : vector<32x128xf32>
    %c26 = arith.constant 26 : index
    %418 = memref.load %arg4[%c26] : memref<96xf32, #tpu.memory_space<smem>>
    %419 = vector.broadcast %418 : f32 to vector<32x128xf32>
    %420 = arith.mulf %419, %276 : vector<32x128xf32>
    %421 = arith.addf %417, %420 : vector<32x128xf32>
    %c27 = arith.constant 27 : index
    %422 = memref.load %arg4[%c27] : memref<96xf32, #tpu.memory_space<smem>>
    %423 = vector.broadcast %422 : f32 to vector<32x128xf32>
    %424 = arith.mulf %423, %278 : vector<32x128xf32>
    %425 = arith.addf %421, %424 : vector<32x128xf32>
    %c28 = arith.constant 28 : index
    %426 = memref.load %arg4[%c28] : memref<96xf32, #tpu.memory_space<smem>>
    %427 = vector.broadcast %426 : f32 to vector<32x128xf32>
    %428 = arith.mulf %427, %280 : vector<32x128xf32>
    %429 = arith.addf %425, %428 : vector<32x128xf32>
    %c29 = arith.constant 29 : index
    %430 = memref.load %arg4[%c29] : memref<96xf32, #tpu.memory_space<smem>>
    %431 = vector.broadcast %430 : f32 to vector<32x128xf32>
    %432 = arith.mulf %431, %282 : vector<32x128xf32>
    %433 = arith.addf %429, %432 : vector<32x128xf32>
    %c30 = arith.constant 30 : index
    %434 = memref.load %arg4[%c30] : memref<96xf32, #tpu.memory_space<smem>>
    %435 = vector.broadcast %434 : f32 to vector<32x128xf32>
    %436 = arith.mulf %435, %284 : vector<32x128xf32>
    %437 = arith.addf %433, %436 : vector<32x128xf32>
    %c31 = arith.constant 31 : index
    %438 = memref.load %arg4[%c31] : memref<96xf32, #tpu.memory_space<smem>>
    %439 = vector.broadcast %438 : f32 to vector<32x128xf32>
    %440 = arith.mulf %439, %286 : vector<32x128xf32>
    %441 = arith.addf %437, %440 : vector<32x128xf32>
    %c32 = arith.constant 32 : index
    %442 = memref.load %arg4[%c32] : memref<96xf32, #tpu.memory_space<smem>>
    %443 = vector.broadcast %442 : f32 to vector<32x128xf32>
    %444 = arith.mulf %443, %288 : vector<32x128xf32>
    %445 = arith.addf %441, %444 : vector<32x128xf32>
    %c33_226 = arith.constant 33 : index
    %446 = memref.load %arg4[%c33_226] : memref<96xf32, #tpu.memory_space<smem>>
    %447 = vector.broadcast %446 : f32 to vector<32x128xf32>
    %448 = arith.mulf %447, %290 : vector<32x128xf32>
    %449 = arith.addf %445, %448 : vector<32x128xf32>
    %c34 = arith.constant 34 : index
    %450 = memref.load %arg4[%c34] : memref<96xf32, #tpu.memory_space<smem>>
    %451 = vector.broadcast %450 : f32 to vector<32x128xf32>
    %452 = arith.mulf %451, %292 : vector<32x128xf32>
    %453 = arith.addf %449, %452 : vector<32x128xf32>
    %c35 = arith.constant 35 : index
    %454 = memref.load %arg4[%c35] : memref<96xf32, #tpu.memory_space<smem>>
    %455 = vector.broadcast %454 : f32 to vector<32x128xf32>
    %456 = arith.mulf %455, %294 : vector<32x128xf32>
    %457 = arith.addf %453, %456 : vector<32x128xf32>
    %c0_227 = arith.constant 0 : index
    %c0_228 = arith.constant 0 : index
    %458 = vector.load %arg9[%c0_227, %c0_228] : memref<128x128xf32, #tpu.memory_space<vmem>>, vector<32x128xf32>
    tpu.vector_store %arg9[%c0_227, %c0_228], %457 {strides = array<i32>} : memref<128x128xf32, #tpu.memory_space<vmem>>, vector<32x128xf32>,
    %c0_229 = arith.constant 0 : index
    %c0_230 = arith.constant 0 : index
    %459 = tpu.strided_load %arg9[%c0_229, %c0_230] {strides = array<i32: 2, 1>} : memref<128x128xf32, #tpu.memory_space<vmem>>, vector<16x128xf32>
    %c1_231 = arith.constant 1 : index
    %c0_232 = arith.constant 0 : index
    %460 = tpu.strided_load %arg9[%c1_231, %c0_232] {strides = array<i32: 2, 1>} : memref<128x128xf32, #tpu.memory_space<vmem>>, vector<16x128xf32>
    %461 = arith.maximumf %459, %460 : vector<16x128xf32>
    %cst_233 = arith.constant 2.000000e+01 : f32
    %462 = vector.broadcast %cst_233 : f32 to vector<16x128xf32>
    %463 = arith.cmpf ogt, %461, %462 : vector<16x128xf32>
    %cst_234 = arith.constant 2.000000e+01 : f32
    %464 = vector.broadcast %cst_234 : f32 to vector<16x128xf32>
    %465 = arith.minimumf %461, %464 : vector<16x128xf32>
    %466 = math.exp %465 : vector<16x128xf32>
    %467 = math.log1p %466 : vector<16x128xf32>
    %468 = arith.select %463, %461, %467 : vector<16x128xi1>, vector<16x128xf32>
    %c36 = arith.constant 36 : index
    %469 = memref.load %arg4[%c36] : memref<96xf32, #tpu.memory_space<smem>>
    %470 = vector.broadcast %469 : f32 to vector<32x128xf32>
    %471 = arith.mulf %470, %272 : vector<32x128xf32>
    %c37 = arith.constant 37 : index
    %472 = memref.load %arg4[%c37] : memref<96xf32, #tpu.memory_space<smem>>
    %473 = vector.broadcast %472 : f32 to vector<32x128xf32>
    %474 = arith.mulf %473, %274 : vector<32x128xf32>
    %475 = arith.addf %471, %474 : vector<32x128xf32>
    %c38 = arith.constant 38 : index
    %476 = memref.load %arg4[%c38] : memref<96xf32, #tpu.memory_space<smem>>
    %477 = vector.broadcast %476 : f32 to vector<32x128xf32>
    %478 = arith.mulf %477, %276 : vector<32x128xf32>
    %479 = arith.addf %475, %478 : vector<32x128xf32>
    %c39 = arith.constant 39 : index
    %480 = memref.load %arg4[%c39] : memref<96xf32, #tpu.memory_space<smem>>
    %481 = vector.broadcast %480 : f32 to vector<32x128xf32>
    %482 = arith.mulf %481, %278 : vector<32x128xf32>
    %483 = arith.addf %479, %482 : vector<32x128xf32>
    %c40 = arith.constant 40 : index
    %484 = memref.load %arg4[%c40] : memref<96xf32, #tpu.memory_space<smem>>
    %485 = vector.broadcast %484 : f32 to vector<32x128xf32>
    %486 = arith.mulf %485, %280 : vector<32x128xf32>
    %487 = arith.addf %483, %486 : vector<32x128xf32>
    %c41 = arith.constant 41 : index
    %488 = memref.load %arg4[%c41] : memref<96xf32, #tpu.memory_space<smem>>
    %489 = vector.broadcast %488 : f32 to vector<32x128xf32>
    %490 = arith.mulf %489, %282 : vector<32x128xf32>
    %491 = arith.addf %487, %490 : vector<32x128xf32>
    %c42 = arith.constant 42 : index
    %492 = memref.load %arg4[%c42] : memref<96xf32, #tpu.memory_space<smem>>
    %493 = vector.broadcast %492 : f32 to vector<32x128xf32>
    %494 = arith.mulf %493, %284 : vector<32x128xf32>
    %495 = arith.addf %491, %494 : vector<32x128xf32>
    %c43 = arith.constant 43 : index
    %496 = memref.load %arg4[%c43] : memref<96xf32, #tpu.memory_space<smem>>
    %497 = vector.broadcast %496 : f32 to vector<32x128xf32>
    %498 = arith.mulf %497, %286 : vector<32x128xf32>
    %499 = arith.addf %495, %498 : vector<32x128xf32>
    %c44 = arith.constant 44 : index
    %500 = memref.load %arg4[%c44] : memref<96xf32, #tpu.memory_space<smem>>
    %501 = vector.broadcast %500 : f32 to vector<32x128xf32>
    %502 = arith.mulf %501, %288 : vector<32x128xf32>
    %503 = arith.addf %499, %502 : vector<32x128xf32>
    %c45 = arith.constant 45 : index
    %504 = memref.load %arg4[%c45] : memref<96xf32, #tpu.memory_space<smem>>
    %505 = vector.broadcast %504 : f32 to vector<32x128xf32>
    %506 = arith.mulf %505, %290 : vector<32x128xf32>
    %507 = arith.addf %503, %506 : vector<32x128xf32>
    %c46 = arith.constant 46 : index
    %508 = memref.load %arg4[%c46] : memref<96xf32, #tpu.memory_space<smem>>
    %509 = vector.broadcast %508 : f32 to vector<32x128xf32>
    %510 = arith.mulf %509, %292 : vector<32x128xf32>
    %511 = arith.addf %507, %510 : vector<32x128xf32>
    %c47 = arith.constant 47 : index
    %512 = memref.load %arg4[%c47] : memref<96xf32, #tpu.memory_space<smem>>
    %513 = vector.broadcast %512 : f32 to vector<32x128xf32>
    %514 = arith.mulf %513, %294 : vector<32x128xf32>
    %515 = arith.addf %511, %514 : vector<32x128xf32>
    %c0_235 = arith.constant 0 : index
    %c0_236 = arith.constant 0 : index
    %516 = vector.load %arg10[%c0_235, %c0_236] : memref<128x128xf32, #tpu.memory_space<vmem>>, vector<32x128xf32>
    tpu.vector_store %arg10[%c0_235, %c0_236], %515 {strides = array<i32>} : memref<128x128xf32, #tpu.memory_space<vmem>>, vector<32x128xf32>,
    %c0_237 = arith.constant 0 : index
    %c0_238 = arith.constant 0 : index
    %517 = tpu.strided_load %arg10[%c0_237, %c0_238] {strides = array<i32: 2, 1>} : memref<128x128xf32, #tpu.memory_space<vmem>>, vector<16x128xf32>
    %c1_239 = arith.constant 1 : index
    %c0_240 = arith.constant 0 : index
    %518 = tpu.strided_load %arg10[%c1_239, %c0_240] {strides = array<i32: 2, 1>} : memref<128x128xf32, #tpu.memory_space<vmem>>, vector<16x128xf32>
    %519 = arith.maximumf %517, %518 : vector<16x128xf32>
    %cst_241 = arith.constant 2.000000e+01 : f32
    %520 = vector.broadcast %cst_241 : f32 to vector<16x128xf32>
    %521 = arith.cmpf ogt, %519, %520 : vector<16x128xf32>
    %cst_242 = arith.constant 2.000000e+01 : f32
    %522 = vector.broadcast %cst_242 : f32 to vector<16x128xf32>
    %523 = arith.minimumf %519, %522 : vector<16x128xf32>
    %524 = math.exp %523 : vector<16x128xf32>
    %525 = math.log1p %524 : vector<16x128xf32>
    %526 = arith.select %521, %519, %525 : vector<16x128xi1>, vector<16x128xf32>
    %c48 = arith.constant 48 : index
    %527 = memref.load %arg4[%c48] : memref<96xf32, #tpu.memory_space<smem>>
    %528 = vector.broadcast %527 : f32 to vector<32x128xf32>
    %529 = arith.mulf %528, %272 : vector<32x128xf32>
    %c49 = arith.constant 49 : index
    %530 = memref.load %arg4[%c49] : memref<96xf32, #tpu.memory_space<smem>>
    %531 = vector.broadcast %530 : f32 to vector<32x128xf32>
    %532 = arith.mulf %531, %274 : vector<32x128xf32>
    %533 = arith.addf %529, %532 : vector<32x128xf32>
    %c50 = arith.constant 50 : index
    %534 = memref.load %arg4[%c50] : memref<96xf32, #tpu.memory_space<smem>>
    %535 = vector.broadcast %534 : f32 to vector<32x128xf32>
    %536 = arith.mulf %535, %276 : vector<32x128xf32>
    %537 = arith.addf %533, %536 : vector<32x128xf32>
    %c51 = arith.constant 51 : index
    %538 = memref.load %arg4[%c51] : memref<96xf32, #tpu.memory_space<smem>>
    %539 = vector.broadcast %538 : f32 to vector<32x128xf32>
    %540 = arith.mulf %539, %278 : vector<32x128xf32>
    %541 = arith.addf %537, %540 : vector<32x128xf32>
    %c52 = arith.constant 52 : index
    %542 = memref.load %arg4[%c52] : memref<96xf32, #tpu.memory_space<smem>>
    %543 = vector.broadcast %542 : f32 to vector<32x128xf32>
    %544 = arith.mulf %543, %280 : vector<32x128xf32>
    %545 = arith.addf %541, %544 : vector<32x128xf32>
    %c53 = arith.constant 53 : index
    %546 = memref.load %arg4[%c53] : memref<96xf32, #tpu.memory_space<smem>>
    %547 = vector.broadcast %546 : f32 to vector<32x128xf32>
    %548 = arith.mulf %547, %282 : vector<32x128xf32>
    %549 = arith.addf %545, %548 : vector<32x128xf32>
    %c54 = arith.constant 54 : index
    %550 = memref.load %arg4[%c54] : memref<96xf32, #tpu.memory_space<smem>>
    %551 = vector.broadcast %550 : f32 to vector<32x128xf32>
    %552 = arith.mulf %551, %284 : vector<32x128xf32>
    %553 = arith.addf %549, %552 : vector<32x128xf32>
    %c55 = arith.constant 55 : index
    %554 = memref.load %arg4[%c55] : memref<96xf32, #tpu.memory_space<smem>>
    %555 = vector.broadcast %554 : f32 to vector<32x128xf32>
    %556 = arith.mulf %555, %286 : vector<32x128xf32>
    %557 = arith.addf %553, %556 : vector<32x128xf32>
    %c56 = arith.constant 56 : index
    %558 = memref.load %arg4[%c56] : memref<96xf32, #tpu.memory_space<smem>>
    %559 = vector.broadcast %558 : f32 to vector<32x128xf32>
    %560 = arith.mulf %559, %288 : vector<32x128xf32>
    %561 = arith.addf %557, %560 : vector<32x128xf32>
    %c57 = arith.constant 57 : index
    %562 = memref.load %arg4[%c57] : memref<96xf32, #tpu.memory_space<smem>>
    %563 = vector.broadcast %562 : f32 to vector<32x128xf32>
    %564 = arith.mulf %563, %290 : vector<32x128xf32>
    %565 = arith.addf %561, %564 : vector<32x128xf32>
    %c58 = arith.constant 58 : index
    %566 = memref.load %arg4[%c58] : memref<96xf32, #tpu.memory_space<smem>>
    %567 = vector.broadcast %566 : f32 to vector<32x128xf32>
    %568 = arith.mulf %567, %292 : vector<32x128xf32>
    %569 = arith.addf %565, %568 : vector<32x128xf32>
    %c59 = arith.constant 59 : index
    %570 = memref.load %arg4[%c59] : memref<96xf32, #tpu.memory_space<smem>>
    %571 = vector.broadcast %570 : f32 to vector<32x128xf32>
    %572 = arith.mulf %571, %294 : vector<32x128xf32>
    %573 = arith.addf %569, %572 : vector<32x128xf32>
    %c0_243 = arith.constant 0 : index
    %c0_244 = arith.constant 0 : index
    %574 = vector.load %arg9[%c0_243, %c0_244] : memref<128x128xf32, #tpu.memory_space<vmem>>, vector<32x128xf32>
    tpu.vector_store %arg9[%c0_243, %c0_244], %573 {strides = array<i32>} : memref<128x128xf32, #tpu.memory_space<vmem>>, vector<32x128xf32>,
    %c0_245 = arith.constant 0 : index
    %c0_246 = arith.constant 0 : index
    %575 = tpu.strided_load %arg9[%c0_245, %c0_246] {strides = array<i32: 2, 1>} : memref<128x128xf32, #tpu.memory_space<vmem>>, vector<16x128xf32>
    %c1_247 = arith.constant 1 : index
    %c0_248 = arith.constant 0 : index
    %576 = tpu.strided_load %arg9[%c1_247, %c0_248] {strides = array<i32: 2, 1>} : memref<128x128xf32, #tpu.memory_space<vmem>>, vector<16x128xf32>
    %577 = arith.maximumf %575, %576 : vector<16x128xf32>
    %cst_249 = arith.constant 2.000000e+01 : f32
    %578 = vector.broadcast %cst_249 : f32 to vector<16x128xf32>
    %579 = arith.cmpf ogt, %577, %578 : vector<16x128xf32>
    %cst_250 = arith.constant 2.000000e+01 : f32
    %580 = vector.broadcast %cst_250 : f32 to vector<16x128xf32>
    %581 = arith.minimumf %577, %580 : vector<16x128xf32>
    %582 = math.exp %581 : vector<16x128xf32>
    %583 = math.log1p %582 : vector<16x128xf32>
    %584 = arith.select %579, %577, %583 : vector<16x128xi1>, vector<16x128xf32>
    %c60 = arith.constant 60 : index
    %585 = memref.load %arg4[%c60] : memref<96xf32, #tpu.memory_space<smem>>
    %586 = vector.broadcast %585 : f32 to vector<32x128xf32>
    %587 = arith.mulf %586, %272 : vector<32x128xf32>
    %c61 = arith.constant 61 : index
    %588 = memref.load %arg4[%c61] : memref<96xf32, #tpu.memory_space<smem>>
    %589 = vector.broadcast %588 : f32 to vector<32x128xf32>
    %590 = arith.mulf %589, %274 : vector<32x128xf32>
    %591 = arith.addf %587, %590 : vector<32x128xf32>
    %c62 = arith.constant 62 : index
    %592 = memref.load %arg4[%c62] : memref<96xf32, #tpu.memory_space<smem>>
    %593 = vector.broadcast %592 : f32 to vector<32x128xf32>
    %594 = arith.mulf %593, %276 : vector<32x128xf32>
    %595 = arith.addf %591, %594 : vector<32x128xf32>
    %c63 = arith.constant 63 : index
    %596 = memref.load %arg4[%c63] : memref<96xf32, #tpu.memory_space<smem>>
    %597 = vector.broadcast %596 : f32 to vector<32x128xf32>
    %598 = arith.mulf %597, %278 : vector<32x128xf32>
    %599 = arith.addf %595, %598 : vector<32x128xf32>
    %c64 = arith.constant 64 : index
    %600 = memref.load %arg4[%c64] : memref<96xf32, #tpu.memory_space<smem>>
    %601 = vector.broadcast %600 : f32 to vector<32x128xf32>
    %602 = arith.mulf %601, %280 : vector<32x128xf32>
    %603 = arith.addf %599, %602 : vector<32x128xf32>
    %c65_251 = arith.constant 65 : index
    %604 = memref.load %arg4[%c65_251] : memref<96xf32, #tpu.memory_space<smem>>
    %605 = vector.broadcast %604 : f32 to vector<32x128xf32>
    %606 = arith.mulf %605, %282 : vector<32x128xf32>
    %607 = arith.addf %603, %606 : vector<32x128xf32>
    %c66 = arith.constant 66 : index
    %608 = memref.load %arg4[%c66] : memref<96xf32, #tpu.memory_space<smem>>
    %609 = vector.broadcast %608 : f32 to vector<32x128xf32>
    %610 = arith.mulf %609, %284 : vector<32x128xf32>
    %611 = arith.addf %607, %610 : vector<32x128xf32>
    %c67 = arith.constant 67 : index
    %612 = memref.load %arg4[%c67] : memref<96xf32, #tpu.memory_space<smem>>
    %613 = vector.broadcast %612 : f32 to vector<32x128xf32>
    %614 = arith.mulf %613, %286 : vector<32x128xf32>
    %615 = arith.addf %611, %614 : vector<32x128xf32>
    %c68 = arith.constant 68 : index
    %616 = memref.load %arg4[%c68] : memref<96xf32, #tpu.memory_space<smem>>
    %617 = vector.broadcast %616 : f32 to vector<32x128xf32>
    %618 = arith.mulf %617, %288 : vector<32x128xf32>
    %619 = arith.addf %615, %618 : vector<32x128xf32>
    %c69 = arith.constant 69 : index
    %620 = memref.load %arg4[%c69] : memref<96xf32, #tpu.memory_space<smem>>
    %621 = vector.broadcast %620 : f32 to vector<32x128xf32>
    %622 = arith.mulf %621, %290 : vector<32x128xf32>
    %623 = arith.addf %619, %622 : vector<32x128xf32>
    %c70 = arith.constant 70 : index
    %624 = memref.load %arg4[%c70] : memref<96xf32, #tpu.memory_space<smem>>
    %625 = vector.broadcast %624 : f32 to vector<32x128xf32>
    %626 = arith.mulf %625, %292 : vector<32x128xf32>
    %627 = arith.addf %623, %626 : vector<32x128xf32>
    %c71 = arith.constant 71 : index
    %628 = memref.load %arg4[%c71] : memref<96xf32, #tpu.memory_space<smem>>
    %629 = vector.broadcast %628 : f32 to vector<32x128xf32>
    %630 = arith.mulf %629, %294 : vector<32x128xf32>
    %631 = arith.addf %627, %630 : vector<32x128xf32>
    %c0_252 = arith.constant 0 : index
    %c0_253 = arith.constant 0 : index
    %632 = vector.load %arg10[%c0_252, %c0_253] : memref<128x128xf32, #tpu.memory_space<vmem>>, vector<32x128xf32>
    tpu.vector_store %arg10[%c0_252, %c0_253], %631 {strides = array<i32>} : memref<128x128xf32, #tpu.memory_space<vmem>>, vector<32x128xf32>,
    %c0_254 = arith.constant 0 : index
    %c0_255 = arith.constant 0 : index
    %633 = tpu.strided_load %arg10[%c0_254, %c0_255] {strides = array<i32: 2, 1>} : memref<128x128xf32, #tpu.memory_space<vmem>>, vector<16x128xf32>
    %c1_256 = arith.constant 1 : index
    %c0_257 = arith.constant 0 : index
    %634 = tpu.strided_load %arg10[%c1_256, %c0_257] {strides = array<i32: 2, 1>} : memref<128x128xf32, #tpu.memory_space<vmem>>, vector<16x128xf32>
    %635 = arith.maximumf %633, %634 : vector<16x128xf32>
    %cst_258 = arith.constant 2.000000e+01 : f32
    %636 = vector.broadcast %cst_258 : f32 to vector<16x128xf32>
    %637 = arith.cmpf ogt, %635, %636 : vector<16x128xf32>
    %cst_259 = arith.constant 2.000000e+01 : f32
    %638 = vector.broadcast %cst_259 : f32 to vector<16x128xf32>
    %639 = arith.minimumf %635, %638 : vector<16x128xf32>
    %640 = math.exp %639 : vector<16x128xf32>
    %641 = math.log1p %640 : vector<16x128xf32>
    %642 = arith.select %637, %635, %641 : vector<16x128xi1>, vector<16x128xf32>
    %c72 = arith.constant 72 : index
    %643 = memref.load %arg4[%c72] : memref<96xf32, #tpu.memory_space<smem>>
    %644 = vector.broadcast %643 : f32 to vector<32x128xf32>
    %645 = arith.mulf %644, %272 : vector<32x128xf32>
    %c73 = arith.constant 73 : index
    %646 = memref.load %arg4[%c73] : memref<96xf32, #tpu.memory_space<smem>>
    %647 = vector.broadcast %646 : f32 to vector<32x128xf32>
    %648 = arith.mulf %647, %274 : vector<32x128xf32>
    %649 = arith.addf %645, %648 : vector<32x128xf32>
    %c74 = arith.constant 74 : index
    %650 = memref.load %arg4[%c74] : memref<96xf32, #tpu.memory_space<smem>>
    %651 = vector.broadcast %650 : f32 to vector<32x128xf32>
    %652 = arith.mulf %651, %276 : vector<32x128xf32>
    %653 = arith.addf %649, %652 : vector<32x128xf32>
    %c75 = arith.constant 75 : index
    %654 = memref.load %arg4[%c75] : memref<96xf32, #tpu.memory_space<smem>>
    %655 = vector.broadcast %654 : f32 to vector<32x128xf32>
    %656 = arith.mulf %655, %278 : vector<32x128xf32>
    %657 = arith.addf %653, %656 : vector<32x128xf32>
    %c76 = arith.constant 76 : index
    %658 = memref.load %arg4[%c76] : memref<96xf32, #tpu.memory_space<smem>>
    %659 = vector.broadcast %658 : f32 to vector<32x128xf32>
    %660 = arith.mulf %659, %280 : vector<32x128xf32>
    %661 = arith.addf %657, %660 : vector<32x128xf32>
    %c77 = arith.constant 77 : index
    %662 = memref.load %arg4[%c77] : memref<96xf32, #tpu.memory_space<smem>>
    %663 = vector.broadcast %662 : f32 to vector<32x128xf32>
    %664 = arith.mulf %663, %282 : vector<32x128xf32>
    %665 = arith.addf %661, %664 : vector<32x128xf32>
    %c78 = arith.constant 78 : index
    %666 = memref.load %arg4[%c78] : memref<96xf32, #tpu.memory_space<smem>>
    %667 = vector.broadcast %666 : f32 to vector<32x128xf32>
    %668 = arith.mulf %667, %284 : vector<32x128xf32>
    %669 = arith.addf %665, %668 : vector<32x128xf32>
    %c79 = arith.constant 79 : index
    %670 = memref.load %arg4[%c79] : memref<96xf32, #tpu.memory_space<smem>>
    %671 = vector.broadcast %670 : f32 to vector<32x128xf32>
    %672 = arith.mulf %671, %286 : vector<32x128xf32>
    %673 = arith.addf %669, %672 : vector<32x128xf32>
    %c80 = arith.constant 80 : index
    %674 = memref.load %arg4[%c80] : memref<96xf32, #tpu.memory_space<smem>>
    %675 = vector.broadcast %674 : f32 to vector<32x128xf32>
    %676 = arith.mulf %675, %288 : vector<32x128xf32>
    %677 = arith.addf %673, %676 : vector<32x128xf32>
    %c81 = arith.constant 81 : index
    %678 = memref.load %arg4[%c81] : memref<96xf32, #tpu.memory_space<smem>>
    %679 = vector.broadcast %678 : f32 to vector<32x128xf32>
    %680 = arith.mulf %679, %290 : vector<32x128xf32>
    %681 = arith.addf %677, %680 : vector<32x128xf32>
    %c82 = arith.constant 82 : index
    %682 = memref.load %arg4[%c82] : memref<96xf32, #tpu.memory_space<smem>>
    %683 = vector.broadcast %682 : f32 to vector<32x128xf32>
    %684 = arith.mulf %683, %292 : vector<32x128xf32>
    %685 = arith.addf %681, %684 : vector<32x128xf32>
    %c83 = arith.constant 83 : index
    %686 = memref.load %arg4[%c83] : memref<96xf32, #tpu.memory_space<smem>>
    %687 = vector.broadcast %686 : f32 to vector<32x128xf32>
    %688 = arith.mulf %687, %294 : vector<32x128xf32>
    %689 = arith.addf %685, %688 : vector<32x128xf32>
    %c0_260 = arith.constant 0 : index
    %c0_261 = arith.constant 0 : index
    %690 = vector.load %arg9[%c0_260, %c0_261] : memref<128x128xf32, #tpu.memory_space<vmem>>, vector<32x128xf32>
    tpu.vector_store %arg9[%c0_260, %c0_261], %689 {strides = array<i32>} : memref<128x128xf32, #tpu.memory_space<vmem>>, vector<32x128xf32>,
    %c0_262 = arith.constant 0 : index
    %c0_263 = arith.constant 0 : index
    %691 = tpu.strided_load %arg9[%c0_262, %c0_263] {strides = array<i32: 2, 1>} : memref<128x128xf32, #tpu.memory_space<vmem>>, vector<16x128xf32>
    %c1_264 = arith.constant 1 : index
    %c0_265 = arith.constant 0 : index
    %692 = tpu.strided_load %arg9[%c1_264, %c0_265] {strides = array<i32: 2, 1>} : memref<128x128xf32, #tpu.memory_space<vmem>>, vector<16x128xf32>
    %693 = arith.maximumf %691, %692 : vector<16x128xf32>
    %cst_266 = arith.constant 2.000000e+01 : f32
    %694 = vector.broadcast %cst_266 : f32 to vector<16x128xf32>
    %695 = arith.cmpf ogt, %693, %694 : vector<16x128xf32>
    %cst_267 = arith.constant 2.000000e+01 : f32
    %696 = vector.broadcast %cst_267 : f32 to vector<16x128xf32>
    %697 = arith.minimumf %693, %696 : vector<16x128xf32>
    %698 = math.exp %697 : vector<16x128xf32>
    %699 = math.log1p %698 : vector<16x128xf32>
    %700 = arith.select %695, %693, %699 : vector<16x128xi1>, vector<16x128xf32>
    %c84 = arith.constant 84 : index
    %701 = memref.load %arg4[%c84] : memref<96xf32, #tpu.memory_space<smem>>
    %702 = vector.broadcast %701 : f32 to vector<32x128xf32>
    %703 = arith.mulf %702, %272 : vector<32x128xf32>
    %c85 = arith.constant 85 : index
    %704 = memref.load %arg4[%c85] : memref<96xf32, #tpu.memory_space<smem>>
    %705 = vector.broadcast %704 : f32 to vector<32x128xf32>
    %706 = arith.mulf %705, %274 : vector<32x128xf32>
    %707 = arith.addf %703, %706 : vector<32x128xf32>
    %c86 = arith.constant 86 : index
    %708 = memref.load %arg4[%c86] : memref<96xf32, #tpu.memory_space<smem>>
    %709 = vector.broadcast %708 : f32 to vector<32x128xf32>
    %710 = arith.mulf %709, %276 : vector<32x128xf32>
    %711 = arith.addf %707, %710 : vector<32x128xf32>
    %c87 = arith.constant 87 : index
    %712 = memref.load %arg4[%c87] : memref<96xf32, #tpu.memory_space<smem>>
    %713 = vector.broadcast %712 : f32 to vector<32x128xf32>
    %714 = arith.mulf %713, %278 : vector<32x128xf32>
    %715 = arith.addf %711, %714 : vector<32x128xf32>
    %c88 = arith.constant 88 : index
    %716 = memref.load %arg4[%c88] : memref<96xf32, #tpu.memory_space<smem>>
    %717 = vector.broadcast %716 : f32 to vector<32x128xf32>
    %718 = arith.mulf %717, %280 : vector<32x128xf32>
    %719 = arith.addf %715, %718 : vector<32x128xf32>
    %c89 = arith.constant 89 : index
    %720 = memref.load %arg4[%c89] : memref<96xf32, #tpu.memory_space<smem>>
    %721 = vector.broadcast %720 : f32 to vector<32x128xf32>
    %722 = arith.mulf %721, %282 : vector<32x128xf32>
    %723 = arith.addf %719, %722 : vector<32x128xf32>
    %c90 = arith.constant 90 : index
    %724 = memref.load %arg4[%c90] : memref<96xf32, #tpu.memory_space<smem>>
    %725 = vector.broadcast %724 : f32 to vector<32x128xf32>
    %726 = arith.mulf %725, %284 : vector<32x128xf32>
    %727 = arith.addf %723, %726 : vector<32x128xf32>
    %c91 = arith.constant 91 : index
    %728 = memref.load %arg4[%c91] : memref<96xf32, #tpu.memory_space<smem>>
    %729 = vector.broadcast %728 : f32 to vector<32x128xf32>
    %730 = arith.mulf %729, %286 : vector<32x128xf32>
    %731 = arith.addf %727, %730 : vector<32x128xf32>
    %c92 = arith.constant 92 : index
    %732 = memref.load %arg4[%c92] : memref<96xf32, #tpu.memory_space<smem>>
    %733 = vector.broadcast %732 : f32 to vector<32x128xf32>
    %734 = arith.mulf %733, %288 : vector<32x128xf32>
    %735 = arith.addf %731, %734 : vector<32x128xf32>
    %c93 = arith.constant 93 : index
    %736 = memref.load %arg4[%c93] : memref<96xf32, #tpu.memory_space<smem>>
    %737 = vector.broadcast %736 : f32 to vector<32x128xf32>
    %738 = arith.mulf %737, %290 : vector<32x128xf32>
    %739 = arith.addf %735, %738 : vector<32x128xf32>
    %c94 = arith.constant 94 : index
    %740 = memref.load %arg4[%c94] : memref<96xf32, #tpu.memory_space<smem>>
    %741 = vector.broadcast %740 : f32 to vector<32x128xf32>
    %742 = arith.mulf %741, %292 : vector<32x128xf32>
    %743 = arith.addf %739, %742 : vector<32x128xf32>
    %c95 = arith.constant 95 : index
    %744 = memref.load %arg4[%c95] : memref<96xf32, #tpu.memory_space<smem>>
    %745 = vector.broadcast %744 : f32 to vector<32x128xf32>
    %746 = arith.mulf %745, %294 : vector<32x128xf32>
    %747 = arith.addf %743, %746 : vector<32x128xf32>
    %c0_268 = arith.constant 0 : index
    %c0_269 = arith.constant 0 : index
    %748 = vector.load %arg10[%c0_268, %c0_269] : memref<128x128xf32, #tpu.memory_space<vmem>>, vector<32x128xf32>
    tpu.vector_store %arg10[%c0_268, %c0_269], %747 {strides = array<i32>} : memref<128x128xf32, #tpu.memory_space<vmem>>, vector<32x128xf32>,
    %c0_270 = arith.constant 0 : index
    %c0_271 = arith.constant 0 : index
    %749 = tpu.strided_load %arg10[%c0_270, %c0_271] {strides = array<i32: 2, 1>} : memref<128x128xf32, #tpu.memory_space<vmem>>, vector<16x128xf32>
    %c1_272 = arith.constant 1 : index
    %c0_273 = arith.constant 0 : index
    %750 = tpu.strided_load %arg10[%c1_272, %c0_273] {strides = array<i32: 2, 1>} : memref<128x128xf32, #tpu.memory_space<vmem>>, vector<16x128xf32>
    %751 = arith.maximumf %749, %750 : vector<16x128xf32>
    %cst_274 = arith.constant 2.000000e+01 : f32
    %752 = vector.broadcast %cst_274 : f32 to vector<16x128xf32>
    %753 = arith.cmpf ogt, %751, %752 : vector<16x128xf32>
    %cst_275 = arith.constant 2.000000e+01 : f32
    %754 = vector.broadcast %cst_275 : f32 to vector<16x128xf32>
    %755 = arith.minimumf %751, %754 : vector<16x128xf32>
    %756 = math.exp %755 : vector<16x128xf32>
    %757 = math.log1p %756 : vector<16x128xf32>
    %758 = arith.select %753, %751, %757 : vector<16x128xi1>, vector<16x128xf32>
    %759 = tpu.concatenate %352, %410, %468, %526, %584, %642, %700, %758 in 0 : vector<16x128xf32>, vector<16x128xf32>, vector<16x128xf32>, vector<16x128xf32>, vector<16x128xf32>, vector<16x128xf32>, vector<16x128xf32>, vector<16x128xf32> -> vector<128x128xf32>
    %760 = tpu.transpose %759, [1, 0] : vector<128x128xf32> -> vector<128x128xf32>
    %c0_276 = arith.constant 0 : index
    %c0_277 = arith.constant 0 : index
    %c0_278 = arith.constant 0 : index
    %761 = vector.load %arg5[%c0_276, %c0_277, %c0_278] : memref<1x128x128xf32, #tpu.memory_space<vmem>>, vector<1x128x128xf32>
    %762 = vector.shape_cast %761 : vector<1x128x128xf32> to vector<128x128xf32>
    %763 = vector.shape_cast %760 : vector<128x128xf32> to vector<1x128x128xf32>
    tpu.vector_store %arg5[%c0_276, %c0_277, %c0_278], %763 {strides = array<i32>} : memref<1x128x128xf32, #tpu.memory_space<vmem>>, vector<1x128x128xf32>,
    return
  }
  func.func @transform_0(%arg0: i32) -> (i32, i32, i32) {
    %c0_i32 = arith.constant 0 : i32
    %c0_i32_0 = arith.constant 0 : i32
    %c0_i32_1 = arith.constant 0 : i32
    return %arg0, %c0_i32, %c0_i32_0 : i32, i32, i32
  }
  func.func @transform_1(%arg0: i32) -> i32 {
    %c0_i32 = arith.constant 0 : i32
    %c0_i32_0 = arith.constant 0 : i32
    return %c0_i32 : i32
  }
  func.func @transform_2(%arg0: i32) -> i32 {
    %c0_i32 = arith.constant 0 : i32
    %c0_i32_0 = arith.constant 0 : i32
    return %c0_i32 : i32
  }
  func.func @transform_3(%arg0: i32) -> i32 {
    %c0_i32 = arith.constant 0 : i32
    %c0_i32_0 = arith.constant 0 : i32
    return %c0_i32 : i32
  }
  func.func @transform_4(%arg0: i32) -> (i32, i32, i32) {
    %c0_i32 = arith.constant 0 : i32
    %c0_i32_0 = arith.constant 0 : i32
    %c0_i32_1 = arith.constant 0 : i32
    return %arg0, %c0_i32, %c0_i32_0 : i32, i32, i32
  }
}

</mosaic_0001>

<llo_original>
// kernel: tpu_custom_call.1
$region0: #{tpu_custom_call.1}
  #allocation0 [shape = 'u32[]', space=smem, size = 0x4, offset = 0x4, fixed_abs, tag = 'smem constant byte address 0x4 - core index']
  #allocation1 [shape = 'u32[144,128]{1,0:T(1,128)}', space=vmem, size = 0x12000, scoped, tag = 'internal scratch']
  #allocation2 [shape = 'f32[1,130,128]{2,1,0:T(8,128)}', space=vmem, size = 0x11000, scoped, tag = 'scratch operand']
  #allocation3 [shape = 'f32[2,66,128]{2,1,0:T(8,128)}', space=vmem, size = 0x12000, scoped, tag = 'scratch operand']
  #allocation4 [shape = 'f32[4,34,128]{2,1,0:T(8,128)}', space=vmem, size = 0x14000, scoped, tag = 'scratch operand']
  #allocation5 [shape = 'f32[128,128]{1,0:T(8,128)}', space=vmem, size = 0x10000, scoped, tag = 'scratch operand']
  #allocation6 [shape = 'f32[128,128]{1,0:T(8,128)}', space=vmem, size = 0x10000, scoped, tag = 'scratch operand']
  %s0 = inlined_call_operand.hbm [shape: f32[2,128,128], index: 0, kind: input, shape index: {}]
  %s1 = inlined_call_operand.vmem [shape: f32[6], index: 1, kind: input, shape index: {}]
  %s2 = inlined_call_operand.vmem [shape: f32[24], index: 2, kind: input, shape index: {}]
  %s3 = inlined_call_operand.vmem [shape: f32[96], index: 3, kind: input, shape index: {}]
  %s4 = inlined_call_operand.hbm [shape: f32[2,128,128], index: 4, kind: output, shape index: {}]
  %s5 = sld [smem:[#allocation0]]
  $region65: #{tpu_custom_call.1} parent=0
    _
  %s7 = ssub.s32 1, %s5
  %s8 = scalar_select 0, %s7, %s5
  $region1: #{tpu_custom_call.1} parent=0
    #allocation7 [shape = 'u8[131072]{0}', space=vmem, size = 0x20000, scoped, tag = 'input window, operand 0']
    #allocation8 [shape = 's32[2]{0}', space=sflag, size = 0x8, scoped, tag = 'scoped memory for tpu_custom_call.1']
    #allocation9 [shape = 's32[2]{0}', space=sflag, size = 0x8, scoped, tag = 'scoped memory for tpu_custom_call.1']
    #allocation10 [shape = 's32[2]{0}', space=sflag, size = 0x8, scoped, tag = 'scoped memory for tpu_custom_call.1']
    #allocation11 [shape = 'u8[512]{0}', space=smem, size = 0x200, scoped, tag = 'input window, operand 1, single buffered']
    #allocation12 [shape = 'u8[512]{0}', space=smem, size = 0x200, scoped, tag = 'input window, operand 2, single buffered']
    #allocation13 [shape = 's32[1]{0}', space=sflag, size = 0x4, scoped, tag = 'scoped memory for tpu_custom_call.1']
    #allocation14 [shape = 'u8[512]{0}', space=smem, size = 0x200, scoped, tag = 'input window, operand 3, single buffered']
    #allocation15 [shape = 'u8[131072]{0}', space=vmem, size = 0x20000, scoped, tag = 'output window, operand 0']
    %9 = vsyncpa [#allocation8], 0
    %s10 = scalar_lea.sflag [#allocation8], 1
    %11 = vsyncpa %s10, 0
    %12 = vsyncpa [#allocation10], 0
    %13 = vsyncpa [#allocation13], 0
    %14 = vsyncpa [#allocation9], 0
    %s15 = scalar_lea.sflag [#allocation9], 1
    %16 = vsyncpa %s15, 0
    loop: start=0, step=1, limit=4
    $region2: #{tpu_custom_call.1} parent=1 // loop_pre_header
      _
    $region3: #{tpu_custom_call.1} parent=1 // loop_header
      %s18 = sphi 0, %s22
      %p19 = scmp.ge.s32.totalorder %s18, 4
      %s28 = sphi 0, %s30
      %s31 = sphi 0, %s28
      %s32 = sphi 0, %s31
      %s48 = sphi 0, %s32
      %s52 = sphi 0, %s52
      %s54 = sphi 0, %s52
      %s55 = sphi 0, %s54
      %s69 = sphi 0, %s55
      %s73 = sphi 0, %s73
      %s75 = sphi 0, %s73
      %s76 = sphi 0, %s75
      %s90 = sphi 0, %s76
      %s94 = sphi 0, %s94
      %s96 = sphi 0, %s94
      %s97 = sphi 0, %s96
      %s111 = sphi 0, %s97
      %s117 = sphi 0, %s119
      %s120 = sphi 0, %s117
      %s121 = sphi 0, %s120
      %s137 = sphi 0, %s121
    $region4: #{tpu_custom_call.1} parent=1 // loop_header_branch
      %21 = sbr.rel (%p19) target = $region8
    $region5: #{tpu_custom_call.1} parent=1 // loop_body
      %s23 = ssub.s32 %s18, 1
      %s24 = ssub.s32 %s18, 2
      %s25 = sadd.s32 %s18, 1
      %s26 = ssub.s32 %s18, %s25
      %p27 = scmp.eq.s32.totalorder %s26, 0
      %s29 = sadd.s32 %s28, 1
      %s30 = scalar_select %p27, %s28, %s29
      %p33 = pneg %p27
      %p34 = scmp.eq.s32.totalorder %s18, 1
      %p35 = por %p33, %p34
      %p36 = scmp.ne.s32.totalorder %s28, %s31
      %p37 = scmp.eq.s32.totalorder %s18, 0
      %p38 = por %p36, %p37
      %p39 = scmp.ne.s32.totalorder %s28, %s31
      %p40 = scmp.eq.s32.totalorder %s23, 1
      %p41 = por %p39, %p40
      %p42 = scmp.ne.s32.totalorder %s31, %s32
      %p43 = scmp.eq.s32.totalorder %s23, 0
      %p44 = por %p42, %p43
      %p45 = scmp.ne.s32.totalorder %s31, %s32
      %p46 = scmp.eq.s32.totalorder %s24, 1
      %p47 = por %p45, %p46
      %p49 = scmp.ne.s32.totalorder %s32, %s48
      %p50 = scmp.eq.s32.totalorder %s24, 0
      %p51 = por %p49, %p50
      %s53 = sadd.s32 %s52, 1
      %p56 = scmp.eq.s32.totalorder %s18, 1
      %p57 = scmp.ne.s32.totalorder %s52, %s54
      %p58 = scmp.eq.s32.totalorder %s18, 0
      %p59 = por %p57, %p58
      %p60 = scmp.ne.s32.totalorder %s52, %s54
      %p61 = scmp.eq.s32.totalorder %s23, 1
      %p62 = por %p60, %p61
      %p63 = scmp.ne.s32.totalorder %s54, %s55
      %p64 = scmp.eq.s32.totalorder %s23, 0
      %p65 = por %p63, %p64
      %p66 = scmp.ne.s32.totalorder %s54, %s55
      %p67 = scmp.eq.s32.totalorder %s24, 1
      %p68 = por %p66, %p67
      %p70 = scmp.ne.s32.totalorder %s55, %s69
      %p71 = scmp.eq.s32.totalorder %s24, 0
      %p72 = por %p70, %p71
      %s74 = sadd.s32 %s73, 1
      %p77 = scmp.eq.s32.totalorder %s18, 1
      %p78 = scmp.ne.s32.totalorder %s73, %s75
      %p79 = scmp.eq.s32.totalorder %s18, 0
      %p80 = por %p78, %p79
      %p81 = scmp.ne.s32.totalorder %s73, %s75
      %p82 = scmp.eq.s32.totalorder %s23, 1
      %p83 = por %p81, %p82
      %p84 = scmp.ne.s32.totalorder %s75, %s76
      %p85 = scmp.eq.s32.totalorder %s23, 0
      %p86 = por %p84, %p85
      %p87 = scmp.ne.s32.totalorder %s75, %s76
      %p88 = scmp.eq.s32.totalorder %s24, 1
      %p89 = por %p87, %p88
      %p91 = scmp.ne.s32.totalorder %s76, %s90
      %p92 = scmp.eq.s32.totalorder %s24, 0
      %p93 = por %p91, %p92
      %s95 = sadd.s32 %s94, 1
      %p98 = scmp.eq.s32.totalorder %s18, 1
      %p99 = scmp.ne.s32.totalorder %s94, %s96
      %p100 = scmp.eq.s32.totalorder %s18, 0
      %p101 = por %p99, %p100
      %p102 = scmp.ne.s32.totalorder %s94, %s96
      %p103 = scmp.eq.s32.totalorder %s23, 1
      %p104 = por %p102, %p103
      %p105 = scmp.ne.s32.totalorder %s96, %s97
      %p106 = scmp.eq.s32.totalorder %s23, 0
      %p107 = por %p105, %p106
      %p108 = scmp.ne.s32.totalorder %s96, %s97
      %p109 = scmp.eq.s32.totalorder %s24, 1
      %p110 = por %p108, %p109
      %p112 = scmp.ne.s32.totalorder %s97, %s111
      %p113 = scmp.eq.s32.totalorder %s24, 0
      %p114 = por %p112, %p113
      %s115 = ssub.s32 %s18, %s25
      %p116 = scmp.eq.s32.totalorder %s115, 0
      %s118 = sadd.s32 %s117, 1
      %s119 = scalar_select %p116, %s117, %s118
      %p122 = pneg %p116
      %p123 = scmp.eq.s32.totalorder %s18, 1
      %p124 = por %p122, %p123
      %p125 = scmp.ne.s32.totalorder %s117, %s120
      %p126 = scmp.eq.s32.totalorder %s18, 0
      %p127 = por %p125, %p126
      %p128 = scmp.ne.s32.totalorder %s117, %s120
      %p129 = scmp.eq.s32.totalorder %s23, 1
      %p130 = por %p128, %p129
      %p131 = scmp.ne.s32.totalorder %s120, %s121
      %p132 = scmp.eq.s32.totalorder %s23, 0
      %p133 = por %p131, %p132
      %p134 = scmp.ne.s32.totalorder %s120, %s121
      %p135 = scmp.eq.s32.totalorder %s24, 1
      %p136 = por %p134, %p135
      %p138 = scmp.ne.s32.totalorder %s121, %s137
      %p139 = scmp.eq.s32.totalorder %s24, 0
      %p140 = por %p138, %p139
      %p141 = scmp.le.s32.totalorder 1, %s18
      %p142 = scmp.lt.s32.totalorder %s18, 3
      %p143 = pnand %p141, %p142
      %p144 = pneg %p143
      // Predicated region
      $region9: #{tpu_custom_call.1} parent=5 // pred_check
        _
      $region10: #{tpu_custom_call.1} parent=5 // pred_check_branch
        %146 = sbr.rel (%p143) target = $region12
      $region11: #{tpu_custom_call.1} parent=5 // pred_region
        %s147 = ssub.s32 %s18, 1
        // Predicated region
        $region13: #{tpu_custom_call.1} parent=11 // pred_check
          %p148 = pneg %p65
        $region14: #{tpu_custom_call.1} parent=11 // pred_check_branch
          %150 = sbr.rel (%p148) target = $region16
        $region15: #{tpu_custom_call.1} parent=11 // pred_region
          %s152 = ssub.s32 16, 16
          %153 = vsyncadd [#allocation10], %s152
          %s155 = sshll.u32 %s1, 4
          %s156 = int_to_ptr.vmem [resolvable:$true] %s155
          %158 = dma.vmem_to_smem %s156, 16, [#allocation11], [#allocation10]
        $region16: #{tpu_custom_call.1} parent=11 // pred_fallthru
          _
        // Predicated region
        $region17: #{tpu_custom_call.1} parent=11 // pred_check
          %p159 = pneg %p86
        $region18: #{tpu_custom_call.1} parent=11 // pred_check_branch
          %161 = sbr.rel (%p159) target = $region20
        $region19: #{tpu_custom_call.1} parent=11 // pred_region
          %s163 = ssub.s32 16, 16
          %164 = vsyncadd [#allocation13], %s163
          %s166 = sshll.u32 %s2, 4
          %s167 = int_to_ptr.vmem [resolvable:$true] %s166
          %169 = dma.vmem_to_smem %s167, 16, [#allocation12], [#allocation13]
        $region20: #{tpu_custom_call.1} parent=11 // pred_fallthru
          _
        // Predicated region
        $region21: #{tpu_custom_call.1} parent=11 // pred_check
          %p170 = pneg %p107
        $region22: #{tpu_custom_call.1} parent=11 // pred_check_branch
          %172 = sbr.rel (%p170) target = $region24
        $region23: #{tpu_custom_call.1} parent=11 // pred_region
          %s174 = ssub.s32 16, 16
          %175 = vsyncadd [#allocation13], %s174
          %s177 = sshll.u32 %s3, 4
          %s178 = int_to_ptr.vmem [resolvable:$true] %s177
          %180 = dma.vmem_to_smem %s178, 16, [#allocation14], [#allocation13]
        $region24: #{tpu_custom_call.1} parent=11 // pred_fallthru
          _
      $region12: #{tpu_custom_call.1} parent=5 // pred_fallthru
        _
      %p181 = scmp.lt.s32.totalorder %s18, 2
      // Predicated region
      $region25: #{tpu_custom_call.1} parent=5 // pred_check
        %p182 = pneg %p181
      $region26: #{tpu_custom_call.1} parent=5 // pred_check_branch
        %184 = sbr.rel (%p182) target = $region28
      $region27: #{tpu_custom_call.1} parent=5 // pred_region
        // Predicated region
        $region29: #{tpu_custom_call.1} parent=27 // pred_check
          %p185 = pneg %p38
        $region30: #{tpu_custom_call.1} parent=27 // pred_check_branch
          %187 = sbr.rel (%p185) target = $region32
        $region31: #{tpu_custom_call.1} parent=27 // pred_region
          %s188 = sand.u32 %s28, 1
          %s189 = scalar_lea.sflag [#allocation8], %s188
          %s190 = sand.u32 %s28, 1
          %s191 = smul.addr %s190, 128
          %s192 = scalar_lea.vmem [#allocation7], %s191
          %s194 = ssub.s32 2048, 2048
          %195 = vsyncadd %s189, %s194
          %s196 = smul.addr %s18, 16
          %s197 = smul.addr %s196, 128
          %s198 = scalar_lea.hbm %s0, %s197
          %s199 = sshll.u32 %s192, 4
          %s200 = int_to_ptr.vmem [resolvable:$true] %s199
          %205 = dma.hbm_to_vmem [thread:$0]  %s198, 2048, %s200, %s189, 128, 128, 8
        $region32: #{tpu_custom_call.1} parent=27 // pred_fallthru
          _
      $region28: #{tpu_custom_call.1} parent=5 // pred_fallthru
        _
      %p206 = scmp.le.s32.totalorder 1, %s18
      %p207 = scmp.lt.s32.totalorder %s18, 3
      %p208 = pnand %p206, %p207
      %p209 = pneg %p208
      // Predicated region
      $region33: #{tpu_custom_call.1} parent=5 // pred_check
        _
      $region34: #{tpu_custom_call.1} parent=5 // pred_check_branch
        %211 = sbr.rel (%p208) target = $region36
      $region35: #{tpu_custom_call.1} parent=5 // pred_region
        %s212 = ssub.s32 %s18, 1
        %s213 = sand.u32 %s31, 1
        %s214 = scalar_lea.sflag [#allocation8], %s213
        %s215 = sand.u32 %s31, 1
        %s216 = smul.addr %s215, 128
        %s217 = scalar_lea.vmem [#allocation7], %s216
        // Predicated region
        $region37: #{tpu_custom_call.1} parent=35 // pred_check
          %p218 = pneg %p44
        $region38: #{tpu_custom_call.1} parent=35 // pred_check_branch
          %220 = sbr.rel (%p218) target = $region40
        $region39: #{tpu_custom_call.1} parent=35 // pred_region
          %221 = dma.done %s214, 2048
        $region40: #{tpu_custom_call.1} parent=35 // pred_fallthru
          _
        // Predicated region
        $region41: #{tpu_custom_call.1} parent=35 // pred_check
          %p222 = pneg %p65
        $region42: #{tpu_custom_call.1} parent=35 // pred_check_branch
          %224 = sbr.rel (%p222) target = $region44
        $region43: #{tpu_custom_call.1} parent=35 // pred_region
          %225 = dma.done [#allocation10], 16
        $region44: #{tpu_custom_call.1} parent=35 // pred_fallthru
          _
        // Predicated region
        $region45: #{tpu_custom_call.1} parent=35 // pred_check
          %p226 = pneg %p86
        $region46: #{tpu_custom_call.1} parent=35 // pred_check_branch
          %228 = sbr.rel (%p226) target = $region48
        $region47: #{tpu_custom_call.1} parent=35 // pred_region
          %229 = dma.done [#allocation13], 16
        $region48: #{tpu_custom_call.1} parent=35 // pred_fallthru
          _
        // Predicated region
        $region49: #{tpu_custom_call.1} parent=35 // pred_check
          %p230 = pneg %p107
        $region50: #{tpu_custom_call.1} parent=35 // pred_check_branch
          %232 = sbr.rel (%p230) target = $region52
        $region51: #{tpu_custom_call.1} parent=35 // pred_region
          %233 = dma.done [#allocation13], 16
        $region52: #{tpu_custom_call.1} parent=35 // pred_fallthru
          _
        %234 = sfence
        %s235 = sand.u32 %s31, 1
        %s236 = scalar_lea.sflag [#allocation8], %s235
        %s237 = sand.u32 %s31, 1
        %s238 = smul.addr %s237, 128
        %s239 = scalar_lea.vmem [#allocation7], %s238
        %p240 = pneg %p44
        %p241 = pneg %p41
        %p242 = pneg %p65
        %p243 = pneg %p62
        %p244 = pneg %p86
        %p245 = pneg %p83
        %p246 = pneg %p107
        %p247 = pneg %p104
        %p248 = pneg %p133
        %p249 = pneg %p130
        %s250 = sand.u32 %s120, 1
        %s251 = scalar_lea.sflag [#allocation9], %s250
        %s252 = sand.u32 %s120, 1
        %s253 = smul.addr %s252, 128
        %s254 = scalar_lea.vmem [#allocation15], %s253
        %v255 = vld [vmem:[%s217] sm:$0xff]
        %v256 = vld [vmem:[%s217 + $0x8] sm:$0xff]
        %v257 = vld [vmem:[%s217 + $0x10] sm:$0xff]
        %v258 = vld [vmem:[%s217 + $0x18] sm:$0xff]
        %v259 = vld [vmem:[%s217 + $0x20] sm:$0xff]
        %v260 = vld [vmem:[%s217 + $0x28] sm:$0xff]
        %v261 = vld [vmem:[%s217 + $0x30] sm:$0xff]
        %v262 = vld [vmem:[%s217 + $0x38] sm:$0xff]
        %v263 = vld [vmem:[%s217 + $0x40] sm:$0xff]
        %v264 = vld [vmem:[%s217 + $0x48] sm:$0xff]
        %v265 = vld [vmem:[%s217 + $0x50] sm:$0xff]
        %v266 = vld [vmem:[%s217 + $0x58] sm:$0xff]
        %v267 = vld [vmem:[%s217 + $0x60] sm:$0xff]
        %v268 = vld [vmem:[%s217 + $0x68] sm:$0xff]
        %v269 = vld [vmem:[%s217 + $0x70] sm:$0xff]
        %v270 = vld [vmem:[%s217 + $0x78] sm:$0xff]
        %271 = vxpose.xlu0.b32.start [1/16] %v255, 128
        %272 = vxpose.xlu0.b32.cont [2/16] %v256, 128
        %273 = vxpose.xlu0.b32.cont [3/16] %v257, 128
        %274 = vxpose.xlu0.b32.cont [4/16] %v258, 128
        %275 = vxpose.xlu0.b32.cont [5/16] %v259, 128
        %276 = vxpose.xlu0.b32.cont [6/16] %v260, 128
        %277 = vxpose.xlu0.b32.cont [7/16] %v261, 128
        %278 = vxpose.xlu0.b32.cont [8/16] %v262, 128
        %279 = vxpose.xlu0.b32.cont [9/16] %v263, 128
        %280 = vxpose.xlu0.b32.cont [10/16] %v264, 128
        %281 = vxpose.xlu0.b32.cont [11/16] %v265, 128
        %282 = vxpose.xlu0.b32.cont [12/16] %v266, 128
        %283 = vxpose.xlu0.b32.cont [13/16] %v267, 128
        %284 = vxpose.xlu0.b32.cont [14/16] %v268, 128
        %285 = vxpose.xlu0.b32.cont [15/16] %v269, 128
        %286 = vxpose.xlu0.b32.end [16/16] %v270, 128
        %v287 = vpop.trf.xlu0
        %v288 = vpop.trf.xlu0
        %v289 = vpop.trf.xlu0
        %v290 = vpop.trf.xlu0
        %v291 = vpop.trf.xlu0
        %v292 = vpop.trf.xlu0
        %v293 = vpop.trf.xlu0
        %v294 = vpop.trf.xlu0
        %v295 = vpop.trf.xlu0
        %v296 = vpop.trf.xlu0
        %v297 = vpop.trf.xlu0
        %v298 = vpop.trf.xlu0
        %v299 = vpop.trf.xlu0
        %v300 = vpop.trf.xlu0
        %v301 = vpop.trf.xlu0
        %v302 = vpop.trf.xlu0
        %303 = vst [vmem:[#allocation2] sm:$0x1] 0.0
        %304 = vst [vmem:[#allocation2 + $0x1] sm:$0xff] %v287
        %305 = vst [vmem:[#allocation2 + $0x9] sm:$0xff] %v288
        %306 = vst [vmem:[#allocation2 + $0x11] sm:$0xff] %v289
        %307 = vst [vmem:[#allocation2 + $0x19] sm:$0xff] %v290
        %308 = vst [vmem:[#allocation2 + $0x21] sm:$0xff] %v291
        %309 = vst [vmem:[#allocation2 + $0x29] sm:$0xff] %v292
        %310 = vst [vmem:[#allocation2 + $0x31] sm:$0xff] %v293
        %311 = vst [vmem:[#allocation2 + $0x39] sm:$0xff] %v294
        %312 = vst [vmem:[#allocation2 + $0x41] sm:$0xff] %v295
        %313 = vst [vmem:[#allocation2 + $0x49] sm:$0xff] %v296
        %314 = vst [vmem:[#allocation2 + $0x51] sm:$0xff] %v297
        %315 = vst [vmem:[#allocation2 + $0x59] sm:$0xff] %v298
        %316 = vst [vmem:[#allocation2 + $0x61] sm:$0xff] %v299
        %317 = vst [vmem:[#allocation2 + $0x69] sm:$0xff] %v300
        %318 = vst [vmem:[#allocation2 + $0x71] sm:$0xff] %v301
        %319 = vst [vmem:[#allocation2 + $0x79] sm:$0xff] %v302
        %320 = vst [vmem:[#allocation2 + $0x81] sm:$0x1] 0.0
        %v321 = vld [vmem:[#allocation2] sm:$0xff]
        %v322 = vld [vmem:[#allocation2 + $0x8] sm:$0xff]
        %v323 = vld [vmem:[#allocation2 + $0x10] sm:$0xff]
        %v324 = vld [vmem:[#allocation2 + $0x18] sm:$0xff]
        %v325 = vld [vmem:[#allocation2 + $0x20] sm:$0xff]
        %v326 = vld [vmem:[#allocation2 + $0x28] sm:$0xff]
        %v327 = vld [vmem:[#allocation2 + $0x30] sm:$0xff]
        %v328 = vld [vmem:[#allocation2 + $0x38] sm:$0xff]
        %v329 = vld [vmem:[#allocation2 + $0x40] sm:$0xff]
        %v330 = vld [vmem:[#allocation2 + $0x48] sm:$0xff]
        %v331 = vld [vmem:[#allocation2 + $0x50] sm:$0xff]
        %v332 = vld [vmem:[#allocation2 + $0x58] sm:$0xff]
        %v333 = vld [vmem:[#allocation2 + $0x60] sm:$0xff]
        %v334 = vld [vmem:[#allocation2 + $0x68] sm:$0xff]
        %v335 = vld [vmem:[#allocation2 + $0x70] sm:$0xff]
        %v336 = vld [vmem:[#allocation2 + $0x78] sm:$0xff]
        %v337 = vld [vmem:[#allocation2 + $0x1] sm:$0xff]
        %v338 = vld [vmem:[#allocation2 + $0x9] sm:$0xff]
        %v339 = vld [vmem:[#allocation2 + $0x11] sm:$0xff]
        %v340 = vld [vmem:[#allocation2 + $0x19] sm:$0xff]
        %v341 = vld [vmem:[#allocation2 + $0x21] sm:$0xff]
        %v342 = vld [vmem:[#allocation2 + $0x29] sm:$0xff]
        %v343 = vld [vmem:[#allocation2 + $0x31] sm:$0xff]
        %v344 = vld [vmem:[#allocation2 + $0x39] sm:$0xff]
        %v345 = vld [vmem:[#allocation2 + $0x41] sm:$0xff]
        %v346 = vld [vmem:[#allocation2 + $0x49] sm:$0xff]
        %v347 = vld [vmem:[#allocation2 + $0x51] sm:$0xff]
        %v348 = vld [vmem:[#allocation2 + $0x59] sm:$0xff]
        %v349 = vld [vmem:[#allocation2 + $0x61] sm:$0xff]
        %v350 = vld [vmem:[#allocation2 + $0x69] sm:$0xff]
        %v351 = vld [vmem:[#allocation2 + $0x71] sm:$0xff]
        %v352 = vld [vmem:[#allocation2 + $0x79] sm:$0xff]
        %v353 = vld [vmem:[#allocation2 + $0x2] sm:$0xff]
        %v354 = vld [vmem:[#allocation2 + $0xa] sm:$0xff]
        %v355 = vld [vmem:[#allocation2 + $0x12] sm:$0xff]
        %v356 = vld [vmem:[#allocation2 + $0x1a] sm:$0xff]
        %v357 = vld [vmem:[#allocation2 + $0x22] sm:$0xff]
        %v358 = vld [vmem:[#allocation2 + $0x2a] sm:$0xff]
        %v359 = vld [vmem:[#allocation2 + $0x32] sm:$0xff]
        %v360 = vld [vmem:[#allocation2 + $0x3a] sm:$0xff]
        %v361 = vld [vmem:[#allocation2 + $0x42] sm:$0xff]
        %v362 = vld [vmem:[#allocation2 + $0x4a] sm:$0xff]
        %v363 = vld [vmem:[#allocation2 + $0x52] sm:$0xff]
        %v364 = vld [vmem:[#allocation2 + $0x5a] sm:$0xff]
        %v365 = vld [vmem:[#allocation2 + $0x62] sm:$0xff]
        %v366 = vld [vmem:[#allocation2 + $0x6a] sm:$0xff]
        %v367 = vld [vmem:[#allocation2 + $0x72] sm:$0xff]
        %v368 = vld [vmem:[#allocation2 + $0x7a] sm:$0xff]
        %s369 = sld [smem:[#allocation11]]
        %v370 = vstv %s369
        %v371 = vmul.f32 %v370, %v321
        %v372 = vmul.f32 %v370, %v322
        %v373 = vmul.f32 %v370, %v323
        %v374 = vmul.f32 %v370, %v324
        %v375 = vmul.f32 %v370, %v325
        %v376 = vmul.f32 %v370, %v326
        %v377 = vmul.f32 %v370, %v327
        %v378 = vmul.f32 %v370, %v328
        %v379 = vmul.f32 %v370, %v329
        %v380 = vmul.f32 %v370, %v330
        %v381 = vmul.f32 %v370, %v331
        %v382 = vmul.f32 %v370, %v332
        %v383 = vmul.f32 %v370, %v333
        %v384 = vmul.f32 %v370, %v334
        %v385 = vmul.f32 %v370, %v335
        %v386 = vmul.f32 %v370, %v336
        %s387 = sld [smem:[#allocation11 + $0x1]]
        %v388 = vstv %s387
        %v389 = vmul.f32 %v388, %v337
        %v390 = vmul.f32 %v388, %v338
        %v391 = vmul.f32 %v388, %v339
        %v392 = vmul.f32 %v388, %v340
        %v393 = vmul.f32 %v388, %v341
        %v394 = vmul.f32 %v388, %v342
        %v395 = vmul.f32 %v388, %v343
        %v396 = vmul.f32 %v388, %v344
        %v397 = vmul.f32 %v388, %v345
        %v398 = vmul.f32 %v388, %v346
        %v399 = vmul.f32 %v388, %v347
        %v400 = vmul.f32 %v388, %v348
        %v401 = vmul.f32 %v388, %v349
        %v402 = vmul.f32 %v388, %v350
        %v403 = vmul.f32 %v388, %v351
        %v404 = vmul.f32 %v388, %v352
        %v405 = vadd.f32 %v371, %v389
        %v406 = vadd.f32 %v372, %v390
        %v407 = vadd.f32 %v373, %v391
        %v408 = vadd.f32 %v374, %v392
        %v409 = vadd.f32 %v375, %v393
        %v410 = vadd.f32 %v376, %v394
        %v411 = vadd.f32 %v377, %v395
        %v412 = vadd.f32 %v378, %v396
        %v413 = vadd.f32 %v379, %v397
        %v414 = vadd.f32 %v380, %v398
        %v415 = vadd.f32 %v381, %v399
        %v416 = vadd.f32 %v382, %v400
        %v417 = vadd.f32 %v383, %v401
        %v418 = vadd.f32 %v384, %v402
        %v419 = vadd.f32 %v385, %v403
        %v420 = vadd.f32 %v386, %v404
        %s421 = sld [smem:[#allocation11 + $0x2]]
        %v422 = vstv %s421
        %v423 = vmul.f32 %v422, %v353
        %v424 = vmul.f32 %v422, %v354
        %v425 = vmul.f32 %v422, %v355
        %v426 = vmul.f32 %v422, %v356
        %v427 = vmul.f32 %v422, %v357
        %v428 = vmul.f32 %v422, %v358
        %v429 = vmul.f32 %v422, %v359
        %v430 = vmul.f32 %v422, %v360
        %v431 = vmul.f32 %v422, %v361
        %v432 = vmul.f32 %v422, %v362
        %v433 = vmul.f32 %v422, %v363
        %v434 = vmul.f32 %v422, %v364
        %v435 = vmul.f32 %v422, %v365
        %v436 = vmul.f32 %v422, %v366
        %v437 = vmul.f32 %v422, %v367
        %v438 = vmul.f32 %v422, %v368
        %v439 = vadd.f32 %v405, %v423
        %v440 = vadd.f32 %v406, %v424
        %v441 = vadd.f32 %v407, %v425
        %v442 = vadd.f32 %v408, %v426
        %v443 = vadd.f32 %v409, %v427
        %v444 = vadd.f32 %v410, %v428
        %v445 = vadd.f32 %v411, %v429
        %v446 = vadd.f32 %v412, %v430
        %v447 = vadd.f32 %v413, %v431
        %v448 = vadd.f32 %v414, %v432
        %v449 = vadd.f32 %v415, %v433
        %v450 = vadd.f32 %v416, %v434
        %v451 = vadd.f32 %v417, %v435
        %v452 = vadd.f32 %v418, %v436
        %v453 = vadd.f32 %v419, %v437
        %v454 = vadd.f32 %v420, %v438
        %455 = vst [vmem:[#allocation5] sm:$0xff] %v439
        %456 = vst [vmem:[#allocation5 + $0x8] sm:$0xff] %v440
        %457 = vst [vmem:[#allocation5 + $0x10] sm:$0xff] %v441
        %458 = vst [vmem:[#allocation5 + $0x18] sm:$0xff] %v442
        %459 = vst [vmem:[#allocation5 + $0x20] sm:$0xff] %v443
        %460 = vst [vmem:[#allocation5 + $0x28] sm:$0xff] %v444
        %461 = vst [vmem:[#allocation5 + $0x30] sm:$0xff] %v445
        %462 = vst [vmem:[#allocation5 + $0x38] sm:$0xff] %v446
        %463 = vst [vmem:[#allocation5 + $0x40] sm:$0xff] %v447
        %464 = vst [vmem:[#allocation5 + $0x48] sm:$0xff] %v448
        %465 = vst [vmem:[#allocation5 + $0x50] sm:$0xff] %v449
        %466 = vst [vmem:[#allocation5 + $0x58] sm:$0xff] %v450
        %467 = vst [vmem:[#allocation5 + $0x60] sm:$0xff] %v451
        %468 = vst [vmem:[#allocation5 + $0x68] sm:$0xff] %v452
        %469 = vst [vmem:[#allocation5 + $0x70] sm:$0xff] %v453
        %470 = vst [vmem:[#allocation5 + $0x78] sm:$0xff] %v454
        %v471 = vld [vmem:[#allocation5] ss:$2 sm:$0xff]
        %s472 = scalar_lea.vmem [#allocation5], 16
        %v473 = vld [vmem:[%s472] ss:$2 sm:$0xff]
        %s474 = scalar_lea.vmem [#allocation5], 32
        %v475 = vld [vmem:[%s474] ss:$2 sm:$0xff]
        %s476 = scalar_lea.vmem [#allocation5], 48
        %v477 = vld [vmem:[%s476] ss:$2 sm:$0xff]
        %s478 = scalar_lea.vmem [#allocation5], 64
        %v479 = vld [vmem:[%s478] ss:$2 sm:$0xff]
        %s480 = scalar_lea.vmem [#allocation5], 80
        %v481 = vld [vmem:[%s480] ss:$2 sm:$0xff]
        %s482 = scalar_lea.vmem [#allocation5], 96
        %v483 = vld [vmem:[%s482] ss:$2 sm:$0xff]
        %s484 = scalar_lea.vmem [#allocation5], 112
        %v485 = vld [vmem:[%s484] ss:$2 sm:$0xff]
        %s486 = scalar_lea.vmem [#allocation5], 1
        %v487 = vld [vmem:[%s486] ss:$2 sm:$0xff]
        %s488 = scalar_lea.vmem [#allocation5], 17
        %v489 = vld [vmem:[%s488] ss:$2 sm:$0xff]
        %s490 = scalar_lea.vmem [#allocation5], 33
        %v491 = vld [vmem:[%s490] ss:$2 sm:$0xff]
        %s492 = scalar_lea.vmem [#allocation5], 49
        %v493 = vld [vmem:[%s492] ss:$2 sm:$0xff]
        %s494 = scalar_lea.vmem [#allocation5], 65
        %v495 = vld [vmem:[%s494] ss:$2 sm:$0xff]
        %s496 = scalar_lea.vmem [#allocation5], 81
        %v497 = vld [vmem:[%s496] ss:$2 sm:$0xff]
        %s498 = scalar_lea.vmem [#allocation5], 97
        %v499 = vld [vmem:[%s498] ss:$2 sm:$0xff]
        %s500 = scalar_lea.vmem [#allocation5], 113
        %v501 = vld [vmem:[%s500] ss:$2 sm:$0xff]
        %v502 = vmax.f32 %v471, %v487
        %v503 = vmax.f32 %v473, %v489
        %v504 = vmax.f32 %v475, %v491
        %v505 = vmax.f32 %v477, %v493
        %v506 = vmax.f32 %v479, %v495
        %v507 = vmax.f32 %v481, %v497
        %v508 = vmax.f32 %v483, %v499
        %v509 = vmax.f32 %v485, %v501
        %vm510 = vcmp.gt.f32.partialorder %v502, 20.0
        %vm511 = vcmp.gt.f32.partialorder %v503, 20.0
        %vm512 = vcmp.gt.f32.partialorder %v504, 20.0
        %vm513 = vcmp.gt.f32.partialorder %v505, 20.0
        %vm514 = vcmp.gt.f32.partialorder %v506, 20.0
        %vm515 = vcmp.gt.f32.partialorder %v507, 20.0
        %vm516 = vcmp.gt.f32.partialorder %v508, 20.0
        %vm517 = vcmp.gt.f32.partialorder %v509, 20.0
        %v518 = vmin.f32 %v502, 20.0
        %v519 = vmin.f32 %v503, 20.0
        %v520 = vmin.f32 %v504, 20.0
        %v521 = vmin.f32 %v505, 20.0
        %v522 = vmin.f32 %v506, 20.0
        %v523 = vmin.f32 %v507, 20.0
        %v524 = vmin.f32 %v508, 20.0
        %v525 = vmin.f32 %v509, 20.0
        %v526 = vmul.f32 %v518, 1.442695
        %v527 = vpow.pop %v526
        %v528 = vmul.f32 %v519, 1.442695
        %v529 = vpow.pop %v528
        %v530 = vmul.f32 %v520, 1.442695
        %v531 = vpow.pop %v530
        %v532 = vmul.f32 %v521, 1.442695
        %v533 = vpow.pop %v532
        %v534 = vmul.f32 %v522, 1.442695
        %v535 = vpow.pop %v534
        %v536 = vmul.f32 %v523, 1.442695
        %v537 = vpow.pop %v536
        %v538 = vmul.f32 %v524, 1.442695
        %v539 = vpow.pop %v538
        %v540 = vmul.f32 %v525, 1.442695
        %v541 = vpow.pop %v540
        %v542 = vadd.f32 %v527, 1.0
        %v543 = vlog2.pop %v542
        %v544 = vmul.f32 %v543, 0.6931472
        %v545 = vmul.f32 -0.5, %v527
        %v546 = vadd.f32 %v545, 1.0
        %v547 = vmul.f32 %v546, %v527
        %v548 = vand.u32 2147483647, %v527
        %vm549 = vcmp.lt.f32.partialorder %v548, 0.0004427343
        %v550 = vsel %vm549, %v547, %v544
        %v551 = vadd.f32 %v529, 1.0
        %v552 = vlog2.pop %v551
        %v553 = vmul.f32 %v552, 0.6931472
        %v554 = vmul.f32 -0.5, %v529
        %v555 = vadd.f32 %v554, 1.0
        %v556 = vmul.f32 %v555, %v529
        %v557 = vand.u32 2147483647, %v529
        %vm558 = vcmp.lt.f32.partialorder %v557, 0.0004427343
        %v559 = vsel %vm558, %v556, %v553
        %v560 = vadd.f32 %v531, 1.0
        %v561 = vlog2.pop %v560
        %v562 = vmul.f32 %v561, 0.6931472
        %v563 = vmul.f32 -0.5, %v531
        %v564 = vadd.f32 %v563, 1.0
        %v565 = vmul.f32 %v564, %v531
        %v566 = vand.u32 2147483647, %v531
        %vm567 = vcmp.lt.f32.partialorder %v566, 0.0004427343
        %v568 = vsel %vm567, %v565, %v562
        %v569 = vadd.f32 %v533, 1.0
        %v570 = vlog2.pop %v569
        %v571 = vmul.f32 %v570, 0.6931472
        %v572 = vmul.f32 -0.5, %v533
        %v573 = vadd.f32 %v572, 1.0
        %v574 = vmul.f32 %v573, %v533
        %v575 = vand.u32 2147483647, %v533
        %vm576 = vcmp.lt.f32.partialorder %v575, 0.0004427343
        %v577 = vsel %vm576, %v574, %v571
        %v578 = vadd.f32 %v535, 1.0
        %v579 = vlog2.pop %v578
        %v580 = vmul.f32 %v579, 0.6931472
        %v581 = vmul.f32 -0.5, %v535
        %v582 = vadd.f32 %v581, 1.0
        %v583 = vmul.f32 %v582, %v535
        %v584 = vand.u32 2147483647, %v535
        %vm585 = vcmp.lt.f32.partialorder %v584, 0.0004427343
        %v586 = vsel %vm585, %v583, %v580
        %v587 = vadd.f32 %v537, 1.0
        %v588 = vlog2.pop %v587
        %v589 = vmul.f32 %v588, 0.6931472
        %v590 = vmul.f32 -0.5, %v537
        %v591 = vadd.f32 %v590, 1.0
        %v592 = vmul.f32 %v591, %v537
        %v593 = vand.u32 2147483647, %v537
        %vm594 = vcmp.lt.f32.partialorder %v593, 0.0004427343
        %v595 = vsel %vm594, %v592, %v589
        %v596 = vadd.f32 %v539, 1.0
        %v597 = vlog2.pop %v596
        %v598 = vmul.f32 %v597, 0.6931472
        %v599 = vmul.f32 -0.5, %v539
        %v600 = vadd.f32 %v599, 1.0
        %v601 = vmul.f32 %v600, %v539
        %v602 = vand.u32 2147483647, %v539
        %vm603 = vcmp.lt.f32.partialorder %v602, 0.0004427343
        %v604 = vsel %vm603, %v601, %v598
        %v605 = vadd.f32 %v541, 1.0
        %v606 = vlog2.pop %v605
        %v607 = vmul.f32 %v606, 0.6931472
        %v608 = vmul.f32 -0.5, %v541
        %v609 = vadd.f32 %v608, 1.0
        %v610 = vmul.f32 %v609, %v541
        %v611 = vand.u32 2147483647, %v541
        %vm612 = vcmp.lt.f32.partialorder %v611, 0.0004427343
        %v613 = vsel %vm612, %v610, %v607
        %v614 = vsel %vm510, %v502, %v550
        %v615 = vsel %vm511, %v503, %v559
        %v616 = vsel %vm512, %v504, %v568
        %v617 = vsel %vm513, %v505, %v577
        %v618 = vsel %vm514, %v506, %v586
        %v619 = vsel %vm515, %v507, %v595
        %v620 = vsel %vm516, %v508, %v604
        %v621 = vsel %vm517, %v509, %v613
        %s622 = sld [smem:[#allocation11 + $0x3]]
        %v623 = vstv %s622
        %v624 = vmul.f32 %v623, %v321
        %v625 = vmul.f32 %v623, %v322
        %v626 = vmul.f32 %v623, %v323
        %v627 = vmul.f32 %v623, %v324
        %v628 = vmul.f32 %v623, %v325
        %v629 = vmul.f32 %v623, %v326
        %v630 = vmul.f32 %v623, %v327
        %v631 = vmul.f32 %v623, %v328
        %v632 = vmul.f32 %v623, %v329
        %v633 = vmul.f32 %v623, %v330
        %v634 = vmul.f32 %v623, %v331
        %v635 = vmul.f32 %v623, %v332
        %v636 = vmul.f32 %v623, %v333
        %v637 = vmul.f32 %v623, %v334
        %v638 = vmul.f32 %v623, %v335
        %v639 = vmul.f32 %v623, %v336
        %s640 = sld [smem:[#allocation11 + $0x4]]
        %v641 = vstv %s640
        %v642 = vmul.f32 %v641, %v337
        %v643 = vmul.f32 %v641, %v338
        %v644 = vmul.f32 %v641, %v339
        %v645 = vmul.f32 %v641, %v340
        %v646 = vmul.f32 %v641, %v341
        %v647 = vmul.f32 %v641, %v342
        %v648 = vmul.f32 %v641, %v343
        %v649 = vmul.f32 %v641, %v344
        %v650 = vmul.f32 %v641, %v345
        %v651 = vmul.f32 %v641, %v346
        %v652 = vmul.f32 %v641, %v347
        %v653 = vmul.f32 %v641, %v348
        %v654 = vmul.f32 %v641, %v349
        %v655 = vmul.f32 %v641, %v350
        %v656 = vmul.f32 %v641, %v351
        %v657 = vmul.f32 %v641, %v352
        %v658 = vadd.f32 %v624, %v642
        %v659 = vadd.f32 %v625, %v643
        %v660 = vadd.f32 %v626, %v644
        %v661 = vadd.f32 %v627, %v645
        %v662 = vadd.f32 %v628, %v646
        %v663 = vadd.f32 %v629, %v647
        %v664 = vadd.f32 %v630, %v648
        %v665 = vadd.f32 %v631, %v649
        %v666 = vadd.f32 %v632, %v650
        %v667 = vadd.f32 %v633, %v651
        %v668 = vadd.f32 %v634, %v652
        %v669 = vadd.f32 %v635, %v653
        %v670 = vadd.f32 %v636, %v654
        %v671 = vadd.f32 %v637, %v655
        %v672 = vadd.f32 %v638, %v656
        %v673 = vadd.f32 %v639, %v657
        %s674 = sld [smem:[#allocation11 + $0x5]]
        %v675 = vstv %s674
        %v676 = vmul.f32 %v675, %v353
        %v677 = vmul.f32 %v675, %v354
        %v678 = vmul.f32 %v675, %v355
        %v679 = vmul.f32 %v675, %v356
        %v680 = vmul.f32 %v675, %v357
        %v681 = vmul.f32 %v675, %v358
        %v682 = vmul.f32 %v675, %v359
        %v683 = vmul.f32 %v675, %v360
        %v684 = vmul.f32 %v675, %v361
        %v685 = vmul.f32 %v675, %v362
        %v686 = vmul.f32 %v675, %v363
        %v687 = vmul.f32 %v675, %v364
        %v688 = vmul.f32 %v675, %v365
        %v689 = vmul.f32 %v675, %v366
        %v690 = vmul.f32 %v675, %v367
        %v691 = vmul.f32 %v675, %v368
        %v692 = vadd.f32 %v658, %v676
        %v693 = vadd.f32 %v659, %v677
        %v694 = vadd.f32 %v660, %v678
        %v695 = vadd.f32 %v661, %v679
        %v696 = vadd.f32 %v662, %v680
        %v697 = vadd.f32 %v663, %v681
        %v698 = vadd.f32 %v664, %v682
        %v699 = vadd.f32 %v665, %v683
        %v700 = vadd.f32 %v666, %v684
        %v701 = vadd.f32 %v667, %v685
        %v702 = vadd.f32 %v668, %v686
        %v703 = vadd.f32 %v669, %v687
        %v704 = vadd.f32 %v670, %v688
        %v705 = vadd.f32 %v671, %v689
        %v706 = vadd.f32 %v672, %v690
        %v707 = vadd.f32 %v673, %v691
        %708 = vst [vmem:[#allocation6] sm:$0xff] %v692
        %709 = vst [vmem:[#allocation6 + $0x8] sm:$0xff] %v693
        %710 = vst [vmem:[#allocation6 + $0x10] sm:$0xff] %v694
        %711 = vst [vmem:[#allocation6 + $0x18] sm:$0xff] %v695
        %712 = vst [vmem:[#allocation6 + $0x20] sm:$0xff] %v696
        %713 = vst [vmem:[#allocation6 + $0x28] sm:$0xff] %v697
        %714 = vst [vmem:[#allocation6 + $0x30] sm:$0xff] %v698
        %715 = vst [vmem:[#allocation6 + $0x38] sm:$0xff] %v699
        %716 = vst [vmem:[#allocation6 + $0x40] sm:$0xff] %v700
        %717 = vst [vmem:[#allocation6 + $0x48] sm:$0xff] %v701
        %718 = vst [vmem:[#allocation6 + $0x50] sm:$0xff] %v702
        %719 = vst [vmem:[#allocation6 + $0x58] sm:$0xff] %v703
        %720 = vst [vmem:[#allocation6 + $0x60] sm:$0xff] %v704
        %721 = vst [vmem:[#allocation6 + $0x68] sm:$0xff] %v705
        %722 = vst [vmem:[#allocation6 + $0x70] sm:$0xff] %v706
        %723 = vst [vmem:[#allocation6 + $0x78] sm:$0xff] %v707
        %v724 = vld [vmem:[#allocation6] ss:$2 sm:$0xff]
        %s725 = scalar_lea.vmem [#allocation6], 16
        %v726 = vld [vmem:[%s725] ss:$2 sm:$0xff]
        %s727 = scalar_lea.vmem [#allocation6], 32
        %v728 = vld [vmem:[%s727] ss:$2 sm:$0xff]
        %s729 = scalar_lea.vmem [#allocation6], 48
        %v730 = vld [vmem:[%s729] ss:$2 sm:$0xff]
        %s731 = scalar_lea.vmem [#allocation6], 64
        %v732 = vld [vmem:[%s731] ss:$2 sm:$0xff]
        %s733 = scalar_lea.vmem [#allocation6], 80
        %v734 = vld [vmem:[%s733] ss:$2 sm:$0xff]
        %s735 = scalar_lea.vmem [#allocation6], 96
        %v736 = vld [vmem:[%s735] ss:$2 sm:$0xff]
        %s737 = scalar_lea.vmem [#allocation6], 112
        %v738 = vld [vmem:[%s737] ss:$2 sm:$0xff]
        %s739 = scalar_lea.vmem [#allocation6], 1
        %v740 = vld [vmem:[%s739] ss:$2 sm:$0xff]
        %s741 = scalar_lea.vmem [#allocation6], 17
        %v742 = vld [vmem:[%s741] ss:$2 sm:$0xff]
        %s743 = scalar_lea.vmem [#allocation6], 33
        %v744 = vld [vmem:[%s743] ss:$2 sm:$0xff]
        %s745 = scalar_lea.vmem [#allocation6], 49
        %v746 = vld [vmem:[%s745] ss:$2 sm:$0xff]
        %s747 = scalar_lea.vmem [#allocation6], 65
        %v748 = vld [vmem:[%s747] ss:$2 sm:$0xff]
        %s749 = scalar_lea.vmem [#allocation6], 81
        %v750 = vld [vmem:[%s749] ss:$2 sm:$0xff]
        %s751 = scalar_lea.vmem [#allocation6], 97
        %v752 = vld [vmem:[%s751] ss:$2 sm:$0xff]
        %s753 = scalar_lea.vmem [#allocation6], 113
        %v754 = vld [vmem:[%s753] ss:$2 sm:$0xff]
        %v755 = vmax.f32 %v724, %v740
        %v756 = vmax.f32 %v726, %v742
        %v757 = vmax.f32 %v728, %v744
        %v758 = vmax.f32 %v730, %v746
        %v759 = vmax.f32 %v732, %v748
        %v760 = vmax.f32 %v734, %v750
        %v761 = vmax.f32 %v736, %v752
        %v762 = vmax.f32 %v738, %v754
        %vm763 = vcmp.gt.f32.partialorder %v755, 20.0
        %vm764 = vcmp.gt.f32.partialorder %v756, 20.0
        %vm765 = vcmp.gt.f32.partialorder %v757, 20.0
        %vm766 = vcmp.gt.f32.partialorder %v758, 20.0
        %vm767 = vcmp.gt.f32.partialorder %v759, 20.0
        %vm768 = vcmp.gt.f32.partialorder %v760, 20.0
        %vm769 = vcmp.gt.f32.partialorder %v761, 20.0
        %vm770 = vcmp.gt.f32.partialorder %v762, 20.0
        %v771 = vmin.f32 %v755, 20.0
        %v772 = vmin.f32 %v756, 20.0
        %v773 = vmin.f32 %v757, 20.0
        %v774 = vmin.f32 %v758, 20.0
        %v775 = vmin.f32 %v759, 20.0
        %v776 = vmin.f32 %v760, 20.0
        %v777 = vmin.f32 %v761, 20.0
        %v778 = vmin.f32 %v762, 20.0
        %v779 = vmul.f32 %v771, 1.442695
        %v780 = vpow.pop %v779
        %v781 = vmul.f32 %v772, 1.442695
        %v782 = vpow.pop %v781
        %v783 = vmul.f32 %v773, 1.442695
        %v784 = vpow.pop %v783
        %v785 = vmul.f32 %v774, 1.442695
        %v786 = vpow.pop %v785
        %v787 = vmul.f32 %v775, 1.442695
        %v788 = vpow.pop %v787
        %v789 = vmul.f32 %v776, 1.442695
        %v790 = vpow.pop %v789
        %v791 = vmul.f32 %v777, 1.442695
        %v792 = vpow.pop %v791
        %v793 = vmul.f32 %v778, 1.442695
        %v794 = vpow.pop %v793
        %v795 = vadd.f32 %v780, 1.0
        %v796 = vlog2.pop %v795
        %v797 = vmul.f32 %v796, 0.6931472
        %v798 = vmul.f32 -0.5, %v780
        %v799 = vadd.f32 %v798, 1.0
        %v800 = vmul.f32 %v799, %v780
        %v801 = vand.u32 2147483647, %v780
        %vm802 = vcmp.lt.f32.partialorder %v801, 0.0004427343
        %v803 = vsel %vm802, %v800, %v797
        %v804 = vadd.f32 %v782, 1.0
        %v805 = vlog2.pop %v804
        %v806 = vmul.f32 %v805, 0.6931472
        %v807 = vmul.f32 -0.5, %v782
        %v808 = vadd.f32 %v807, 1.0
        %v809 = vmul.f32 %v808, %v782
        %v810 = vand.u32 2147483647, %v782
        %vm811 = vcmp.lt.f32.partialorder %v810, 0.0004427343
        %v812 = vsel %vm811, %v809, %v806
        %v813 = vadd.f32 %v784, 1.0
        %v814 = vlog2.pop %v813
        %v815 = vmul.f32 %v814, 0.6931472
        %v816 = vmul.f32 -0.5, %v784
        %v817 = vadd.f32 %v816, 1.0
        %v818 = vmul.f32 %v817, %v784
        %v819 = vand.u32 2147483647, %v784
        %vm820 = vcmp.lt.f32.partialorder %v819, 0.0004427343
        %v821 = vsel %vm820, %v818, %v815
        %v822 = vadd.f32 %v786, 1.0
        %v823 = vlog2.pop %v822
        %v824 = vmul.f32 %v823, 0.6931472
        %v825 = vmul.f32 -0.5, %v786
        %v826 = vadd.f32 %v825, 1.0
        %v827 = vmul.f32 %v826, %v786
        %v828 = vand.u32 2147483647, %v786
        %vm829 = vcmp.lt.f32.partialorder %v828, 0.0004427343
        %v830 = vsel %vm829, %v827, %v824
        %v831 = vadd.f32 %v788, 1.0
        %v832 = vlog2.pop %v831
        %v833 = vmul.f32 %v832, 0.6931472
        %v834 = vmul.f32 -0.5, %v788
        %v835 = vadd.f32 %v834, 1.0
        %v836 = vmul.f32 %v835, %v788
        %v837 = vand.u32 2147483647, %v788
        %vm838 = vcmp.lt.f32.partialorder %v837, 0.0004427343
        %v839 = vsel %vm838, %v836, %v833
        %v840 = vadd.f32 %v790, 1.0
        %v841 = vlog2.pop %v840
        %v842 = vmul.f32 %v841, 0.6931472
        %v843 = vmul.f32 -0.5, %v790
        %v844 = vadd.f32 %v843, 1.0
        %v845 = vmul.f32 %v844, %v790
        %v846 = vand.u32 2147483647, %v790
        %vm847 = vcmp.lt.f32.partialorder %v846, 0.0004427343
        %v848 = vsel %vm847, %v845, %v842
        %v849 = vadd.f32 %v792, 1.0
        %v850 = vlog2.pop %v849
        %v851 = vmul.f32 %v850, 0.6931472
        %v852 = vmul.f32 -0.5, %v792
        %v853 = vadd.f32 %v852, 1.0
        %v854 = vmul.f32 %v853, %v792
        %v855 = vand.u32 2147483647, %v792
        %vm856 = vcmp.lt.f32.partialorder %v855, 0.0004427343
        %v857 = vsel %vm856, %v854, %v851
        %v858 = vadd.f32 %v794, 1.0
        %v859 = vlog2.pop %v858
        %v860 = vmul.f32 %v859, 0.6931472
        %v861 = vmul.f32 -0.5, %v794
        %v862 = vadd.f32 %v861, 1.0
        %v863 = vmul.f32 %v862, %v794
        %v864 = vand.u32 2147483647, %v794
        %vm865 = vcmp.lt.f32.partialorder %v864, 0.0004427343
        %v866 = vsel %vm865, %v863, %v860
        %v867 = vsel %vm763, %v755, %v803
        %v868 = vsel %vm764, %v756, %v812
        %v869 = vsel %vm765, %v757, %v821
        %v870 = vsel %vm766, %v758, %v830
        %v871 = vsel %vm767, %v759, %v839
        %v872 = vsel %vm768, %v760, %v848
        %v873 = vsel %vm769, %v761, %v857
        %v874 = vsel %vm770, %v762, %v866
        %875 = vst [vmem:[#allocation3] sm:$0x1] 0.0
        %876 = vst [vmem:[#allocation3 + $0x1] sm:$0xff] %v614
        %877 = vst [vmem:[#allocation3 + $0x9] sm:$0xff] %v615
        %878 = vst [vmem:[#allocation3 + $0x11] sm:$0xff] %v616
        %879 = vst [vmem:[#allocation3 + $0x19] sm:$0xff] %v617
        %880 = vst [vmem:[#allocation3 + $0x21] sm:$0xff] %v618
        %881 = vst [vmem:[#allocation3 + $0x29] sm:$0xff] %v619
        %882 = vst [vmem:[#allocation3 + $0x31] sm:$0xff] %v620
        %883 = vst [vmem:[#allocation3 + $0x39] sm:$0xff] %v621
        %884 = vst [vmem:[#allocation3 + $0x41] sm:$0x1] 0.0
        %s885 = scalar_lea.vmem [#allocation3], 72
        %886 = vst [vmem:[%s885] sm:$0x1] 0.0
        %887 = vst [vmem:[%s885 + $0x1] sm:$0xff] %v867
        %888 = vst [vmem:[%s885 + $0x9] sm:$0xff] %v868
        %889 = vst [vmem:[%s885 + $0x11] sm:$0xff] %v869
        %890 = vst [vmem:[%s885 + $0x19] sm:$0xff] %v870
        %891 = vst [vmem:[%s885 + $0x21] sm:$0xff] %v871
        %892 = vst [vmem:[%s885 + $0x29] sm:$0xff] %v872
        %893 = vst [vmem:[%s885 + $0x31] sm:$0xff] %v873
        %894 = vst [vmem:[%s885 + $0x39] sm:$0xff] %v874
        %895 = vst [vmem:[%s885 + $0x41] sm:$0x1] 0.0
        %v896 = vld [vmem:[#allocation3] sm:$0xff]
        %v897 = vld [vmem:[#allocation3 + $0x8] sm:$0xff]
        %v898 = vld [vmem:[#allocation3 + $0x10] sm:$0xff]
        %v899 = vld [vmem:[#allocation3 + $0x18] sm:$0xff]
        %v900 = vld [vmem:[#allocation3 + $0x20] sm:$0xff]
        %v901 = vld [vmem:[#allocation3 + $0x28] sm:$0xff]
        %v902 = vld [vmem:[#allocation3 + $0x30] sm:$0xff]
        %v903 = vld [vmem:[#allocation3 + $0x38] sm:$0xff]
        %v904 = vld [vmem:[#allocation3 + $0x1] sm:$0xff]
        %v905 = vld [vmem:[#allocation3 + $0x9] sm:$0xff]
        %v906 = vld [vmem:[#allocation3 + $0x11] sm:$0xff]
        %v907 = vld [vmem:[#allocation3 + $0x19] sm:$0xff]
        %v908 = vld [vmem:[#allocation3 + $0x21] sm:$0xff]
        %v909 = vld [vmem:[#allocation3 + $0x29] sm:$0xff]
        %v910 = vld [vmem:[#allocation3 + $0x31] sm:$0xff]
        %v911 = vld [vmem:[#allocation3 + $0x39] sm:$0xff]
        %v912 = vld [vmem:[#allocation3 + $0x2] sm:$0xff]
        %v913 = vld [vmem:[#allocation3 + $0xa] sm:$0xff]
        %v914 = vld [vmem:[#allocation3 + $0x12] sm:$0xff]
        %v915 = vld [vmem:[#allocation3 + $0x1a] sm:$0xff]
        %v916 = vld [vmem:[#allocation3 + $0x22] sm:$0xff]
        %v917 = vld [vmem:[#allocation3 + $0x2a] sm:$0xff]
        %v918 = vld [vmem:[#allocation3 + $0x32] sm:$0xff]
        %v919 = vld [vmem:[#allocation3 + $0x3a] sm:$0xff]
        %v920 = vld [vmem:[%s885] sm:$0xff]
        %v921 = vld [vmem:[%s885 + $0x8] sm:$0xff]
        %v922 = vld [vmem:[%s885 + $0x10] sm:$0xff]
        %v923 = vld [vmem:[%s885 + $0x18] sm:$0xff]
        %v924 = vld [vmem:[%s885 + $0x20] sm:$0xff]
        %v925 = vld [vmem:[%s885 + $0x28] sm:$0xff]
        %v926 = vld [vmem:[%s885 + $0x30] sm:$0xff]
        %v927 = vld [vmem:[%s885 + $0x38] sm:$0xff]
        %v928 = vld [vmem:[%s885 + $0x1] sm:$0xff]
        %v929 = vld [vmem:[%s885 + $0x9] sm:$0xff]
        %v930 = vld [vmem:[%s885 + $0x11] sm:$0xff]
        %v931 = vld [vmem:[%s885 + $0x19] sm:$0xff]
        %v932 = vld [vmem:[%s885 + $0x21] sm:$0xff]
        %v933 = vld [vmem:[%s885 + $0x29] sm:$0xff]
        %v934 = vld [vmem:[%s885 + $0x31] sm:$0xff]
        %v935 = vld [vmem:[%s885 + $0x39] sm:$0xff]
        %v936 = vld [vmem:[%s885 + $0x2] sm:$0xff]
        %v937 = vld [vmem:[%s885 + $0xa] sm:$0xff]
        %v938 = vld [vmem:[%s885 + $0x12] sm:$0xff]
        %v939 = vld [vmem:[%s885 + $0x1a] sm:$0xff]
        %v940 = vld [vmem:[%s885 + $0x22] sm:$0xff]
        %v941 = vld [vmem:[%s885 + $0x2a] sm:$0xff]
        %v942 = vld [vmem:[%s885 + $0x32] sm:$0xff]
        %v943 = vld [vmem:[%s885 + $0x3a] sm:$0xff]
        %s944 = sld [smem:[#allocation12]]
        %v945 = vstv %s944
        %v946 = vmul.f32 %v945, %v896
        %v947 = vmul.f32 %v945, %v897
        %v948 = vmul.f32 %v945, %v898
        %v949 = vmul.f32 %v945, %v899
        %v950 = vmul.f32 %v945, %v900
        %v951 = vmul.f32 %v945, %v901
        %v952 = vmul.f32 %v945, %v902
        %v953 = vmul.f32 %v945, %v903
        %s954 = sld [smem:[#allocation12 + $0x1]]
        %v955 = vstv %s954
        %v956 = vmul.f32 %v955, %v904
        %v957 = vmul.f32 %v955, %v905
        %v958 = vmul.f32 %v955, %v906
        %v959 = vmul.f32 %v955, %v907
        %v960 = vmul.f32 %v955, %v908
        %v961 = vmul.f32 %v955, %v909
        %v962 = vmul.f32 %v955, %v910
        %v963 = vmul.f32 %v955, %v911
        %v964 = vadd.f32 %v946, %v956
        %v965 = vadd.f32 %v947, %v957
        %v966 = vadd.f32 %v948, %v958
        %v967 = vadd.f32 %v949, %v959
        %v968 = vadd.f32 %v950, %v960
        %v969 = vadd.f32 %v951, %v961
        %v970 = vadd.f32 %v952, %v962
        %v971 = vadd.f32 %v953, %v963
        %s972 = sld [smem:[#allocation12 + $0x2]]
        %v973 = vstv %s972
        %v974 = vmul.f32 %v973, %v912
        %v975 = vmul.f32 %v973, %v913
        %v976 = vmul.f32 %v973, %v914
        %v977 = vmul.f32 %v973, %v915
        %v978 = vmul.f32 %v973, %v916
        %v979 = vmul.f32 %v973, %v917
        %v980 = vmul.f32 %v973, %v918
        %v981 = vmul.f32 %v973, %v919
        %v982 = vadd.f32 %v964, %v974
        %v983 = vadd.f32 %v965, %v975
        %v984 = vadd.f32 %v966, %v976
        %v985 = vadd.f32 %v967, %v977
        %v986 = vadd.f32 %v968, %v978
        %v987 = vadd.f32 %v969, %v979
        %v988 = vadd.f32 %v970, %v980
        %v989 = vadd.f32 %v971, %v981
        %s990 = sld [smem:[#allocation12 + $0x3]]
        %v991 = vstv %s990
        %v992 = vmul.f32 %v991, %v920
        %v993 = vmul.f32 %v991, %v921
        %v994 = vmul.f32 %v991, %v922
        %v995 = vmul.f32 %v991, %v923
        %v996 = vmul.f32 %v991, %v924
        %v997 = vmul.f32 %v991, %v925
        %v998 = vmul.f32 %v991, %v926
        %v999 = vmul.f32 %v991, %v927
        %v1000 = vadd.f32 %v982, %v992
        %v1001 = vadd.f32 %v983, %v993
        %v1002 = vadd.f32 %v984, %v994
        %v1003 = vadd.f32 %v985, %v995
        %v1004 = vadd.f32 %v986, %v996
        %v1005 = vadd.f32 %v987, %v997
        %v1006 = vadd.f32 %v988, %v998
        %v1007 = vadd.f32 %v989, %v999
        %s1008 = sld [smem:[#allocation12 + $0x4]]
        %v1009 = vstv %s1008
        %v1010 = vmul.f32 %v1009, %v928
        %v1011 = vmul.f32 %v1009, %v929
        %v1012 = vmul.f32 %v1009, %v930
        %v1013 = vmul.f32 %v1009, %v931
        %v1014 = vmul.f32 %v1009, %v932
        %v1015 = vmul.f32 %v1009, %v933
        %v1016 = vmul.f32 %v1009, %v934
        %v1017 = vmul.f32 %v1009, %v935
        %v1018 = vadd.f32 %v1000, %v1010
        %v1019 = vadd.f32 %v1001, %v1011
        %v1020 = vadd.f32 %v1002, %v1012
        %v1021 = vadd.f32 %v1003, %v1013
        %v1022 = vadd.f32 %v1004, %v1014
        %v1023 = vadd.f32 %v1005, %v1015
        %v1024 = vadd.f32 %v1006, %v1016
        %v1025 = vadd.f32 %v1007, %v1017
        %s1026 = sld [smem:[#allocation12 + $0x5]]
        %v1027 = vstv %s1026
        %v1028 = vmul.f32 %v1027, %v936
        %v1029 = vmul.f32 %v1027, %v937
        %v1030 = vmul.f32 %v1027, %v938
        %v1031 = vmul.f32 %v1027, %v939
        %v1032 = vmul.f32 %v1027, %v940
        %v1033 = vmul.f32 %v1027, %v941
        %v1034 = vmul.f32 %v1027, %v942
        %v1035 = vmul.f32 %v1027, %v943
        %v1036 = vadd.f32 %v1018, %v1028
        %v1037 = vadd.f32 %v1019, %v1029
        %v1038 = vadd.f32 %v1020, %v1030
        %v1039 = vadd.f32 %v1021, %v1031
        %v1040 = vadd.f32 %v1022, %v1032
        %v1041 = vadd.f32 %v1023, %v1033
        %v1042 = vadd.f32 %v1024, %v1034
        %v1043 = vadd.f32 %v1025, %v1035
        %1044 = vst [vmem:[#allocation5] sm:$0xff] %v1036
        %1045 = vst [vmem:[#allocation5 + $0x8] sm:$0xff] %v1037
        %1046 = vst [vmem:[#allocation5 + $0x10] sm:$0xff] %v1038
        %1047 = vst [vmem:[#allocation5 + $0x18] sm:$0xff] %v1039
        %1048 = vst [vmem:[#allocation5 + $0x20] sm:$0xff] %v1040
        %1049 = vst [vmem:[#allocation5 + $0x28] sm:$0xff] %v1041
        %1050 = vst [vmem:[#allocation5 + $0x30] sm:$0xff] %v1042
        %1051 = vst [vmem:[#allocation5 + $0x38] sm:$0xff] %v1043
        %v1052 = vld [vmem:[#allocation5] ss:$2 sm:$0xff]
        %s1053 = scalar_lea.vmem [#allocation5], 16
        %v1054 = vld [vmem:[%s1053] ss:$2 sm:$0xff]
        %s1055 = scalar_lea.vmem [#allocation5], 32
        %v1056 = vld [vmem:[%s1055] ss:$2 sm:$0xff]
        %s1057 = scalar_lea.vmem [#allocation5], 48
        %v1058 = vld [vmem:[%s1057] ss:$2 sm:$0xff]
        %v1059 = vld [vmem:[%s486] ss:$2 sm:$0xff]
        %v1060 = vld [vmem:[%s488] ss:$2 sm:$0xff]
        %v1061 = vld [vmem:[%s490] ss:$2 sm:$0xff]
        %v1062 = vld [vmem:[%s492] ss:$2 sm:$0xff]
        %v1063 = vmax.f32 %v1052, %v1059
        %v1064 = vmax.f32 %v1054, %v1060
        %v1065 = vmax.f32 %v1056, %v1061
        %v1066 = vmax.f32 %v1058, %v1062
        %vm1067 = vcmp.gt.f32.partialorder %v1063, 20.0
        %vm1068 = vcmp.gt.f32.partialorder %v1064, 20.0
        %vm1069 = vcmp.gt.f32.partialorder %v1065, 20.0
        %vm1070 = vcmp.gt.f32.partialorder %v1066, 20.0
        %v1071 = vmin.f32 %v1063, 20.0
        %v1072 = vmin.f32 %v1064, 20.0
        %v1073 = vmin.f32 %v1065, 20.0
        %v1074 = vmin.f32 %v1066, 20.0
        %v1075 = vmul.f32 %v1071, 1.442695
        %v1076 = vpow.pop %v1075
        %v1077 = vmul.f32 %v1072, 1.442695
        %v1078 = vpow.pop %v1077
        %v1079 = vmul.f32 %v1073, 1.442695
        %v1080 = vpow.pop %v1079
        %v1081 = vmul.f32 %v1074, 1.442695
        %v1082 = vpow.pop %v1081
        %v1083 = vadd.f32 %v1076, 1.0
        %v1084 = vlog2.pop %v1083
        %v1085 = vmul.f32 %v1084, 0.6931472
        %v1086 = vmul.f32 -0.5, %v1076
        %v1087 = vadd.f32 %v1086, 1.0
        %v1088 = vmul.f32 %v1087, %v1076
        %v1089 = vand.u32 2147483647, %v1076
        %vm1090 = vcmp.lt.f32.partialorder %v1089, 0.0004427343
        %v1091 = vsel %vm1090, %v1088, %v1085
        %v1092 = vadd.f32 %v1078, 1.0
        %v1093 = vlog2.pop %v1092
        %v1094 = vmul.f32 %v1093, 0.6931472
        %v1095 = vmul.f32 -0.5, %v1078
        %v1096 = vadd.f32 %v1095, 1.0
        %v1097 = vmul.f32 %v1096, %v1078
        %v1098 = vand.u32 2147483647, %v1078
        %vm1099 = vcmp.lt.f32.partialorder %v1098, 0.0004427343
        %v1100 = vsel %vm1099, %v1097, %v1094
        %v1101 = vadd.f32 %v1080, 1.0
        %v1102 = vlog2.pop %v1101
        %v1103 = vmul.f32 %v1102, 0.6931472
        %v1104 = vmul.f32 -0.5, %v1080
        %v1105 = vadd.f32 %v1104, 1.0
        %v1106 = vmul.f32 %v1105, %v1080
        %v1107 = vand.u32 2147483647, %v1080
        %vm1108 = vcmp.lt.f32.partialorder %v1107, 0.0004427343
        %v1109 = vsel %vm1108, %v1106, %v1103
        %v1110 = vadd.f32 %v1082, 1.0
        %v1111 = vlog2.pop %v1110
        %v1112 = vmul.f32 %v1111, 0.6931472
        %v1113 = vmul.f32 -0.5, %v1082
        %v1114 = vadd.f32 %v1113, 1.0
        %v1115 = vmul.f32 %v1114, %v1082
        %v1116 = vand.u32 2147483647, %v1082
        %vm1117 = vcmp.lt.f32.partialorder %v1116, 0.0004427343
        %v1118 = vsel %vm1117, %v1115, %v1112
        %v1119 = vsel %vm1067, %v1063, %v1091
        %v1120 = vsel %vm1068, %v1064, %v1100
        %v1121 = vsel %vm1069, %v1065, %v1109
        %v1122 = vsel %vm1070, %v1066, %v1118
        %s1123 = sld [smem:[#allocation12 + $0x6]]
        %v1124 = vstv %s1123
        %v1125 = vmul.f32 %v1124, %v896
        %v1126 = vmul.f32 %v1124, %v897
        %v1127 = vmul.f32 %v1124, %v898
        %v1128 = vmul.f32 %v1124, %v899
        %v1129 = vmul.f32 %v1124, %v900
        %v1130 = vmul.f32 %v1124, %v901
        %v1131 = vmul.f32 %v1124, %v902
        %v1132 = vmul.f32 %v1124, %v903
        %s1133 = sld [smem:[#allocation12 + $0x7]]
        %v1134 = vstv %s1133
        %v1135 = vmul.f32 %v1134, %v904
        %v1136 = vmul.f32 %v1134, %v905
        %v1137 = vmul.f32 %v1134, %v906
        %v1138 = vmul.f32 %v1134, %v907
        %v1139 = vmul.f32 %v1134, %v908
        %v1140 = vmul.f32 %v1134, %v909
        %v1141 = vmul.f32 %v1134, %v910
        %v1142 = vmul.f32 %v1134, %v911
        %v1143 = vadd.f32 %v1125, %v1135
        %v1144 = vadd.f32 %v1126, %v1136
        %v1145 = vadd.f32 %v1127, %v1137
        %v1146 = vadd.f32 %v1128, %v1138
        %v1147 = vadd.f32 %v1129, %v1139
        %v1148 = vadd.f32 %v1130, %v1140
        %v1149 = vadd.f32 %v1131, %v1141
        %v1150 = vadd.f32 %v1132, %v1142
        %s1151 = sld [smem:[#allocation12 + $0x8]]
        %v1152 = vstv %s1151
        %v1153 = vmul.f32 %v1152, %v912
        %v1154 = vmul.f32 %v1152, %v913
        %v1155 = vmul.f32 %v1152, %v914
        %v1156 = vmul.f32 %v1152, %v915
        %v1157 = vmul.f32 %v1152, %v916
        %v1158 = vmul.f32 %v1152, %v917
        %v1159 = vmul.f32 %v1152, %v918
        %v1160 = vmul.f32 %v1152, %v919
        %v1161 = vadd.f32 %v1143, %v1153
        %v1162 = vadd.f32 %v1144, %v1154
        %v1163 = vadd.f32 %v1145, %v1155
        %v1164 = vadd.f32 %v1146, %v1156
        %v1165 = vadd.f32 %v1147, %v1157
        %v1166 = vadd.f32 %v1148, %v1158
        %v1167 = vadd.f32 %v1149, %v1159
        %v1168 = vadd.f32 %v1150, %v1160
        %s1169 = sld [smem:[#allocation12 + $0x9]]
        %v1170 = vstv %s1169
        %v1171 = vmul.f32 %v1170, %v920
        %v1172 = vmul.f32 %v1170, %v921
        %v1173 = vmul.f32 %v1170, %v922
        %v1174 = vmul.f32 %v1170, %v923
        %v1175 = vmul.f32 %v1170, %v924
        %v1176 = vmul.f32 %v1170, %v925
        %v1177 = vmul.f32 %v1170, %v926
        %v1178 = vmul.f32 %v1170, %v927
        %v1179 = vadd.f32 %v1161, %v1171
        %v1180 = vadd.f32 %v1162, %v1172
        %v1181 = vadd.f32 %v1163, %v1173
        %v1182 = vadd.f32 %v1164, %v1174
        %v1183 = vadd.f32 %v1165, %v1175
        %v1184 = vadd.f32 %v1166, %v1176
        %v1185 = vadd.f32 %v1167, %v1177
        %v1186 = vadd.f32 %v1168, %v1178
        %s1187 = sld [smem:[#allocation12 + $0xa]]
        %v1188 = vstv %s1187
        %v1189 = vmul.f32 %v1188, %v928
        %v1190 = vmul.f32 %v1188, %v929
        %v1191 = vmul.f32 %v1188, %v930
        %v1192 = vmul.f32 %v1188, %v931
        %v1193 = vmul.f32 %v1188, %v932
        %v1194 = vmul.f32 %v1188, %v933
        %v1195 = vmul.f32 %v1188, %v934
        %v1196 = vmul.f32 %v1188, %v935
        %v1197 = vadd.f32 %v1179, %v1189
        %v1198 = vadd.f32 %v1180, %v1190
        %v1199 = vadd.f32 %v1181, %v1191
        %v1200 = vadd.f32 %v1182, %v1192
        %v1201 = vadd.f32 %v1183, %v1193
        %v1202 = vadd.f32 %v1184, %v1194
        %v1203 = vadd.f32 %v1185, %v1195
        %v1204 = vadd.f32 %v1186, %v1196
        %s1205 = sld [smem:[#allocation12 + $0xb]]
        %v1206 = vstv %s1205
        %v1207 = vmul.f32 %v1206, %v936
        %v1208 = vmul.f32 %v1206, %v937
        %v1209 = vmul.f32 %v1206, %v938
        %v1210 = vmul.f32 %v1206, %v939
        %v1211 = vmul.f32 %v1206, %v940
        %v1212 = vmul.f32 %v1206, %v941
        %v1213 = vmul.f32 %v1206, %v942
        %v1214 = vmul.f32 %v1206, %v943
        %v1215 = vadd.f32 %v1197, %v1207
        %v1216 = vadd.f32 %v1198, %v1208
        %v1217 = vadd.f32 %v1199, %v1209
        %v1218 = vadd.f32 %v1200, %v1210
        %v1219 = vadd.f32 %v1201, %v1211
        %v1220 = vadd.f32 %v1202, %v1212
        %v1221 = vadd.f32 %v1203, %v1213
        %v1222 = vadd.f32 %v1204, %v1214
        %1223 = vst [vmem:[#allocation6] sm:$0xff] %v1215
        %1224 = vst [vmem:[#allocation6 + $0x8] sm:$0xff] %v1216
        %1225 = vst [vmem:[#allocation6 + $0x10] sm:$0xff] %v1217
        %1226 = vst [vmem:[#allocation6 + $0x18] sm:$0xff] %v1218
        %1227 = vst [vmem:[#allocation6 + $0x20] sm:$0xff] %v1219
        %1228 = vst [vmem:[#allocation6 + $0x28] sm:$0xff] %v1220
        %1229 = vst [vmem:[#allocation6 + $0x30] sm:$0xff] %v1221
        %1230 = vst [vmem:[#allocation6 + $0x38] sm:$0xff] %v1222
        %v1231 = vld [vmem:[#allocation6] ss:$2 sm:$0xff]
        %s1232 = scalar_lea.vmem [#allocation6], 16
        %v1233 = vld [vmem:[%s1232] ss:$2 sm:$0xff]
        %s1234 = scalar_lea.vmem [#allocation6], 32
        %v1235 = vld [vmem:[%s1234] ss:$2 sm:$0xff]
        %s1236 = scalar_lea.vmem [#allocation6], 48
        %v1237 = vld [vmem:[%s1236] ss:$2 sm:$0xff]
        %v1238 = vld [vmem:[%s739] ss:$2 sm:$0xff]
        %v1239 = vld [vmem:[%s741] ss:$2 sm:$0xff]
        %v1240 = vld [vmem:[%s743] ss:$2 sm:$0xff]
        %v1241 = vld [vmem:[%s745] ss:$2 sm:$0xff]
        %v1242 = vmax.f32 %v1231, %v1238
        %v1243 = vmax.f32 %v1233, %v1239
        %v1244 = vmax.f32 %v1235, %v1240
        %v1245 = vmax.f32 %v1237, %v1241
        %vm1246 = vcmp.gt.f32.partialorder %v1242, 20.0
        %vm1247 = vcmp.gt.f32.partialorder %v1243, 20.0
        %vm1248 = vcmp.gt.f32.partialorder %v1244, 20.0
        %vm1249 = vcmp.gt.f32.partialorder %v1245, 20.0
        %v1250 = vmin.f32 %v1242, 20.0
        %v1251 = vmin.f32 %v1243, 20.0
        %v1252 = vmin.f32 %v1244, 20.0
        %v1253 = vmin.f32 %v1245, 20.0
        %v1254 = vmul.f32 %v1250, 1.442695
        %v1255 = vpow.pop %v1254
        %v1256 = vmul.f32 %v1251, 1.442695
        %v1257 = vpow.pop %v1256
        %v1258 = vmul.f32 %v1252, 1.442695
        %v1259 = vpow.pop %v1258
        %v1260 = vmul.f32 %v1253, 1.442695
        %v1261 = vpow.pop %v1260
        %v1262 = vadd.f32 %v1255, 1.0
        %v1263 = vlog2.pop %v1262
        %v1264 = vmul.f32 %v1263, 0.6931472
        %v1265 = vmul.f32 -0.5, %v1255
        %v1266 = vadd.f32 %v1265, 1.0
        %v1267 = vmul.f32 %v1266, %v1255
        %v1268 = vand.u32 2147483647, %v1255
        %vm1269 = vcmp.lt.f32.partialorder %v1268, 0.0004427343
        %v1270 = vsel %vm1269, %v1267, %v1264
        %v1271 = vadd.f32 %v1257, 1.0
        %v1272 = vlog2.pop %v1271
        %v1273 = vmul.f32 %v1272, 0.6931472
        %v1274 = vmul.f32 -0.5, %v1257
        %v1275 = vadd.f32 %v1274, 1.0
        %v1276 = vmul.f32 %v1275, %v1257
        %v1277 = vand.u32 2147483647, %v1257
        %vm1278 = vcmp.lt.f32.partialorder %v1277, 0.0004427343
        %v1279 = vsel %vm1278, %v1276, %v1273
        %v1280 = vadd.f32 %v1259, 1.0
        %v1281 = vlog2.pop %v1280
        %v1282 = vmul.f32 %v1281, 0.6931472
        %v1283 = vmul.f32 -0.5, %v1259
        %v1284 = vadd.f32 %v1283, 1.0
        %v1285 = vmul.f32 %v1284, %v1259
        %v1286 = vand.u32 2147483647, %v1259
        %vm1287 = vcmp.lt.f32.partialorder %v1286, 0.0004427343
        %v1288 = vsel %vm1287, %v1285, %v1282
        %v1289 = vadd.f32 %v1261, 1.0
        %v1290 = vlog2.pop %v1289
        %v1291 = vmul.f32 %v1290, 0.6931472
        %v1292 = vmul.f32 -0.5, %v1261
        %v1293 = vadd.f32 %v1292, 1.0
        %v1294 = vmul.f32 %v1293, %v1261
        %v1295 = vand.u32 2147483647, %v1261
        %vm1296 = vcmp.lt.f32.partialorder %v1295, 0.0004427343
        %v1297 = vsel %vm1296, %v1294, %v1291
        %v1298 = vsel %vm1246, %v1242, %v1270
        %v1299 = vsel %vm1247, %v1243, %v1279
        %v1300 = vsel %vm1248, %v1244, %v1288
        %v1301 = vsel %vm1249, %v1245, %v1297
        %s1302 = sld [smem:[#allocation12 + $0xc]]
        %v1303 = vstv %s1302
        %v1304 = vmul.f32 %v1303, %v896
        %v1305 = vmul.f32 %v1303, %v897
        %v1306 = vmul.f32 %v1303, %v898
        %v1307 = vmul.f32 %v1303, %v899
        %v1308 = vmul.f32 %v1303, %v900
        %v1309 = vmul.f32 %v1303, %v901
        %v1310 = vmul.f32 %v1303, %v902
        %v1311 = vmul.f32 %v1303, %v903
        %s1312 = sld [smem:[#allocation12 + $0xd]]
        %v1313 = vstv %s1312
        %v1314 = vmul.f32 %v1313, %v904
        %v1315 = vmul.f32 %v1313, %v905
        %v1316 = vmul.f32 %v1313, %v906
        %v1317 = vmul.f32 %v1313, %v907
        %v1318 = vmul.f32 %v1313, %v908
        %v1319 = vmul.f32 %v1313, %v909
        %v1320 = vmul.f32 %v1313, %v910
        %v1321 = vmul.f32 %v1313, %v911
        %v1322 = vadd.f32 %v1304, %v1314
        %v1323 = vadd.f32 %v1305, %v1315
        %v1324 = vadd.f32 %v1306, %v1316
        %v1325 = vadd.f32 %v1307, %v1317
        %v1326 = vadd.f32 %v1308, %v1318
        %v1327 = vadd.f32 %v1309, %v1319
        %v1328 = vadd.f32 %v1310, %v1320
        %v1329 = vadd.f32 %v1311, %v1321
        %s1330 = sld [smem:[#allocation12 + $0xe]]
        %v1331 = vstv %s1330
        %v1332 = vmul.f32 %v1331, %v912
        %v1333 = vmul.f32 %v1331, %v913
        %v1334 = vmul.f32 %v1331, %v914
        %v1335 = vmul.f32 %v1331, %v915
        %v1336 = vmul.f32 %v1331, %v916
        %v1337 = vmul.f32 %v1331, %v917
        %v1338 = vmul.f32 %v1331, %v918
        %v1339 = vmul.f32 %v1331, %v919
        %v1340 = vadd.f32 %v1322, %v1332
        %v1341 = vadd.f32 %v1323, %v1333
        %v1342 = vadd.f32 %v1324, %v1334
        %v1343 = vadd.f32 %v1325, %v1335
        %v1344 = vadd.f32 %v1326, %v1336
        %v1345 = vadd.f32 %v1327, %v1337
        %v1346 = vadd.f32 %v1328, %v1338
        %v1347 = vadd.f32 %v1329, %v1339
        %s1348 = sld [smem:[#allocation12 + $0xf]]
        %v1349 = vstv %s1348
        %v1350 = vmul.f32 %v1349, %v920
        %v1351 = vmul.f32 %v1349, %v921
        %v1352 = vmul.f32 %v1349, %v922
        %v1353 = vmul.f32 %v1349, %v923
        %v1354 = vmul.f32 %v1349, %v924
        %v1355 = vmul.f32 %v1349, %v925
        %v1356 = vmul.f32 %v1349, %v926
        %v1357 = vmul.f32 %v1349, %v927
        %v1358 = vadd.f32 %v1340, %v1350
        %v1359 = vadd.f32 %v1341, %v1351
        %v1360 = vadd.f32 %v1342, %v1352
        %v1361 = vadd.f32 %v1343, %v1353
        %v1362 = vadd.f32 %v1344, %v1354
        %v1363 = vadd.f32 %v1345, %v1355
        %v1364 = vadd.f32 %v1346, %v1356
        %v1365 = vadd.f32 %v1347, %v1357
        %s1366 = sld [smem:[#allocation12 + $0x10]]
        %v1367 = vstv %s1366
        %v1368 = vmul.f32 %v1367, %v928
        %v1369 = vmul.f32 %v1367, %v929
        %v1370 = vmul.f32 %v1367, %v930
        %v1371 = vmul.f32 %v1367, %v931
        %v1372 = vmul.f32 %v1367, %v932
        %v1373 = vmul.f32 %v1367, %v933
        %v1374 = vmul.f32 %v1367, %v934
        %v1375 = vmul.f32 %v1367, %v935
        %v1376 = vadd.f32 %v1358, %v1368
        %v1377 = vadd.f32 %v1359, %v1369
        %v1378 = vadd.f32 %v1360, %v1370
        %v1379 = vadd.f32 %v1361, %v1371
        %v1380 = vadd.f32 %v1362, %v1372
        %v1381 = vadd.f32 %v1363, %v1373
        %v1382 = vadd.f32 %v1364, %v1374
        %v1383 = vadd.f32 %v1365, %v1375
        %s1384 = sld [smem:[#allocation12 + $0x11]]
        %v1385 = vstv %s1384
        %v1386 = vmul.f32 %v1385, %v936
        %v1387 = vmul.f32 %v1385, %v937
        %v1388 = vmul.f32 %v1385, %v938
        %v1389 = vmul.f32 %v1385, %v939
        %v1390 = vmul.f32 %v1385, %v940
        %v1391 = vmul.f32 %v1385, %v941
        %v1392 = vmul.f32 %v1385, %v942
        %v1393 = vmul.f32 %v1385, %v943
        %v1394 = vadd.f32 %v1376, %v1386
        %v1395 = vadd.f32 %v1377, %v1387
        %v1396 = vadd.f32 %v1378, %v1388
        %v1397 = vadd.f32 %v1379, %v1389
        %v1398 = vadd.f32 %v1380, %v1390
        %v1399 = vadd.f32 %v1381, %v1391
        %v1400 = vadd.f32 %v1382, %v1392
        %v1401 = vadd.f32 %v1383, %v1393
        %1402 = vst [vmem:[#allocation5] sm:$0xff] %v1394
        %1403 = vst [vmem:[#allocation5 + $0x8] sm:$0xff] %v1395
        %1404 = vst [vmem:[#allocation5 + $0x10] sm:$0xff] %v1396
        %1405 = vst [vmem:[#allocation5 + $0x18] sm:$0xff] %v1397
        %1406 = vst [vmem:[#allocation5 + $0x20] sm:$0xff] %v1398
        %1407 = vst [vmem:[#allocation5 + $0x28] sm:$0xff] %v1399
        %1408 = vst [vmem:[#allocation5 + $0x30] sm:$0xff] %v1400
        %1409 = vst [vmem:[#allocation5 + $0x38] sm:$0xff] %v1401
        %v1410 = vld [vmem:[#allocation5] ss:$2 sm:$0xff]
        %v1411 = vld [vmem:[%s1053] ss:$2 sm:$0xff]
        %v1412 = vld [vmem:[%s1055] ss:$2 sm:$0xff]
        %v1413 = vld [vmem:[%s1057] ss:$2 sm:$0xff]
        %v1414 = vld [vmem:[%s486] ss:$2 sm:$0xff]
        %v1415 = vld [vmem:[%s488] ss:$2 sm:$0xff]
        %v1416 = vld [vmem:[%s490] ss:$2 sm:$0xff]
        %v1417 = vld [vmem:[%s492] ss:$2 sm:$0xff]
        %v1418 = vmax.f32 %v1410, %v1414
        %v1419 = vmax.f32 %v1411, %v1415
        %v1420 = vmax.f32 %v1412, %v1416
        %v1421 = vmax.f32 %v1413, %v1417
        %vm1422 = vcmp.gt.f32.partialorder %v1418, 20.0
        %vm1423 = vcmp.gt.f32.partialorder %v1419, 20.0
        %vm1424 = vcmp.gt.f32.partialorder %v1420, 20.0
        %vm1425 = vcmp.gt.f32.partialorder %v1421, 20.0
        %v1426 = vmin.f32 %v1418, 20.0
        %v1427 = vmin.f32 %v1419, 20.0
        %v1428 = vmin.f32 %v1420, 20.0
        %v1429 = vmin.f32 %v1421, 20.0
        %v1430 = vmul.f32 %v1426, 1.442695
        %v1431 = vpow.pop %v1430
        %v1432 = vmul.f32 %v1427, 1.442695
        %v1433 = vpow.pop %v1432
        %v1434 = vmul.f32 %v1428, 1.442695
        %v1435 = vpow.pop %v1434
        %v1436 = vmul.f32 %v1429, 1.442695
        %v1437 = vpow.pop %v1436
        %v1438 = vadd.f32 %v1431, 1.0
        %v1439 = vlog2.pop %v1438
        %v1440 = vmul.f32 %v1439, 0.6931472
        %v1441 = vmul.f32 -0.5, %v1431
        %v1442 = vadd.f32 %v1441, 1.0
        %v1443 = vmul.f32 %v1442, %v1431
        %v1444 = vand.u32 2147483647, %v1431
        %vm1445 = vcmp.lt.f32.partialorder %v1444, 0.0004427343
        %v1446 = vsel %vm1445, %v1443, %v1440
        %v1447 = vadd.f32 %v1433, 1.0
        %v1448 = vlog2.pop %v1447
        %v1449 = vmul.f32 %v1448, 0.6931472
        %v1450 = vmul.f32 -0.5, %v1433
        %v1451 = vadd.f32 %v1450, 1.0
        %v1452 = vmul.f32 %v1451, %v1433
        %v1453 = vand.u32 2147483647, %v1433
        %vm1454 = vcmp.lt.f32.partialorder %v1453, 0.0004427343
        %v1455 = vsel %vm1454, %v1452, %v1449
        %v1456 = vadd.f32 %v1435, 1.0
        %v1457 = vlog2.pop %v1456
        %v1458 = vmul.f32 %v1457, 0.6931472
        %v1459 = vmul.f32 -0.5, %v1435
        %v1460 = vadd.f32 %v1459, 1.0
        %v1461 = vmul.f32 %v1460, %v1435
        %v1462 = vand.u32 2147483647, %v1435
        %vm1463 = vcmp.lt.f32.partialorder %v1462, 0.0004427343
        %v1464 = vsel %vm1463, %v1461, %v1458
        %v1465 = vadd.f32 %v1437, 1.0
        %v1466 = vlog2.pop %v1465
        %v1467 = vmul.f32 %v1466, 0.6931472
        %v1468 = vmul.f32 -0.5, %v1437
        %v1469 = vadd.f32 %v1468, 1.0
        %v1470 = vmul.f32 %v1469, %v1437
        %v1471 = vand.u32 2147483647, %v1437
        %vm1472 = vcmp.lt.f32.partialorder %v1471, 0.0004427343
        %v1473 = vsel %vm1472, %v1470, %v1467
        %v1474 = vsel %vm1422, %v1418, %v1446
        %v1475 = vsel %vm1423, %v1419, %v1455
        %v1476 = vsel %vm1424, %v1420, %v1464
        %v1477 = vsel %vm1425, %v1421, %v1473
        %s1478 = sld [smem:[#allocation12 + $0x12]]
        %v1479 = vstv %s1478
        %v1480 = vmul.f32 %v1479, %v896
        %v1481 = vmul.f32 %v1479, %v897
        %v1482 = vmul.f32 %v1479, %v898
        %v1483 = vmul.f32 %v1479, %v899
        %v1484 = vmul.f32 %v1479, %v900
        %v1485 = vmul.f32 %v1479, %v901
        %v1486 = vmul.f32 %v1479, %v902
        %v1487 = vmul.f32 %v1479, %v903
        %s1488 = sld [smem:[#allocation12 + $0x13]]
        %v1489 = vstv %s1488
        %v1490 = vmul.f32 %v1489, %v904
        %v1491 = vmul.f32 %v1489, %v905
        %v1492 = vmul.f32 %v1489, %v906
        %v1493 = vmul.f32 %v1489, %v907
        %v1494 = vmul.f32 %v1489, %v908
        %v1495 = vmul.f32 %v1489, %v909
        %v1496 = vmul.f32 %v1489, %v910
        %v1497 = vmul.f32 %v1489, %v911
        %v1498 = vadd.f32 %v1480, %v1490
        %v1499 = vadd.f32 %v1481, %v1491
        %v1500 = vadd.f32 %v1482, %v1492
        %v1501 = vadd.f32 %v1483, %v1493
        %v1502 = vadd.f32 %v1484, %v1494
        %v1503 = vadd.f32 %v1485, %v1495
        %v1504 = vadd.f32 %v1486, %v1496
        %v1505 = vadd.f32 %v1487, %v1497
        %s1506 = sld [smem:[#allocation12 + $0x14]]
        %v1507 = vstv %s1506
        %v1508 = vmul.f32 %v1507, %v912
        %v1509 = vmul.f32 %v1507, %v913
        %v1510 = vmul.f32 %v1507, %v914
        %v1511 = vmul.f32 %v1507, %v915
        %v1512 = vmul.f32 %v1507, %v916
        %v1513 = vmul.f32 %v1507, %v917
        %v1514 = vmul.f32 %v1507, %v918
        %v1515 = vmul.f32 %v1507, %v919
        %v1516 = vadd.f32 %v1498, %v1508
        %v1517 = vadd.f32 %v1499, %v1509
        %v1518 = vadd.f32 %v1500, %v1510
        %v1519 = vadd.f32 %v1501, %v1511
        %v1520 = vadd.f32 %v1502, %v1512
        %v1521 = vadd.f32 %v1503, %v1513
        %v1522 = vadd.f32 %v1504, %v1514
        %v1523 = vadd.f32 %v1505, %v1515
        %s1524 = sld [smem:[#allocation12 + $0x15]]
        %v1525 = vstv %s1524
        %v1526 = vmul.f32 %v1525, %v920
        %v1527 = vmul.f32 %v1525, %v921
        %v1528 = vmul.f32 %v1525, %v922
        %v1529 = vmul.f32 %v1525, %v923
        %v1530 = vmul.f32 %v1525, %v924
        %v1531 = vmul.f32 %v1525, %v925
        %v1532 = vmul.f32 %v1525, %v926
        %v1533 = vmul.f32 %v1525, %v927
        %v1534 = vadd.f32 %v1516, %v1526
        %v1535 = vadd.f32 %v1517, %v1527
        %v1536 = vadd.f32 %v1518, %v1528
        %v1537 = vadd.f32 %v1519, %v1529
        %v1538 = vadd.f32 %v1520, %v1530
        %v1539 = vadd.f32 %v1521, %v1531
        %v1540 = vadd.f32 %v1522, %v1532
        %v1541 = vadd.f32 %v1523, %v1533
        %s1542 = sld [smem:[#allocation12 + $0x16]]
        %v1543 = vstv %s1542
        %v1544 = vmul.f32 %v1543, %v928
        %v1545 = vmul.f32 %v1543, %v929
        %v1546 = vmul.f32 %v1543, %v930
        %v1547 = vmul.f32 %v1543, %v931
        %v1548 = vmul.f32 %v1543, %v932
        %v1549 = vmul.f32 %v1543, %v933
        %v1550 = vmul.f32 %v1543, %v934
        %v1551 = vmul.f32 %v1543, %v935
        %v1552 = vadd.f32 %v1534, %v1544
        %v1553 = vadd.f32 %v1535, %v1545
        %v1554 = vadd.f32 %v1536, %v1546
        %v1555 = vadd.f32 %v1537, %v1547
        %v1556 = vadd.f32 %v1538, %v1548
        %v1557 = vadd.f32 %v1539, %v1549
        %v1558 = vadd.f32 %v1540, %v1550
        %v1559 = vadd.f32 %v1541, %v1551
        %s1560 = sld [smem:[#allocation12 + $0x17]]
        %v1561 = vstv %s1560
        %v1562 = vmul.f32 %v1561, %v936
        %v1563 = vmul.f32 %v1561, %v937
        %v1564 = vmul.f32 %v1561, %v938
        %v1565 = vmul.f32 %v1561, %v939
        %v1566 = vmul.f32 %v1561, %v940
        %v1567 = vmul.f32 %v1561, %v941
        %v1568 = vmul.f32 %v1561, %v942
        %v1569 = vmul.f32 %v1561, %v943
        %v1570 = vadd.f32 %v1552, %v1562
        %v1571 = vadd.f32 %v1553, %v1563
        %v1572 = vadd.f32 %v1554, %v1564
        %v1573 = vadd.f32 %v1555, %v1565
        %v1574 = vadd.f32 %v1556, %v1566
        %v1575 = vadd.f32 %v1557, %v1567
        %v1576 = vadd.f32 %v1558, %v1568
        %v1577 = vadd.f32 %v1559, %v1569
        %1578 = vst [vmem:[#allocation6] sm:$0xff] %v1570
        %1579 = vst [vmem:[#allocation6 + $0x8] sm:$0xff] %v1571
        %1580 = vst [vmem:[#allocation6 + $0x10] sm:$0xff] %v1572
        %1581 = vst [vmem:[#allocation6 + $0x18] sm:$0xff] %v1573
        %1582 = vst [vmem:[#allocation6 + $0x20] sm:$0xff] %v1574
        %1583 = vst [vmem:[#allocation6 + $0x28] sm:$0xff] %v1575
        %1584 = vst [vmem:[#allocation6 + $0x30] sm:$0xff] %v1576
        %1585 = vst [vmem:[#allocation6 + $0x38] sm:$0xff] %v1577
        %v1586 = vld [vmem:[#allocation6] ss:$2 sm:$0xff]
        %v1587 = vld [vmem:[%s1232] ss:$2 sm:$0xff]
        %v1588 = vld [vmem:[%s1234] ss:$2 sm:$0xff]
        %v1589 = vld [vmem:[%s1236] ss:$2 sm:$0xff]
        %v1590 = vld [vmem:[%s739] ss:$2 sm:$0xff]
        %v1591 = vld [vmem:[%s741] ss:$2 sm:$0xff]
        %v1592 = vld [vmem:[%s743] ss:$2 sm:$0xff]
        %v1593 = vld [vmem:[%s745] ss:$2 sm:$0xff]
        %v1594 = vmax.f32 %v1586, %v1590
        %v1595 = vmax.f32 %v1587, %v1591
        %v1596 = vmax.f32 %v1588, %v1592
        %v1597 = vmax.f32 %v1589, %v1593
        %vm1598 = vcmp.gt.f32.partialorder %v1594, 20.0
        %vm1599 = vcmp.gt.f32.partialorder %v1595, 20.0
        %vm1600 = vcmp.gt.f32.partialorder %v1596, 20.0
        %vm1601 = vcmp.gt.f32.partialorder %v1597, 20.0
        %v1602 = vmin.f32 %v1594, 20.0
        %v1603 = vmin.f32 %v1595, 20.0
        %v1604 = vmin.f32 %v1596, 20.0
        %v1605 = vmin.f32 %v1597, 20.0
        %v1606 = vmul.f32 %v1602, 1.442695
        %v1607 = vpow.pop %v1606
        %v1608 = vmul.f32 %v1603, 1.442695
        %v1609 = vpow.pop %v1608
        %v1610 = vmul.f32 %v1604, 1.442695
        %v1611 = vpow.pop %v1610
        %v1612 = vmul.f32 %v1605, 1.442695
        %v1613 = vpow.pop %v1612
        %v1614 = vadd.f32 %v1607, 1.0
        %v1615 = vlog2.pop %v1614
        %v1616 = vmul.f32 %v1615, 0.6931472
        %v1617 = vmul.f32 -0.5, %v1607
        %v1618 = vadd.f32 %v1617, 1.0
        %v1619 = vmul.f32 %v1618, %v1607
        %v1620 = vand.u32 2147483647, %v1607
        %vm1621 = vcmp.lt.f32.partialorder %v1620, 0.0004427343
        %v1622 = vsel %vm1621, %v1619, %v1616
        %v1623 = vadd.f32 %v1609, 1.0
        %v1624 = vlog2.pop %v1623
        %v1625 = vmul.f32 %v1624, 0.6931472
        %v1626 = vmul.f32 -0.5, %v1609
        %v1627 = vadd.f32 %v1626, 1.0
        %v1628 = vmul.f32 %v1627, %v1609
        %v1629 = vand.u32 2147483647, %v1609
        %vm1630 = vcmp.lt.f32.partialorder %v1629, 0.0004427343
        %v1631 = vsel %vm1630, %v1628, %v1625
        %v1632 = vadd.f32 %v1611, 1.0
        %v1633 = vlog2.pop %v1632
        %v1634 = vmul.f32 %v1633, 0.6931472
        %v1635 = vmul.f32 -0.5, %v1611
        %v1636 = vadd.f32 %v1635, 1.0
        %v1637 = vmul.f32 %v1636, %v1611
        %v1638 = vand.u32 2147483647, %v1611
        %vm1639 = vcmp.lt.f32.partialorder %v1638, 0.0004427343
        %v1640 = vsel %vm1639, %v1637, %v1634
        %v1641 = vadd.f32 %v1613, 1.0
        %v1642 = vlog2.pop %v1641
        %v1643 = vmul.f32 %v1642, 0.6931472
        %v1644 = vmul.f32 -0.5, %v1613
        %v1645 = vadd.f32 %v1644, 1.0
        %v1646 = vmul.f32 %v1645, %v1613
        %v1647 = vand.u32 2147483647, %v1613
        %vm1648 = vcmp.lt.f32.partialorder %v1647, 0.0004427343
        %v1649 = vsel %vm1648, %v1646, %v1643
        %v1650 = vsel %vm1598, %v1594, %v1622
        %v1651 = vsel %vm1599, %v1595, %v1631
        %v1652 = vsel %vm1600, %v1596, %v1640
        %v1653 = vsel %vm1601, %v1597, %v1649
        %1654 = vst [vmem:[#allocation4] sm:$0x1] 0.0
        %1655 = vst [vmem:[#allocation4 + $0x1] sm:$0xff] %v1119
        %1656 = vst [vmem:[#allocation4 + $0x9] sm:$0xff] %v1120
        %1657 = vst [vmem:[#allocation4 + $0x11] sm:$0xff] %v1121
        %1658 = vst [vmem:[#allocation4 + $0x19] sm:$0xff] %v1122
        %1659 = vst [vmem:[#allocation4 + $0x21] sm:$0x1] 0.0
        %s1660 = scalar_lea.vmem [#allocation4], 40
        %1661 = vst [vmem:[%s1660] sm:$0x1] 0.0
        %1662 = vst [vmem:[%s1660 + $0x1] sm:$0xff] %v1298
        %1663 = vst [vmem:[%s1660 + $0x9] sm:$0xff] %v1299
        %1664 = vst [vmem:[%s1660 + $0x11] sm:$0xff] %v1300
        %1665 = vst [vmem:[%s1660 + $0x19] sm:$0xff] %v1301
        %1666 = vst [vmem:[%s1660 + $0x21] sm:$0x1] 0.0
        %s1667 = scalar_lea.vmem [#allocation4], 80
        %1668 = vst [vmem:[%s1667] sm:$0x1] 0.0
        %1669 = vst [vmem:[%s1667 + $0x1] sm:$0xff] %v1474
        %1670 = vst [vmem:[%s1667 + $0x9] sm:$0xff] %v1475
        %1671 = vst [vmem:[%s1667 + $0x11] sm:$0xff] %v1476
        %1672 = vst [vmem:[%s1667 + $0x19] sm:$0xff] %v1477
        %1673 = vst [vmem:[%s1667 + $0x21] sm:$0x1] 0.0
        %s1674 = scalar_lea.vmem [#allocation4], 120
        %1675 = vst [vmem:[%s1674] sm:$0x1] 0.0
        %1676 = vst [vmem:[%s1674 + $0x1] sm:$0xff] %v1650
        %1677 = vst [vmem:[%s1674 + $0x9] sm:$0xff] %v1651
        %1678 = vst [vmem:[%s1674 + $0x11] sm:$0xff] %v1652
        %1679 = vst [vmem:[%s1674 + $0x19] sm:$0xff] %v1653
        %1680 = vst [vmem:[%s1674 + $0x21] sm:$0x1] 0.0
        %v1681 = vld [vmem:[#allocation4] sm:$0xff]
        %v1682 = vld [vmem:[#allocation4 + $0x8] sm:$0xff]
        %v1683 = vld [vmem:[#allocation4 + $0x10] sm:$0xff]
        %v1684 = vld [vmem:[#allocation4 + $0x18] sm:$0xff]
        %v1685 = vld [vmem:[#allocation4 + $0x1] sm:$0xff]
        %v1686 = vld [vmem:[#allocation4 + $0x9] sm:$0xff]
        %v1687 = vld [vmem:[#allocation4 + $0x11] sm:$0xff]
        %v1688 = vld [vmem:[#allocation4 + $0x19] sm:$0xff]
        %v1689 = vld [vmem:[#allocation4 + $0x2] sm:$0xff]
        %v1690 = vld [vmem:[#allocation4 + $0xa] sm:$0xff]
        %v1691 = vld [vmem:[#allocation4 + $0x12] sm:$0xff]
        %v1692 = vld [vmem:[#allocation4 + $0x1a] sm:$0xff]
        %v1693 = vld [vmem:[%s1660] sm:$0xff]
        %v1694 = vld [vmem:[%s1660 + $0x8] sm:$0xff]
        %v1695 = vld [vmem:[%s1660 + $0x10] sm:$0xff]
        %v1696 = vld [vmem:[%s1660 + $0x18] sm:$0xff]
        %v1697 = vld [vmem:[%s1660 + $0x1] sm:$0xff]
        %v1698 = vld [vmem:[%s1660 + $0x9] sm:$0xff]
        %v1699 = vld [vmem:[%s1660 + $0x11] sm:$0xff]
        %v1700 = vld [vmem:[%s1660 + $0x19] sm:$0xff]
        %v1701 = vld [vmem:[%s1660 + $0x2] sm:$0xff]
        %v1702 = vld [vmem:[%s1660 + $0xa] sm:$0xff]
        %v1703 = vld [vmem:[%s1660 + $0x12] sm:$0xff]
        %v1704 = vld [vmem:[%s1660 + $0x1a] sm:$0xff]
        %v1705 = vld [vmem:[%s1667] sm:$0xff]
        %v1706 = vld [vmem:[%s1667 + $0x8] sm:$0xff]
        %v1707 = vld [vmem:[%s1667 + $0x10] sm:$0xff]
        %v1708 = vld [vmem:[%s1667 + $0x18] sm:$0xff]
        %v1709 = vld [vmem:[%s1667 + $0x1] sm:$0xff]
        %v1710 = vld [vmem:[%s1667 + $0x9] sm:$0xff]
        %v1711 = vld [vmem:[%s1667 + $0x11] sm:$0xff]
        %v1712 = vld [vmem:[%s1667 + $0x19] sm:$0xff]
        %v1713 = vld [vmem:[%s1667 + $0x2] sm:$0xff]
        %v1714 = vld [vmem:[%s1667 + $0xa] sm:$0xff]
        %v1715 = vld [vmem:[%s1667 + $0x12] sm:$0xff]
        %v1716 = vld [vmem:[%s1667 + $0x1a] sm:$0xff]
        %v1717 = vld [vmem:[%s1674] sm:$0xff]
        %v1718 = vld [vmem:[%s1674 + $0x8] sm:$0xff]
        %v1719 = vld [vmem:[%s1674 + $0x10] sm:$0xff]
        %v1720 = vld [vmem:[%s1674 + $0x18] sm:$0xff]
        %v1721 = vld [vmem:[%s1674 + $0x1] sm:$0xff]
        %v1722 = vld [vmem:[%s1674 + $0x9] sm:$0xff]
        %v1723 = vld [vmem:[%s1674 + $0x11] sm:$0xff]
        %v1724 = vld [vmem:[%s1674 + $0x19] sm:$0xff]
        %v1725 = vld [vmem:[%s1674 + $0x2] sm:$0xff]
        %v1726 = vld [vmem:[%s1674 + $0xa] sm:$0xff]
        %v1727 = vld [vmem:[%s1674 + $0x12] sm:$0xff]
        %v1728 = vld [vmem:[%s1674 + $0x1a] sm:$0xff]
        %s1729 = sld [smem:[#allocation14]]
        %v1730 = vstv %s1729
        %v1731 = vmul.f32 %v1730, %v1681
        %v1732 = vmul.f32 %v1730, %v1682
        %v1733 = vmul.f32 %v1730, %v1683
        %v1734 = vmul.f32 %v1730, %v1684
        %s1735 = sld [smem:[#allocation14 + $0x1]]
        %v1736 = vstv %s1735
        %v1737 = vmul.f32 %v1736, %v1685
        %v1738 = vmul.f32 %v1736, %v1686
        %v1739 = vmul.f32 %v1736, %v1687
        %v1740 = vmul.f32 %v1736, %v1688
        %v1741 = vadd.f32 %v1731, %v1737
        %v1742 = vadd.f32 %v1732, %v1738
        %v1743 = vadd.f32 %v1733, %v1739
        %v1744 = vadd.f32 %v1734, %v1740
        %s1745 = sld [smem:[#allocation14 + $0x2]]
        %v1746 = vstv %s1745
        %v1747 = vmul.f32 %v1746, %v1689
        %v1748 = vmul.f32 %v1746, %v1690
        %v1749 = vmul.f32 %v1746, %v1691
        %v1750 = vmul.f32 %v1746, %v1692
        %v1751 = vadd.f32 %v1741, %v1747
        %v1752 = vadd.f32 %v1742, %v1748
        %v1753 = vadd.f32 %v1743, %v1749
        %v1754 = vadd.f32 %v1744, %v1750
        %s1755 = sld [smem:[#allocation14 + $0x3]]
        %v1756 = vstv %s1755
        %v1757 = vmul.f32 %v1756, %v1693
        %v1758 = vmul.f32 %v1756, %v1694
        %v1759 = vmul.f32 %v1756, %v1695
        %v1760 = vmul.f32 %v1756, %v1696
        %v1761 = vadd.f32 %v1751, %v1757
        %v1762 = vadd.f32 %v1752, %v1758
        %v1763 = vadd.f32 %v1753, %v1759
        %v1764 = vadd.f32 %v1754, %v1760
        %s1765 = sld [smem:[#allocation14 + $0x4]]
        %v1766 = vstv %s1765
        %v1767 = vmul.f32 %v1766, %v1697
        %v1768 = vmul.f32 %v1766, %v1698
        %v1769 = vmul.f32 %v1766, %v1699
        %v1770 = vmul.f32 %v1766, %v1700
        %v1771 = vadd.f32 %v1761, %v1767
        %v1772 = vadd.f32 %v1762, %v1768
        %v1773 = vadd.f32 %v1763, %v1769
        %v1774 = vadd.f32 %v1764, %v1770
        %s1775 = sld [smem:[#allocation14 + $0x5]]
        %v1776 = vstv %s1775
        %v1777 = vmul.f32 %v1776, %v1701
        %v1778 = vmul.f32 %v1776, %v1702
        %v1779 = vmul.f32 %v1776, %v1703
        %v1780 = vmul.f32 %v1776, %v1704
        %v1781 = vadd.f32 %v1771, %v1777
        %v1782 = vadd.f32 %v1772, %v1778
        %v1783 = vadd.f32 %v1773, %v1779
        %v1784 = vadd.f32 %v1774, %v1780
        %s1785 = sld [smem:[#allocation14 + $0x6]]
        %v1786 = vstv %s1785
        %v1787 = vmul.f32 %v1786, %v1705
        %v1788 = vmul.f32 %v1786, %v1706
        %v1789 = vmul.f32 %v1786, %v1707
        %v1790 = vmul.f32 %v1786, %v1708
        %v1791 = vadd.f32 %v1781, %v1787
        %v1792 = vadd.f32 %v1782, %v1788
        %v1793 = vadd.f32 %v1783, %v1789
        %v1794 = vadd.f32 %v1784, %v1790
        %s1795 = sld [smem:[#allocation14 + $0x7]]
        %v1796 = vstv %s1795
        %v1797 = vmul.f32 %v1796, %v1709
        %v1798 = vmul.f32 %v1796, %v1710
        %v1799 = vmul.f32 %v1796, %v1711
        %v1800 = vmul.f32 %v1796, %v1712
        %v1801 = vadd.f32 %v1791, %v1797
        %v1802 = vadd.f32 %v1792, %v1798
        %v1803 = vadd.f32 %v1793, %v1799
        %v1804 = vadd.f32 %v1794, %v1800
        %s1805 = sld [smem:[#allocation14 + $0x8]]
        %v1806 = vstv %s1805
        %v1807 = vmul.f32 %v1806, %v1713
        %v1808 = vmul.f32 %v1806, %v1714
        %v1809 = vmul.f32 %v1806, %v1715
        %v1810 = vmul.f32 %v1806, %v1716
        %v1811 = vadd.f32 %v1801, %v1807
        %v1812 = vadd.f32 %v1802, %v1808
        %v1813 = vadd.f32 %v1803, %v1809
        %v1814 = vadd.f32 %v1804, %v1810
        %s1815 = sld [smem:[#allocation14 + $0x9]]
        %v1816 = vstv %s1815
        %v1817 = vmul.f32 %v1816, %v1717
        %v1818 = vmul.f32 %v1816, %v1718
        %v1819 = vmul.f32 %v1816, %v1719
        %v1820 = vmul.f32 %v1816, %v1720
        %v1821 = vadd.f32 %v1811, %v1817
        %v1822 = vadd.f32 %v1812, %v1818
        %v1823 = vadd.f32 %v1813, %v1819
        %v1824 = vadd.f32 %v1814, %v1820
        %s1825 = sld [smem:[#allocation14 + $0xa]]
        %v1826 = vstv %s1825
        %v1827 = vmul.f32 %v1826, %v1721
        %v1828 = vmul.f32 %v1826, %v1722
        %v1829 = vmul.f32 %v1826, %v1723
        %v1830 = vmul.f32 %v1826, %v1724
        %v1831 = vadd.f32 %v1821, %v1827
        %v1832 = vadd.f32 %v1822, %v1828
        %v1833 = vadd.f32 %v1823, %v1829
        %v1834 = vadd.f32 %v1824, %v1830
        %s1835 = sld [smem:[#allocation14 + $0xb]]
        %v1836 = vstv %s1835
        %v1837 = vmul.f32 %v1836, %v1725
        %v1838 = vmul.f32 %v1836, %v1726
        %v1839 = vmul.f32 %v1836, %v1727
        %v1840 = vmul.f32 %v1836, %v1728
        %v1841 = vadd.f32 %v1831, %v1837
        %v1842 = vadd.f32 %v1832, %v1838
        %v1843 = vadd.f32 %v1833, %v1839
        %v1844 = vadd.f32 %v1834, %v1840
        %1845 = vst [vmem:[#allocation5] sm:$0xff] %v1841
        %1846 = vst [vmem:[#allocation5 + $0x8] sm:$0xff] %v1842
        %1847 = vst [vmem:[#allocation5 + $0x10] sm:$0xff] %v1843
        %1848 = vst [vmem:[#allocation5 + $0x18] sm:$0xff] %v1844
        %v1849 = vld [vmem:[#allocation5] ss:$2 sm:$0xff]
        %v1850 = vld [vmem:[%s1053] ss:$2 sm:$0xff]
        %v1851 = vld [vmem:[%s486] ss:$2 sm:$0xff]
        %v1852 = vld [vmem:[%s488] ss:$2 sm:$0xff]
        %v1853 = vmax.f32 %v1849, %v1851
        %v1854 = vmax.f32 %v1850, %v1852
        %vm1855 = vcmp.gt.f32.partialorder %v1853, 20.0
        %vm1856 = vcmp.gt.f32.partialorder %v1854, 20.0
        %v1857 = vmin.f32 %v1853, 20.0
        %v1858 = vmin.f32 %v1854, 20.0
        %v1859 = vmul.f32 %v1857, 1.442695
        %v1860 = vpow.pop %v1859
        %v1861 = vmul.f32 %v1858, 1.442695
        %v1862 = vpow.pop %v1861
        %v1863 = vadd.f32 %v1860, 1.0
        %v1864 = vlog2.pop %v1863
        %v1865 = vmul.f32 %v1864, 0.6931472
        %v1866 = vmul.f32 -0.5, %v1860
        %v1867 = vadd.f32 %v1866, 1.0
        %v1868 = vmul.f32 %v1867, %v1860
        %v1869 = vand.u32 2147483647, %v1860
        %vm1870 = vcmp.lt.f32.partialorder %v1869, 0.0004427343
        %v1871 = vsel %vm1870, %v1868, %v1865
        %v1872 = vadd.f32 %v1862, 1.0
        %v1873 = vlog2.pop %v1872
        %v1874 = vmul.f32 %v1873, 0.6931472
        %v1875 = vmul.f32 -0.5, %v1862
        %v1876 = vadd.f32 %v1875, 1.0
        %v1877 = vmul.f32 %v1876, %v1862
        %v1878 = vand.u32 2147483647, %v1862
        %vm1879 = vcmp.lt.f32.partialorder %v1878, 0.0004427343
        %v1880 = vsel %vm1879, %v1877, %v1874
        %v1881 = vsel %vm1855, %v1853, %v1871
        %v1882 = vsel %vm1856, %v1854, %v1880
        %s1883 = sld [smem:[#allocation14 + $0xc]]
        %v1884 = vstv %s1883
        %v1885 = vmul.f32 %v1884, %v1681
        %v1886 = vmul.f32 %v1884, %v1682
        %v1887 = vmul.f32 %v1884, %v1683
        %v1888 = vmul.f32 %v1884, %v1684
        %s1889 = sld [smem:[#allocation14 + $0xd]]
        %v1890 = vstv %s1889
        %v1891 = vmul.f32 %v1890, %v1685
        %v1892 = vmul.f32 %v1890, %v1686
        %v1893 = vmul.f32 %v1890, %v1687
        %v1894 = vmul.f32 %v1890, %v1688
        %v1895 = vadd.f32 %v1885, %v1891
        %v1896 = vadd.f32 %v1886, %v1892
        %v1897 = vadd.f32 %v1887, %v1893
        %v1898 = vadd.f32 %v1888, %v1894
        %s1899 = sld [smem:[#allocation14 + $0xe]]
        %v1900 = vstv %s1899
        %v1901 = vmul.f32 %v1900, %v1689
        %v1902 = vmul.f32 %v1900, %v1690
        %v1903 = vmul.f32 %v1900, %v1691
        %v1904 = vmul.f32 %v1900, %v1692
        %v1905 = vadd.f32 %v1895, %v1901
        %v1906 = vadd.f32 %v1896, %v1902
        %v1907 = vadd.f32 %v1897, %v1903
        %v1908 = vadd.f32 %v1898, %v1904
        %s1909 = sld [smem:[#allocation14 + $0xf]]
        %v1910 = vstv %s1909
        %v1911 = vmul.f32 %v1910, %v1693
        %v1912 = vmul.f32 %v1910, %v1694
        %v1913 = vmul.f32 %v1910, %v1695
        %v1914 = vmul.f32 %v1910, %v1696
        %v1915 = vadd.f32 %v1905, %v1911
        %v1916 = vadd.f32 %v1906, %v1912
        %v1917 = vadd.f32 %v1907, %v1913
        %v1918 = vadd.f32 %v1908, %v1914
        %s1919 = sld [smem:[#allocation14 + $0x10]]
        %v1920 = vstv %s1919
        %v1921 = vmul.f32 %v1920, %v1697
        %v1922 = vmul.f32 %v1920, %v1698
        %v1923 = vmul.f32 %v1920, %v1699
        %v1924 = vmul.f32 %v1920, %v1700
        %v1925 = vadd.f32 %v1915, %v1921
        %v1926 = vadd.f32 %v1916, %v1922
        %v1927 = vadd.f32 %v1917, %v1923
        %v1928 = vadd.f32 %v1918, %v1924
        %s1929 = sld [smem:[#allocation14 + $0x11]]
        %v1930 = vstv %s1929
        %v1931 = vmul.f32 %v1930, %v1701
        %v1932 = vmul.f32 %v1930, %v1702
        %v1933 = vmul.f32 %v1930, %v1703
        %v1934 = vmul.f32 %v1930, %v1704
        %v1935 = vadd.f32 %v1925, %v1931
        %v1936 = vadd.f32 %v1926, %v1932
        %v1937 = vadd.f32 %v1927, %v1933
        %v1938 = vadd.f32 %v1928, %v1934
        %s1939 = sld [smem:[#allocation14 + $0x12]]
        %v1940 = vstv %s1939
        %v1941 = vmul.f32 %v1940, %v1705
        %v1942 = vmul.f32 %v1940, %v1706
        %v1943 = vmul.f32 %v1940, %v1707
        %v1944 = vmul.f32 %v1940, %v1708
        %v1945 = vadd.f32 %v1935, %v1941
        %v1946 = vadd.f32 %v1936, %v1942
        %v1947 = vadd.f32 %v1937, %v1943
        %v1948 = vadd.f32 %v1938, %v1944
        %s1949 = sld [smem:[#allocation14 + $0x13]]
        %v1950 = vstv %s1949
        %v1951 = vmul.f32 %v1950, %v1709
        %v1952 = vmul.f32 %v1950, %v1710
        %v1953 = vmul.f32 %v1950, %v1711
        %v1954 = vmul.f32 %v1950, %v1712
        %v1955 = vadd.f32 %v1945, %v1951
        %v1956 = vadd.f32 %v1946, %v1952
        %v1957 = vadd.f32 %v1947, %v1953
        %v1958 = vadd.f32 %v1948, %v1954
        %s1959 = sld [smem:[#allocation14 + $0x14]]
        %v1960 = vstv %s1959
        %v1961 = vmul.f32 %v1960, %v1713
        %v1962 = vmul.f32 %v1960, %v1714
        %v1963 = vmul.f32 %v1960, %v1715
        %v1964 = vmul.f32 %v1960, %v1716
        %v1965 = vadd.f32 %v1955, %v1961
        %v1966 = vadd.f32 %v1956, %v1962
        %v1967 = vadd.f32 %v1957, %v1963
        %v1968 = vadd.f32 %v1958, %v1964
        %s1969 = sld [smem:[#allocation14 + $0x15]]
        %v1970 = vstv %s1969
        %v1971 = vmul.f32 %v1970, %v1717
        %v1972 = vmul.f32 %v1970, %v1718
        %v1973 = vmul.f32 %v1970, %v1719
        %v1974 = vmul.f32 %v1970, %v1720
        %v1975 = vadd.f32 %v1965, %v1971
        %v1976 = vadd.f32 %v1966, %v1972
        %v1977 = vadd.f32 %v1967, %v1973
        %v1978 = vadd.f32 %v1968, %v1974
        %s1979 = sld [smem:[#allocation14 + $0x16]]
        %v1980 = vstv %s1979
        %v1981 = vmul.f32 %v1980, %v1721
        %v1982 = vmul.f32 %v1980, %v1722
        %v1983 = vmul.f32 %v1980, %v1723
        %v1984 = vmul.f32 %v1980, %v1724
        %v1985 = vadd.f32 %v1975, %v1981
        %v1986 = vadd.f32 %v1976, %v1982
        %v1987 = vadd.f32 %v1977, %v1983
        %v1988 = vadd.f32 %v1978, %v1984
        %s1989 = sld [smem:[#allocation14 + $0x17]]
        %v1990 = vstv %s1989
        %v1991 = vmul.f32 %v1990, %v1725
        %v1992 = vmul.f32 %v1990, %v1726
        %v1993 = vmul.f32 %v1990, %v1727
        %v1994 = vmul.f32 %v1990, %v1728
        %v1995 = vadd.f32 %v1985, %v1991
        %v1996 = vadd.f32 %v1986, %v1992
        %v1997 = vadd.f32 %v1987, %v1993
        %v1998 = vadd.f32 %v1988, %v1994
        %1999 = vst [vmem:[#allocation6] sm:$0xff] %v1995
        %2000 = vst [vmem:[#allocation6 + $0x8] sm:$0xff] %v1996
        %2001 = vst [vmem:[#allocation6 + $0x10] sm:$0xff] %v1997
        %2002 = vst [vmem:[#allocation6 + $0x18] sm:$0xff] %v1998
        %v2003 = vld [vmem:[#allocation6] ss:$2 sm:$0xff]
        %v2004 = vld [vmem:[%s1232] ss:$2 sm:$0xff]
        %v2005 = vld [vmem:[%s739] ss:$2 sm:$0xff]
        %v2006 = vld [vmem:[%s741] ss:$2 sm:$0xff]
        %v2007 = vmax.f32 %v2003, %v2005
        %v2008 = vmax.f32 %v2004, %v2006
        %vm2009 = vcmp.gt.f32.partialorder %v2007, 20.0
        %vm2010 = vcmp.gt.f32.partialorder %v2008, 20.0
        %v2011 = vmin.f32 %v2007, 20.0
        %v2012 = vmin.f32 %v2008, 20.0
        %v2013 = vmul.f32 %v2011, 1.442695
        %v2014 = vpow.pop %v2013
        %v2015 = vmul.f32 %v2012, 1.442695
        %v2016 = vpow.pop %v2015
        %v2017 = vadd.f32 %v2014, 1.0
        %v2018 = vlog2.pop %v2017
        %v2019 = vmul.f32 %v2018, 0.6931472
        %v2020 = vmul.f32 -0.5, %v2014
        %v2021 = vadd.f32 %v2020, 1.0
        %v2022 = vmul.f32 %v2021, %v2014
        %v2023 = vand.u32 2147483647, %v2014
        %vm2024 = vcmp.lt.f32.partialorder %v2023, 0.0004427343
        %v2025 = vsel %vm2024, %v2022, %v2019
        %v2026 = vadd.f32 %v2016, 1.0
        %v2027 = vlog2.pop %v2026
        %v2028 = vmul.f32 %v2027, 0.6931472
        %v2029 = vmul.f32 -0.5, %v2016
        %v2030 = vadd.f32 %v2029, 1.0
        %v2031 = vmul.f32 %v2030, %v2016
        %v2032 = vand.u32 2147483647, %v2016
        %vm2033 = vcmp.lt.f32.partialorder %v2032, 0.0004427343
        %v2034 = vsel %vm2033, %v2031, %v2028
        %v2035 = vsel %vm2009, %v2007, %v2025
        %v2036 = vsel %vm2010, %v2008, %v2034
        %s2037 = sld [smem:[#allocation14 + $0x18]]
        %v2038 = vstv %s2037
        %v2039 = vmul.f32 %v2038, %v1681
        %v2040 = vmul.f32 %v2038, %v1682
        %v2041 = vmul.f32 %v2038, %v1683
        %v2042 = vmul.f32 %v2038, %v1684
        %s2043 = sld [smem:[#allocation14 + $0x19]]
        %v2044 = vstv %s2043
        %v2045 = vmul.f32 %v2044, %v1685
        %v2046 = vmul.f32 %v2044, %v1686
        %v2047 = vmul.f32 %v2044, %v1687
        %v2048 = vmul.f32 %v2044, %v1688
        %v2049 = vadd.f32 %v2039, %v2045
        %v2050 = vadd.f32 %v2040, %v2046
        %v2051 = vadd.f32 %v2041, %v2047
        %v2052 = vadd.f32 %v2042, %v2048
        %s2053 = sld [smem:[#allocation14 + $0x1a]]
        %v2054 = vstv %s2053
        %v2055 = vmul.f32 %v2054, %v1689
        %v2056 = vmul.f32 %v2054, %v1690
        %v2057 = vmul.f32 %v2054, %v1691
        %v2058 = vmul.f32 %v2054, %v1692
        %v2059 = vadd.f32 %v2049, %v2055
        %v2060 = vadd.f32 %v2050, %v2056
        %v2061 = vadd.f32 %v2051, %v2057
        %v2062 = vadd.f32 %v2052, %v2058
        %s2063 = sld [smem:[#allocation14 + $0x1b]]
        %v2064 = vstv %s2063
        %v2065 = vmul.f32 %v2064, %v1693
        %v2066 = vmul.f32 %v2064, %v1694
        %v2067 = vmul.f32 %v2064, %v1695
        %v2068 = vmul.f32 %v2064, %v1696
        %v2069 = vadd.f32 %v2059, %v2065
        %v2070 = vadd.f32 %v2060, %v2066
        %v2071 = vadd.f32 %v2061, %v2067
        %v2072 = vadd.f32 %v2062, %v2068
        %s2073 = sld [smem:[#allocation14 + $0x1c]]
        %v2074 = vstv %s2073
        %v2075 = vmul.f32 %v2074, %v1697
        %v2076 = vmul.f32 %v2074, %v1698
        %v2077 = vmul.f32 %v2074, %v1699
        %v2078 = vmul.f32 %v2074, %v1700
        %v2079 = vadd.f32 %v2069, %v2075
        %v2080 = vadd.f32 %v2070, %v2076
        %v2081 = vadd.f32 %v2071, %v2077
        %v2082 = vadd.f32 %v2072, %v2078
        %s2083 = sld [smem:[#allocation14 + $0x1d]]
        %v2084 = vstv %s2083
        %v2085 = vmul.f32 %v2084, %v1701
        %v2086 = vmul.f32 %v2084, %v1702
        %v2087 = vmul.f32 %v2084, %v1703
        %v2088 = vmul.f32 %v2084, %v1704
        %v2089 = vadd.f32 %v2079, %v2085
        %v2090 = vadd.f32 %v2080, %v2086
        %v2091 = vadd.f32 %v2081, %v2087
        %v2092 = vadd.f32 %v2082, %v2088
        %s2093 = sld [smem:[#allocation14 + $0x1e]]
        %v2094 = vstv %s2093
        %v2095 = vmul.f32 %v2094, %v1705
        %v2096 = vmul.f32 %v2094, %v1706
        %v2097 = vmul.f32 %v2094, %v1707
        %v2098 = vmul.f32 %v2094, %v1708
        %v2099 = vadd.f32 %v2089, %v2095
        %v2100 = vadd.f32 %v2090, %v2096
        %v2101 = vadd.f32 %v2091, %v2097
        %v2102 = vadd.f32 %v2092, %v2098
        %s2103 = sld [smem:[#allocation14 + $0x1f]]
        %v2104 = vstv %s2103
        %v2105 = vmul.f32 %v2104, %v1709
        %v2106 = vmul.f32 %v2104, %v1710
        %v2107 = vmul.f32 %v2104, %v1711
        %v2108 = vmul.f32 %v2104, %v1712
        %v2109 = vadd.f32 %v2099, %v2105
        %v2110 = vadd.f32 %v2100, %v2106
        %v2111 = vadd.f32 %v2101, %v2107
        %v2112 = vadd.f32 %v2102, %v2108
        %s2113 = sld [smem:[#allocation14 + $0x20]]
        %v2114 = vstv %s2113
        %v2115 = vmul.f32 %v2114, %v1713
        %v2116 = vmul.f32 %v2114, %v1714
        %v2117 = vmul.f32 %v2114, %v1715
        %v2118 = vmul.f32 %v2114, %v1716
        %v2119 = vadd.f32 %v2109, %v2115
        %v2120 = vadd.f32 %v2110, %v2116
        %v2121 = vadd.f32 %v2111, %v2117
        %v2122 = vadd.f32 %v2112, %v2118
        %s2123 = sld [smem:[#allocation14 + $0x21]]
        %v2124 = vstv %s2123
        %v2125 = vmul.f32 %v2124, %v1717
        %v2126 = vmul.f32 %v2124, %v1718
        %v2127 = vmul.f32 %v2124, %v1719
        %v2128 = vmul.f32 %v2124, %v1720
        %v2129 = vadd.f32 %v2119, %v2125
        %v2130 = vadd.f32 %v2120, %v2126
        %v2131 = vadd.f32 %v2121, %v2127
        %v2132 = vadd.f32 %v2122, %v2128
        %s2133 = sld [smem:[#allocation14 + $0x22]]
        %v2134 = vstv %s2133
        %v2135 = vmul.f32 %v2134, %v1721
        %v2136 = vmul.f32 %v2134, %v1722
        %v2137 = vmul.f32 %v2134, %v1723
        %v2138 = vmul.f32 %v2134, %v1724
        %v2139 = vadd.f32 %v2129, %v2135
        %v2140 = vadd.f32 %v2130, %v2136
        %v2141 = vadd.f32 %v2131, %v2137
        %v2142 = vadd.f32 %v2132, %v2138
        %s2143 = sld [smem:[#allocation14 + $0x23]]
        %v2144 = vstv %s2143
        %v2145 = vmul.f32 %v2144, %v1725
        %v2146 = vmul.f32 %v2144, %v1726
        %v2147 = vmul.f32 %v2144, %v1727
        %v2148 = vmul.f32 %v2144, %v1728
        %v2149 = vadd.f32 %v2139, %v2145
        %v2150 = vadd.f32 %v2140, %v2146
        %v2151 = vadd.f32 %v2141, %v2147
        %v2152 = vadd.f32 %v2142, %v2148
        %2153 = vst [vmem:[#allocation5] sm:$0xff] %v2149
        %2154 = vst [vmem:[#allocation5 + $0x8] sm:$0xff] %v2150
        %2155 = vst [vmem:[#allocation5 + $0x10] sm:$0xff] %v2151
        %2156 = vst [vmem:[#allocation5 + $0x18] sm:$0xff] %v2152
        %v2157 = vld [vmem:[#allocation5] ss:$2 sm:$0xff]
        %v2158 = vld [vmem:[%s1053] ss:$2 sm:$0xff]
        %v2159 = vld [vmem:[%s486] ss:$2 sm:$0xff]
        %v2160 = vld [vmem:[%s488] ss:$2 sm:$0xff]
        %v2161 = vmax.f32 %v2157, %v2159
        %v2162 = vmax.f32 %v2158, %v2160
        %vm2163 = vcmp.gt.f32.partialorder %v2161, 20.0
        %vm2164 = vcmp.gt.f32.partialorder %v2162, 20.0
        %v2165 = vmin.f32 %v2161, 20.0
        %v2166 = vmin.f32 %v2162, 20.0
        %v2167 = vmul.f32 %v2165, 1.442695
        %v2168 = vpow.pop %v2167
        %v2169 = vmul.f32 %v2166, 1.442695
        %v2170 = vpow.pop %v2169
        %v2171 = vadd.f32 %v2168, 1.0
        %v2172 = vlog2.pop %v2171
        %v2173 = vmul.f32 %v2172, 0.6931472
        %v2174 = vmul.f32 -0.5, %v2168
        %v2175 = vadd.f32 %v2174, 1.0
        %v2176 = vmul.f32 %v2175, %v2168
        %v2177 = vand.u32 2147483647, %v2168
        %vm2178 = vcmp.lt.f32.partialorder %v2177, 0.0004427343
        %v2179 = vsel %vm2178, %v2176, %v2173
        %v2180 = vadd.f32 %v2170, 1.0
        %v2181 = vlog2.pop %v2180
        %v2182 = vmul.f32 %v2181, 0.6931472
        %v2183 = vmul.f32 -0.5, %v2170
        %v2184 = vadd.f32 %v2183, 1.0
        %v2185 = vmul.f32 %v2184, %v2170
        %v2186 = vand.u32 2147483647, %v2170
        %vm2187 = vcmp.lt.f32.partialorder %v2186, 0.0004427343
        %v2188 = vsel %vm2187, %v2185, %v2182
        %v2189 = vsel %vm2163, %v2161, %v2179
        %v2190 = vsel %vm2164, %v2162, %v2188
        %s2191 = sld [smem:[#allocation14 + $0x24]]
        %v2192 = vstv %s2191
        %v2193 = vmul.f32 %v2192, %v1681
        %v2194 = vmul.f32 %v2192, %v1682
        %v2195 = vmul.f32 %v2192, %v1683
        %v2196 = vmul.f32 %v2192, %v1684
        %s2197 = sld [smem:[#allocation14 + $0x25]]
        %v2198 = vstv %s2197
        %v2199 = vmul.f32 %v2198, %v1685
        %v2200 = vmul.f32 %v2198, %v1686
        %v2201 = vmul.f32 %v2198, %v1687
        %v2202 = vmul.f32 %v2198, %v1688
        %v2203 = vadd.f32 %v2193, %v2199
        %v2204 = vadd.f32 %v2194, %v2200
        %v2205 = vadd.f32 %v2195, %v2201
        %v2206 = vadd.f32 %v2196, %v2202
        %s2207 = sld [smem:[#allocation14 + $0x26]]
        %v2208 = vstv %s2207
        %v2209 = vmul.f32 %v2208, %v1689
        %v2210 = vmul.f32 %v2208, %v1690
        %v2211 = vmul.f32 %v2208, %v1691
        %v2212 = vmul.f32 %v2208, %v1692
        %v2213 = vadd.f32 %v2203, %v2209
        %v2214 = vadd.f32 %v2204, %v2210
        %v2215 = vadd.f32 %v2205, %v2211
        %v2216 = vadd.f32 %v2206, %v2212
        %s2217 = sld [smem:[#allocation14 + $0x27]]
        %v2218 = vstv %s2217
        %v2219 = vmul.f32 %v2218, %v1693
        %v2220 = vmul.f32 %v2218, %v1694
        %v2221 = vmul.f32 %v2218, %v1695
        %v2222 = vmul.f32 %v2218, %v1696
        %v2223 = vadd.f32 %v2213, %v2219
        %v2224 = vadd.f32 %v2214, %v2220
        %v2225 = vadd.f32 %v2215, %v2221
        %v2226 = vadd.f32 %v2216, %v2222
        %s2227 = sld [smem:[#allocation14 + $0x28]]
        %v2228 = vstv %s2227
        %v2229 = vmul.f32 %v2228, %v1697
        %v2230 = vmul.f32 %v2228, %v1698
        %v2231 = vmul.f32 %v2228, %v1699
        %v2232 = vmul.f32 %v2228, %v1700
        %v2233 = vadd.f32 %v2223, %v2229
        %v2234 = vadd.f32 %v2224, %v2230
        %v2235 = vadd.f32 %v2225, %v2231
        %v2236 = vadd.f32 %v2226, %v2232
        %s2237 = sld [smem:[#allocation14 + $0x29]]
        %v2238 = vstv %s2237
        %v2239 = vmul.f32 %v2238, %v1701
        %v2240 = vmul.f32 %v2238, %v1702
        %v2241 = vmul.f32 %v2238, %v1703
        %v2242 = vmul.f32 %v2238, %v1704
        %v2243 = vadd.f32 %v2233, %v2239
        %v2244 = vadd.f32 %v2234, %v2240
        %v2245 = vadd.f32 %v2235, %v2241
        %v2246 = vadd.f32 %v2236, %v2242
        %s2247 = sld [smem:[#allocation14 + $0x2a]]
        %v2248 = vstv %s2247
        %v2249 = vmul.f32 %v2248, %v1705
        %v2250 = vmul.f32 %v2248, %v1706
        %v2251 = vmul.f32 %v2248, %v1707
        %v2252 = vmul.f32 %v2248, %v1708
        %v2253 = vadd.f32 %v2243, %v2249
        %v2254 = vadd.f32 %v2244, %v2250
        %v2255 = vadd.f32 %v2245, %v2251
        %v2256 = vadd.f32 %v2246, %v2252
        %s2257 = sld [smem:[#allocation14 + $0x2b]]
        %v2258 = vstv %s2257
        %v2259 = vmul.f32 %v2258, %v1709
        %v2260 = vmul.f32 %v2258, %v1710
        %v2261 = vmul.f32 %v2258, %v1711
        %v2262 = vmul.f32 %v2258, %v1712
        %v2263 = vadd.f32 %v2253, %v2259
        %v2264 = vadd.f32 %v2254, %v2260
        %v2265 = vadd.f32 %v2255, %v2261
        %v2266 = vadd.f32 %v2256, %v2262
        %s2267 = sld [smem:[#allocation14 + $0x2c]]
        %v2268 = vstv %s2267
        %v2269 = vmul.f32 %v2268, %v1713
        %v2270 = vmul.f32 %v2268, %v1714
        %v2271 = vmul.f32 %v2268, %v1715
        %v2272 = vmul.f32 %v2268, %v1716
        %v2273 = vadd.f32 %v2263, %v2269
        %v2274 = vadd.f32 %v2264, %v2270
        %v2275 = vadd.f32 %v2265, %v2271
        %v2276 = vadd.f32 %v2266, %v2272
        %s2277 = sld [smem:[#allocation14 + $0x2d]]
        %v2278 = vstv %s2277
        %v2279 = vmul.f32 %v2278, %v1717
        %v2280 = vmul.f32 %v2278, %v1718
        %v2281 = vmul.f32 %v2278, %v1719
        %v2282 = vmul.f32 %v2278, %v1720
        %v2283 = vadd.f32 %v2273, %v2279
        %v2284 = vadd.f32 %v2274, %v2280
        %v2285 = vadd.f32 %v2275, %v2281
        %v2286 = vadd.f32 %v2276, %v2282
        %s2287 = sld [smem:[#allocation14 + $0x2e]]
        %v2288 = vstv %s2287
        %v2289 = vmul.f32 %v2288, %v1721
        %v2290 = vmul.f32 %v2288, %v1722
        %v2291 = vmul.f32 %v2288, %v1723
        %v2292 = vmul.f32 %v2288, %v1724
        %v2293 = vadd.f32 %v2283, %v2289
        %v2294 = vadd.f32 %v2284, %v2290
        %v2295 = vadd.f32 %v2285, %v2291
        %v2296 = vadd.f32 %v2286, %v2292
        %s2297 = sld [smem:[#allocation14 + $0x2f]]
        %v2298 = vstv %s2297
        %v2299 = vmul.f32 %v2298, %v1725
        %v2300 = vmul.f32 %v2298, %v1726
        %v2301 = vmul.f32 %v2298, %v1727
        %v2302 = vmul.f32 %v2298, %v1728
        %v2303 = vadd.f32 %v2293, %v2299
        %v2304 = vadd.f32 %v2294, %v2300
        %v2305 = vadd.f32 %v2295, %v2301
        %v2306 = vadd.f32 %v2296, %v2302
        %2307 = vst [vmem:[#allocation6] sm:$0xff] %v2303
        %2308 = vst [vmem:[#allocation6 + $0x8] sm:$0xff] %v2304
        %2309 = vst [vmem:[#allocation6 + $0x10] sm:$0xff] %v2305
        %2310 = vst [vmem:[#allocation6 + $0x18] sm:$0xff] %v2306
        %v2311 = vld [vmem:[#allocation6] ss:$2 sm:$0xff]
        %v2312 = vld [vmem:[%s1232] ss:$2 sm:$0xff]
        %v2313 = vld [vmem:[%s739] ss:$2 sm:$0xff]
        %v2314 = vld [vmem:[%s741] ss:$2 sm:$0xff]
        %v2315 = vmax.f32 %v2311, %v2313
        %v2316 = vmax.f32 %v2312, %v2314
        %vm2317 = vcmp.gt.f32.partialorder %v2315, 20.0
        %vm2318 = vcmp.gt.f32.partialorder %v2316, 20.0
        %v2319 = vmin.f32 %v2315, 20.0
        %v2320 = vmin.f32 %v2316, 20.0
        %v2321 = vmul.f32 %v2319, 1.442695
        %v2322 = vpow.pop %v2321
        %v2323 = vmul.f32 %v2320, 1.442695
        %v2324 = vpow.pop %v2323
        %v2325 = vadd.f32 %v2322, 1.0
        %v2326 = vlog2.pop %v2325
        %v2327 = vmul.f32 %v2326, 0.6931472
        %v2328 = vmul.f32 -0.5, %v2322
        %v2329 = vadd.f32 %v2328, 1.0
        %v2330 = vmul.f32 %v2329, %v2322
        %v2331 = vand.u32 2147483647, %v2322
        %vm2332 = vcmp.lt.f32.partialorder %v2331, 0.0004427343
        %v2333 = vsel %vm2332, %v2330, %v2327
        %v2334 = vadd.f32 %v2324, 1.0
        %v2335 = vlog2.pop %v2334
        %v2336 = vmul.f32 %v2335, 0.6931472
        %v2337 = vmul.f32 -0.5, %v2324
        %v2338 = vadd.f32 %v2337, 1.0
        %v2339 = vmul.f32 %v2338, %v2324
        %v2340 = vand.u32 2147483647, %v2324
        %vm2341 = vcmp.lt.f32.partialorder %v2340, 0.0004427343
        %v2342 = vsel %vm2341, %v2339, %v2336
        %v2343 = vsel %vm2317, %v2315, %v2333
        %v2344 = vsel %vm2318, %v2316, %v2342
        %s2345 = sld [smem:[#allocation14 + $0x30]]
        %v2346 = vstv %s2345
        %v2347 = vmul.f32 %v2346, %v1681
        %v2348 = vmul.f32 %v2346, %v1682
        %v2349 = vmul.f32 %v2346, %v1683
        %v2350 = vmul.f32 %v2346, %v1684
        %s2351 = sld [smem:[#allocation14 + $0x31]]
        %v2352 = vstv %s2351
        %v2353 = vmul.f32 %v2352, %v1685
        %v2354 = vmul.f32 %v2352, %v1686
        %v2355 = vmul.f32 %v2352, %v1687
        %v2356 = vmul.f32 %v2352, %v1688
        %v2357 = vadd.f32 %v2347, %v2353
        %v2358 = vadd.f32 %v2348, %v2354
        %v2359 = vadd.f32 %v2349, %v2355
        %v2360 = vadd.f32 %v2350, %v2356
        %s2361 = sld [smem:[#allocation14 + $0x32]]
        %v2362 = vstv %s2361
        %v2363 = vmul.f32 %v2362, %v1689
        %v2364 = vmul.f32 %v2362, %v1690
        %v2365 = vmul.f32 %v2362, %v1691
        %v2366 = vmul.f32 %v2362, %v1692
        %v2367 = vadd.f32 %v2357, %v2363
        %v2368 = vadd.f32 %v2358, %v2364
        %v2369 = vadd.f32 %v2359, %v2365
        %v2370 = vadd.f32 %v2360, %v2366
        %s2371 = sld [smem:[#allocation14 + $0x33]]
        %v2372 = vstv %s2371
        %v2373 = vmul.f32 %v2372, %v1693
        %v2374 = vmul.f32 %v2372, %v1694
        %v2375 = vmul.f32 %v2372, %v1695
        %v2376 = vmul.f32 %v2372, %v1696
        %v2377 = vadd.f32 %v2367, %v2373
        %v2378 = vadd.f32 %v2368, %v2374
        %v2379 = vadd.f32 %v2369, %v2375
        %v2380 = vadd.f32 %v2370, %v2376
        %s2381 = sld [smem:[#allocation14 + $0x34]]
        %v2382 = vstv %s2381
        %v2383 = vmul.f32 %v2382, %v1697
        %v2384 = vmul.f32 %v2382, %v1698
        %v2385 = vmul.f32 %v2382, %v1699
        %v2386 = vmul.f32 %v2382, %v1700
        %v2387 = vadd.f32 %v2377, %v2383
        %v2388 = vadd.f32 %v2378, %v2384
        %v2389 = vadd.f32 %v2379, %v2385
        %v2390 = vadd.f32 %v2380, %v2386
        %s2391 = sld [smem:[#allocation14 + $0x35]]
        %v2392 = vstv %s2391
        %v2393 = vmul.f32 %v2392, %v1701
        %v2394 = vmul.f32 %v2392, %v1702
        %v2395 = vmul.f32 %v2392, %v1703
        %v2396 = vmul.f32 %v2392, %v1704
        %v2397 = vadd.f32 %v2387, %v2393
        %v2398 = vadd.f32 %v2388, %v2394
        %v2399 = vadd.f32 %v2389, %v2395
        %v2400 = vadd.f32 %v2390, %v2396
        %s2401 = sld [smem:[#allocation14 + $0x36]]
        %v2402 = vstv %s2401
        %v2403 = vmul.f32 %v2402, %v1705
        %v2404 = vmul.f32 %v2402, %v1706
        %v2405 = vmul.f32 %v2402, %v1707
        %v2406 = vmul.f32 %v2402, %v1708
        %v2407 = vadd.f32 %v2397, %v2403
        %v2408 = vadd.f32 %v2398, %v2404
        %v2409 = vadd.f32 %v2399, %v2405
        %v2410 = vadd.f32 %v2400, %v2406
        %s2411 = sld [smem:[#allocation14 + $0x37]]
        %v2412 = vstv %s2411
        %v2413 = vmul.f32 %v2412, %v1709
        %v2414 = vmul.f32 %v2412, %v1710
        %v2415 = vmul.f32 %v2412, %v1711
        %v2416 = vmul.f32 %v2412, %v1712
        %v2417 = vadd.f32 %v2407, %v2413
        %v2418 = vadd.f32 %v2408, %v2414
        %v2419 = vadd.f32 %v2409, %v2415
        %v2420 = vadd.f32 %v2410, %v2416
        %s2421 = sld [smem:[#allocation14 + $0x38]]
        %v2422 = vstv %s2421
        %v2423 = vmul.f32 %v2422, %v1713
        %v2424 = vmul.f32 %v2422, %v1714
        %v2425 = vmul.f32 %v2422, %v1715
        %v2426 = vmul.f32 %v2422, %v1716
        %v2427 = vadd.f32 %v2417, %v2423
        %v2428 = vadd.f32 %v2418, %v2424
        %v2429 = vadd.f32 %v2419, %v2425
        %v2430 = vadd.f32 %v2420, %v2426
        %s2431 = sld [smem:[#allocation14 + $0x39]]
        %v2432 = vstv %s2431
        %v2433 = vmul.f32 %v2432, %v1717
        %v2434 = vmul.f32 %v2432, %v1718
        %v2435 = vmul.f32 %v2432, %v1719
        %v2436 = vmul.f32 %v2432, %v1720
        %v2437 = vadd.f32 %v2427, %v2433
        %v2438 = vadd.f32 %v2428, %v2434
        %v2439 = vadd.f32 %v2429, %v2435
        %v2440 = vadd.f32 %v2430, %v2436
        %s2441 = sld [smem:[#allocation14 + $0x3a]]
        %v2442 = vstv %s2441
        %v2443 = vmul.f32 %v2442, %v1721
        %v2444 = vmul.f32 %v2442, %v1722
        %v2445 = vmul.f32 %v2442, %v1723
        %v2446 = vmul.f32 %v2442, %v1724
        %v2447 = vadd.f32 %v2437, %v2443
        %v2448 = vadd.f32 %v2438, %v2444
        %v2449 = vadd.f32 %v2439, %v2445
        %v2450 = vadd.f32 %v2440, %v2446
        %s2451 = sld [smem:[#allocation14 + $0x3b]]
        %v2452 = vstv %s2451
        %v2453 = vmul.f32 %v2452, %v1725
        %v2454 = vmul.f32 %v2452, %v1726
        %v2455 = vmul.f32 %v2452, %v1727
        %v2456 = vmul.f32 %v2452, %v1728
        %v2457 = vadd.f32 %v2447, %v2453
        %v2458 = vadd.f32 %v2448, %v2454
        %v2459 = vadd.f32 %v2449, %v2455
        %v2460 = vadd.f32 %v2450, %v2456
        %2461 = vst [vmem:[#allocation5] sm:$0xff] %v2457
        %2462 = vst [vmem:[#allocation5 + $0x8] sm:$0xff] %v2458
        %2463 = vst [vmem:[#allocation5 + $0x10] sm:$0xff] %v2459
        %2464 = vst [vmem:[#allocation5 + $0x18] sm:$0xff] %v2460
        %v2465 = vld [vmem:[#allocation5] ss:$2 sm:$0xff]
        %v2466 = vld [vmem:[%s1053] ss:$2 sm:$0xff]
        %v2467 = vld [vmem:[%s486] ss:$2 sm:$0xff]
        %v2468 = vld [vmem:[%s488] ss:$2 sm:$0xff]
        %v2469 = vmax.f32 %v2465, %v2467
        %v2470 = vmax.f32 %v2466, %v2468
        %vm2471 = vcmp.gt.f32.partialorder %v2469, 20.0
        %vm2472 = vcmp.gt.f32.partialorder %v2470, 20.0
        %v2473 = vmin.f32 %v2469, 20.0
        %v2474 = vmin.f32 %v2470, 20.0
        %v2475 = vmul.f32 %v2473, 1.442695
        %v2476 = vpow.pop %v2475
        %v2477 = vmul.f32 %v2474, 1.442695
        %v2478 = vpow.pop %v2477
        %v2479 = vadd.f32 %v2476, 1.0
        %v2480 = vlog2.pop %v2479
        %v2481 = vmul.f32 %v2480, 0.6931472
        %v2482 = vmul.f32 -0.5, %v2476
        %v2483 = vadd.f32 %v2482, 1.0
        %v2484 = vmul.f32 %v2483, %v2476
        %v2485 = vand.u32 2147483647, %v2476
        %vm2486 = vcmp.lt.f32.partialorder %v2485, 0.0004427343
        %v2487 = vsel %vm2486, %v2484, %v2481
        %v2488 = vadd.f32 %v2478, 1.0
        %v2489 = vlog2.pop %v2488
        %v2490 = vmul.f32 %v2489, 0.6931472
        %v2491 = vmul.f32 -0.5, %v2478
        %v2492 = vadd.f32 %v2491, 1.0
        %v2493 = vmul.f32 %v2492, %v2478
        %v2494 = vand.u32 2147483647, %v2478
        %vm2495 = vcmp.lt.f32.partialorder %v2494, 0.0004427343
        %v2496 = vsel %vm2495, %v2493, %v2490
        %v2497 = vsel %vm2471, %v2469, %v2487
        %v2498 = vsel %vm2472, %v2470, %v2496
        %s2499 = sld [smem:[#allocation14 + $0x3c]]
        %v2500 = vstv %s2499
        %v2501 = vmul.f32 %v2500, %v1681
        %v2502 = vmul.f32 %v2500, %v1682
        %v2503 = vmul.f32 %v2500, %v1683
        %v2504 = vmul.f32 %v2500, %v1684
        %s2505 = sld [smem:[#allocation14 + $0x3d]]
        %v2506 = vstv %s2505
        %v2507 = vmul.f32 %v2506, %v1685
        %v2508 = vmul.f32 %v2506, %v1686
        %v2509 = vmul.f32 %v2506, %v1687
        %v2510 = vmul.f32 %v2506, %v1688
        %v2511 = vadd.f32 %v2501, %v2507
        %v2512 = vadd.f32 %v2502, %v2508
        %v2513 = vadd.f32 %v2503, %v2509
        %v2514 = vadd.f32 %v2504, %v2510
        %s2515 = sld [smem:[#allocation14 + $0x3e]]
        %v2516 = vstv %s2515
        %v2517 = vmul.f32 %v2516, %v1689
        %v2518 = vmul.f32 %v2516, %v1690
        %v2519 = vmul.f32 %v2516, %v1691
        %v2520 = vmul.f32 %v2516, %v1692
        %v2521 = vadd.f32 %v2511, %v2517
        %v2522 = vadd.f32 %v2512, %v2518
        %v2523 = vadd.f32 %v2513, %v2519
        %v2524 = vadd.f32 %v2514, %v2520
        %s2525 = sld [smem:[#allocation14 + $0x3f]]
        %v2526 = vstv %s2525
        %v2527 = vmul.f32 %v2526, %v1693
        %v2528 = vmul.f32 %v2526, %v1694
        %v2529 = vmul.f32 %v2526, %v1695
        %v2530 = vmul.f32 %v2526, %v1696
        %v2531 = vadd.f32 %v2521, %v2527
        %v2532 = vadd.f32 %v2522, %v2528
        %v2533 = vadd.f32 %v2523, %v2529
        %v2534 = vadd.f32 %v2524, %v2530
        %s2535 = sld [smem:[#allocation14 + $0x40]]
        %v2536 = vstv %s2535
        %v2537 = vmul.f32 %v2536, %v1697
        %v2538 = vmul.f32 %v2536, %v1698
        %v2539 = vmul.f32 %v2536, %v1699
        %v2540 = vmul.f32 %v2536, %v1700
        %v2541 = vadd.f32 %v2531, %v2537
        %v2542 = vadd.f32 %v2532, %v2538
        %v2543 = vadd.f32 %v2533, %v2539
        %v2544 = vadd.f32 %v2534, %v2540
        %s2545 = sld [smem:[#allocation14 + $0x41]]
        %v2546 = vstv %s2545
        %v2547 = vmul.f32 %v2546, %v1701
        %v2548 = vmul.f32 %v2546, %v1702
        %v2549 = vmul.f32 %v2546, %v1703
        %v2550 = vmul.f32 %v2546, %v1704
        %v2551 = vadd.f32 %v2541, %v2547
        %v2552 = vadd.f32 %v2542, %v2548
        %v2553 = vadd.f32 %v2543, %v2549
        %v2554 = vadd.f32 %v2544, %v2550
        %s2555 = sld [smem:[#allocation14 + $0x42]]
        %v2556 = vstv %s2555
        %v2557 = vmul.f32 %v2556, %v1705
        %v2558 = vmul.f32 %v2556, %v1706
        %v2559 = vmul.f32 %v2556, %v1707
        %v2560 = vmul.f32 %v2556, %v1708
        %v2561 = vadd.f32 %v2551, %v2557
        %v2562 = vadd.f32 %v2552, %v2558
        %v2563 = vadd.f32 %v2553, %v2559
        %v2564 = vadd.f32 %v2554, %v2560
        %s2565 = sld [smem:[#allocation14 + $0x43]]
        %v2566 = vstv %s2565
        %v2567 = vmul.f32 %v2566, %v1709
        %v2568 = vmul.f32 %v2566, %v1710
        %v2569 = vmul.f32 %v2566, %v1711
        %v2570 = vmul.f32 %v2566, %v1712
        %v2571 = vadd.f32 %v2561, %v2567
        %v2572 = vadd.f32 %v2562, %v2568
        %v2573 = vadd.f32 %v2563, %v2569
        %v2574 = vadd.f32 %v2564, %v2570
        %s2575 = sld [smem:[#allocation14 + $0x44]]
        %v2576 = vstv %s2575
        %v2577 = vmul.f32 %v2576, %v1713
        %v2578 = vmul.f32 %v2576, %v1714
        %v2579 = vmul.f32 %v2576, %v1715
        %v2580 = vmul.f32 %v2576, %v1716
        %v2581 = vadd.f32 %v2571, %v2577
        %v2582 = vadd.f32 %v2572, %v2578
        %v2583 = vadd.f32 %v2573, %v2579
        %v2584 = vadd.f32 %v2574, %v2580
        %s2585 = sld [smem:[#allocation14 + $0x45]]
        %v2586 = vstv %s2585
        %v2587 = vmul.f32 %v2586, %v1717
        %v2588 = vmul.f32 %v2586, %v1718
        %v2589 = vmul.f32 %v2586, %v1719
        %v2590 = vmul.f32 %v2586, %v1720
        %v2591 = vadd.f32 %v2581, %v2587
        %v2592 = vadd.f32 %v2582, %v2588
        %v2593 = vadd.f32 %v2583, %v2589
        %v2594 = vadd.f32 %v2584, %v2590
        %s2595 = sld [smem:[#allocation14 + $0x46]]
        %v2596 = vstv %s2595
        %v2597 = vmul.f32 %v2596, %v1721
        %v2598 = vmul.f32 %v2596, %v1722
        %v2599 = vmul.f32 %v2596, %v1723
        %v2600 = vmul.f32 %v2596, %v1724
        %v2601 = vadd.f32 %v2591, %v2597
        %v2602 = vadd.f32 %v2592, %v2598
        %v2603 = vadd.f32 %v2593, %v2599
        %v2604 = vadd.f32 %v2594, %v2600
        %s2605 = sld [smem:[#allocation14 + $0x47]]
        %v2606 = vstv %s2605
        %v2607 = vmul.f32 %v2606, %v1725
        %v2608 = vmul.f32 %v2606, %v1726
        %v2609 = vmul.f32 %v2606, %v1727
        %v2610 = vmul.f32 %v2606, %v1728
        %v2611 = vadd.f32 %v2601, %v2607
        %v2612 = vadd.f32 %v2602, %v2608
        %v2613 = vadd.f32 %v2603, %v2609
        %v2614 = vadd.f32 %v2604, %v2610
        %2615 = vst [vmem:[#allocation6] sm:$0xff] %v2611
        %2616 = vst [vmem:[#allocation6 + $0x8] sm:$0xff] %v2612
        %2617 = vst [vmem:[#allocation6 + $0x10] sm:$0xff] %v2613
        %2618 = vst [vmem:[#allocation6 + $0x18] sm:$0xff] %v2614
        %v2619 = vld [vmem:[#allocation6] ss:$2 sm:$0xff]
        %v2620 = vld [vmem:[%s1232] ss:$2 sm:$0xff]
        %v2621 = vld [vmem:[%s739] ss:$2 sm:$0xff]
        %v2622 = vld [vmem:[%s741] ss:$2 sm:$0xff]
        %v2623 = vmax.f32 %v2619, %v2621
        %v2624 = vmax.f32 %v2620, %v2622
        %vm2625 = vcmp.gt.f32.partialorder %v2623, 20.0
        %vm2626 = vcmp.gt.f32.partialorder %v2624, 20.0
        %v2627 = vmin.f32 %v2623, 20.0
        %v2628 = vmin.f32 %v2624, 20.0
        %v2629 = vmul.f32 %v2627, 1.442695
        %v2630 = vpow.pop %v2629
        %v2631 = vmul.f32 %v2628, 1.442695
        %v2632 = vpow.pop %v2631
        %v2633 = vadd.f32 %v2630, 1.0
        %v2634 = vlog2.pop %v2633
        %v2635 = vmul.f32 %v2634, 0.6931472
        %v2636 = vmul.f32 -0.5, %v2630
        %v2637 = vadd.f32 %v2636, 1.0
        %v2638 = vmul.f32 %v2637, %v2630
        %v2639 = vand.u32 2147483647, %v2630
        %vm2640 = vcmp.lt.f32.partialorder %v2639, 0.0004427343
        %v2641 = vsel %vm2640, %v2638, %v2635
        %v2642 = vadd.f32 %v2632, 1.0
        %v2643 = vlog2.pop %v2642
        %v2644 = vmul.f32 %v2643, 0.6931472
        %v2645 = vmul.f32 -0.5, %v2632
        %v2646 = vadd.f32 %v2645, 1.0
        %v2647 = vmul.f32 %v2646, %v2632
        %v2648 = vand.u32 2147483647, %v2632
        %vm2649 = vcmp.lt.f32.partialorder %v2648, 0.0004427343
        %v2650 = vsel %vm2649, %v2647, %v2644
        %v2651 = vsel %vm2625, %v2623, %v2641
        %v2652 = vsel %vm2626, %v2624, %v2650
        %s2653 = sld [smem:[#allocation14 + $0x48]]
        %v2654 = vstv %s2653
        %v2655 = vmul.f32 %v2654, %v1681
        %v2656 = vmul.f32 %v2654, %v1682
        %v2657 = vmul.f32 %v2654, %v1683
        %v2658 = vmul.f32 %v2654, %v1684
        %s2659 = sld [smem:[#allocation14 + $0x49]]
        %v2660 = vstv %s2659
        %v2661 = vmul.f32 %v2660, %v1685
        %v2662 = vmul.f32 %v2660, %v1686
        %v2663 = vmul.f32 %v2660, %v1687
        %v2664 = vmul.f32 %v2660, %v1688
        %v2665 = vadd.f32 %v2655, %v2661
        %v2666 = vadd.f32 %v2656, %v2662
        %v2667 = vadd.f32 %v2657, %v2663
        %v2668 = vadd.f32 %v2658, %v2664
        %s2669 = sld [smem:[#allocation14 + $0x4a]]
        %v2670 = vstv %s2669
        %v2671 = vmul.f32 %v2670, %v1689
        %v2672 = vmul.f32 %v2670, %v1690
        %v2673 = vmul.f32 %v2670, %v1691
        %v2674 = vmul.f32 %v2670, %v1692
        %v2675 = vadd.f32 %v2665, %v2671
        %v2676 = vadd.f32 %v2666, %v2672
        %v2677 = vadd.f32 %v2667, %v2673
        %v2678 = vadd.f32 %v2668, %v2674
        %s2679 = sld [smem:[#allocation14 + $0x4b]]
        %v2680 = vstv %s2679
        %v2681 = vmul.f32 %v2680, %v1693
        %v2682 = vmul.f32 %v2680, %v1694
        %v2683 = vmul.f32 %v2680, %v1695
        %v2684 = vmul.f32 %v2680, %v1696
        %v2685 = vadd.f32 %v2675, %v2681
        %v2686 = vadd.f32 %v2676, %v2682
        %v2687 = vadd.f32 %v2677, %v2683
        %v2688 = vadd.f32 %v2678, %v2684
        %s2689 = sld [smem:[#allocation14 + $0x4c]]
        %v2690 = vstv %s2689
        %v2691 = vmul.f32 %v2690, %v1697
        %v2692 = vmul.f32 %v2690, %v1698
        %v2693 = vmul.f32 %v2690, %v1699
        %v2694 = vmul.f32 %v2690, %v1700
        %v2695 = vadd.f32 %v2685, %v2691
        %v2696 = vadd.f32 %v2686, %v2692
        %v2697 = vadd.f32 %v2687, %v2693
        %v2698 = vadd.f32 %v2688, %v2694
        %s2699 = sld [smem:[#allocation14 + $0x4d]]
        %v2700 = vstv %s2699
        %v2701 = vmul.f32 %v2700, %v1701
        %v2702 = vmul.f32 %v2700, %v1702
        %v2703 = vmul.f32 %v2700, %v1703
        %v2704 = vmul.f32 %v2700, %v1704
        %v2705 = vadd.f32 %v2695, %v2701
        %v2706 = vadd.f32 %v2696, %v2702
        %v2707 = vadd.f32 %v2697, %v2703
        %v2708 = vadd.f32 %v2698, %v2704
        %s2709 = sld [smem:[#allocation14 + $0x4e]]
        %v2710 = vstv %s2709
        %v2711 = vmul.f32 %v2710, %v1705
        %v2712 = vmul.f32 %v2710, %v1706
        %v2713 = vmul.f32 %v2710, %v1707
        %v2714 = vmul.f32 %v2710, %v1708
        %v2715 = vadd.f32 %v2705, %v2711
        %v2716 = vadd.f32 %v2706, %v2712
        %v2717 = vadd.f32 %v2707, %v2713
        %v2718 = vadd.f32 %v2708, %v2714
        %s2719 = sld [smem:[#allocation14 + $0x4f]]
        %v2720 = vstv %s2719
        %v2721 = vmul.f32 %v2720, %v1709
        %v2722 = vmul.f32 %v2720, %v1710
        %v2723 = vmul.f32 %v2720, %v1711
        %v2724 = vmul.f32 %v2720, %v1712
        %v2725 = vadd.f32 %v2715, %v2721
        %v2726 = vadd.f32 %v2716, %v2722
        %v2727 = vadd.f32 %v2717, %v2723
        %v2728 = vadd.f32 %v2718, %v2724
        %s2729 = sld [smem:[#allocation14 + $0x50]]
        %v2730 = vstv %s2729
        %v2731 = vmul.f32 %v2730, %v1713
        %v2732 = vmul.f32 %v2730, %v1714
        %v2733 = vmul.f32 %v2730, %v1715
        %v2734 = vmul.f32 %v2730, %v1716
        %v2735 = vadd.f32 %v2725, %v2731
        %v2736 = vadd.f32 %v2726, %v2732
        %v2737 = vadd.f32 %v2727, %v2733
        %v2738 = vadd.f32 %v2728, %v2734
        %s2739 = sld [smem:[#allocation14 + $0x51]]
        %v2740 = vstv %s2739
        %v2741 = vmul.f32 %v2740, %v1717
        %v2742 = vmul.f32 %v2740, %v1718
        %v2743 = vmul.f32 %v2740, %v1719
        %v2744 = vmul.f32 %v2740, %v1720
        %v2745 = vadd.f32 %v2735, %v2741
        %v2746 = vadd.f32 %v2736, %v2742
        %v2747 = vadd.f32 %v2737, %v2743
        %v2748 = vadd.f32 %v2738, %v2744
        %s2749 = sld [smem:[#allocation14 + $0x52]]
        %v2750 = vstv %s2749
        %v2751 = vmul.f32 %v2750, %v1721
        %v2752 = vmul.f32 %v2750, %v1722
        %v2753 = vmul.f32 %v2750, %v1723
        %v2754 = vmul.f32 %v2750, %v1724
        %v2755 = vadd.f32 %v2745, %v2751
        %v2756 = vadd.f32 %v2746, %v2752
        %v2757 = vadd.f32 %v2747, %v2753
        %v2758 = vadd.f32 %v2748, %v2754
        %s2759 = sld [smem:[#allocation14 + $0x53]]
        %v2760 = vstv %s2759
        %v2761 = vmul.f32 %v2760, %v1725
        %v2762 = vmul.f32 %v2760, %v1726
        %v2763 = vmul.f32 %v2760, %v1727
        %v2764 = vmul.f32 %v2760, %v1728
        %v2765 = vadd.f32 %v2755, %v2761
        %v2766 = vadd.f32 %v2756, %v2762
        %v2767 = vadd.f32 %v2757, %v2763
        %v2768 = vadd.f32 %v2758, %v2764
        %2769 = vst [vmem:[#allocation5] sm:$0xff] %v2765
        %2770 = vst [vmem:[#allocation5 + $0x8] sm:$0xff] %v2766
        %2771 = vst [vmem:[#allocation5 + $0x10] sm:$0xff] %v2767
        %2772 = vst [vmem:[#allocation5 + $0x18] sm:$0xff] %v2768
        %v2773 = vld [vmem:[#allocation5] ss:$2 sm:$0xff]
        %v2774 = vld [vmem:[%s1053] ss:$2 sm:$0xff]
        %v2775 = vld [vmem:[%s486] ss:$2 sm:$0xff]
        %v2776 = vld [vmem:[%s488] ss:$2 sm:$0xff]
        %v2777 = vmax.f32 %v2773, %v2775
        %v2778 = vmax.f32 %v2774, %v2776
        %vm2779 = vcmp.gt.f32.partialorder %v2777, 20.0
        %vm2780 = vcmp.gt.f32.partialorder %v2778, 20.0
        %v2781 = vmin.f32 %v2777, 20.0
        %v2782 = vmin.f32 %v2778, 20.0
        %v2783 = vmul.f32 %v2781, 1.442695
        %v2784 = vpow.pop %v2783
        %v2785 = vmul.f32 %v2782, 1.442695
        %v2786 = vpow.pop %v2785
        %v2787 = vadd.f32 %v2784, 1.0
        %v2788 = vlog2.pop %v2787
        %v2789 = vmul.f32 %v2788, 0.6931472
        %v2790 = vmul.f32 -0.5, %v2784
        %v2791 = vadd.f32 %v2790, 1.0
        %v2792 = vmul.f32 %v2791, %v2784
        %v2793 = vand.u32 2147483647, %v2784
        %vm2794 = vcmp.lt.f32.partialorder %v2793, 0.0004427343
        %v2795 = vsel %vm2794, %v2792, %v2789
        %v2796 = vadd.f32 %v2786, 1.0
        %v2797 = vlog2.pop %v2796
        %v2798 = vmul.f32 %v2797, 0.6931472
        %v2799 = vmul.f32 -0.5, %v2786
        %v2800 = vadd.f32 %v2799, 1.0
        %v2801 = vmul.f32 %v2800, %v2786
        %v2802 = vand.u32 2147483647, %v2786
        %vm2803 = vcmp.lt.f32.partialorder %v2802, 0.0004427343
        %v2804 = vsel %vm2803, %v2801, %v2798
        %v2805 = vsel %vm2779, %v2777, %v2795
        %v2806 = vsel %vm2780, %v2778, %v2804
        %s2807 = sld [smem:[#allocation14 + $0x54]]
        %v2808 = vstv %s2807
        %v2809 = vmul.f32 %v2808, %v1681
        %v2810 = vmul.f32 %v2808, %v1682
        %v2811 = vmul.f32 %v2808, %v1683
        %v2812 = vmul.f32 %v2808, %v1684
        %s2813 = sld [smem:[#allocation14 + $0x55]]
        %v2814 = vstv %s2813
        %v2815 = vmul.f32 %v2814, %v1685
        %v2816 = vmul.f32 %v2814, %v1686
        %v2817 = vmul.f32 %v2814, %v1687
        %v2818 = vmul.f32 %v2814, %v1688
        %v2819 = vadd.f32 %v2809, %v2815
        %v2820 = vadd.f32 %v2810, %v2816
        %v2821 = vadd.f32 %v2811, %v2817
        %v2822 = vadd.f32 %v2812, %v2818
        %s2823 = sld [smem:[#allocation14 + $0x56]]
        %v2824 = vstv %s2823
        %v2825 = vmul.f32 %v2824, %v1689
        %v2826 = vmul.f32 %v2824, %v1690
        %v2827 = vmul.f32 %v2824, %v1691
        %v2828 = vmul.f32 %v2824, %v1692
        %v2829 = vadd.f32 %v2819, %v2825
        %v2830 = vadd.f32 %v2820, %v2826
        %v2831 = vadd.f32 %v2821, %v2827
        %v2832 = vadd.f32 %v2822, %v2828
        %s2833 = sld [smem:[#allocation14 + $0x57]]
        %v2834 = vstv %s2833
        %v2835 = vmul.f32 %v2834, %v1693
        %v2836 = vmul.f32 %v2834, %v1694
        %v2837 = vmul.f32 %v2834, %v1695
        %v2838 = vmul.f32 %v2834, %v1696
        %v2839 = vadd.f32 %v2829, %v2835
        %v2840 = vadd.f32 %v2830, %v2836
        %v2841 = vadd.f32 %v2831, %v2837
        %v2842 = vadd.f32 %v2832, %v2838
        %s2843 = sld [smem:[#allocation14 + $0x58]]
        %v2844 = vstv %s2843
        %v2845 = vmul.f32 %v2844, %v1697
        %v2846 = vmul.f32 %v2844, %v1698
        %v2847 = vmul.f32 %v2844, %v1699
        %v2848 = vmul.f32 %v2844, %v1700
        %v2849 = vadd.f32 %v2839, %v2845
        %v2850 = vadd.f32 %v2840, %v2846
        %v2851 = vadd.f32 %v2841, %v2847
        %v2852 = vadd.f32 %v2842, %v2848
        %s2853 = sld [smem:[#allocation14 + $0x59]]
        %v2854 = vstv %s2853
        %v2855 = vmul.f32 %v2854, %v1701
        %v2856 = vmul.f32 %v2854, %v1702
        %v2857 = vmul.f32 %v2854, %v1703
        %v2858 = vmul.f32 %v2854, %v1704
        %v2859 = vadd.f32 %v2849, %v2855
        %v2860 = vadd.f32 %v2850, %v2856
        %v2861 = vadd.f32 %v2851, %v2857
        %v2862 = vadd.f32 %v2852, %v2858
        %s2863 = sld [smem:[#allocation14 + $0x5a]]
        %v2864 = vstv %s2863
        %v2865 = vmul.f32 %v2864, %v1705
        %v2866 = vmul.f32 %v2864, %v1706
        %v2867 = vmul.f32 %v2864, %v1707
        %v2868 = vmul.f32 %v2864, %v1708
        %v2869 = vadd.f32 %v2859, %v2865
        %v2870 = vadd.f32 %v2860, %v2866
        %v2871 = vadd.f32 %v2861, %v2867
        %v2872 = vadd.f32 %v2862, %v2868
        %s2873 = sld [smem:[#allocation14 + $0x5b]]
        %v2874 = vstv %s2873
        %v2875 = vmul.f32 %v2874, %v1709
        %v2876 = vmul.f32 %v2874, %v1710
        %v2877 = vmul.f32 %v2874, %v1711
        %v2878 = vmul.f32 %v2874, %v1712
        %v2879 = vadd.f32 %v2869, %v2875
        %v2880 = vadd.f32 %v2870, %v2876
        %v2881 = vadd.f32 %v2871, %v2877
        %v2882 = vadd.f32 %v2872, %v2878
        %s2883 = sld [smem:[#allocation14 + $0x5c]]
        %v2884 = vstv %s2883
        %v2885 = vmul.f32 %v2884, %v1713
        %v2886 = vmul.f32 %v2884, %v1714
        %v2887 = vmul.f32 %v2884, %v1715
        %v2888 = vmul.f32 %v2884, %v1716
        %v2889 = vadd.f32 %v2879, %v2885
        %v2890 = vadd.f32 %v2880, %v2886
        %v2891 = vadd.f32 %v2881, %v2887
        %v2892 = vadd.f32 %v2882, %v2888
        %s2893 = sld [smem:[#allocation14 + $0x5d]]
        %v2894 = vstv %s2893
        %v2895 = vmul.f32 %v2894, %v1717
        %v2896 = vmul.f32 %v2894, %v1718
        %v2897 = vmul.f32 %v2894, %v1719
        %v2898 = vmul.f32 %v2894, %v1720
        %v2899 = vadd.f32 %v2889, %v2895
        %v2900 = vadd.f32 %v2890, %v2896
        %v2901 = vadd.f32 %v2891, %v2897
        %v2902 = vadd.f32 %v2892, %v2898
        %s2903 = sld [smem:[#allocation14 + $0x5e]]
        %v2904 = vstv %s2903
        %v2905 = vmul.f32 %v2904, %v1721
        %v2906 = vmul.f32 %v2904, %v1722
        %v2907 = vmul.f32 %v2904, %v1723
        %v2908 = vmul.f32 %v2904, %v1724
        %v2909 = vadd.f32 %v2899, %v2905
        %v2910 = vadd.f32 %v2900, %v2906
        %v2911 = vadd.f32 %v2901, %v2907
        %v2912 = vadd.f32 %v2902, %v2908
        %s2913 = sld [smem:[#allocation14 + $0x5f]]
        %v2914 = vstv %s2913
        %v2915 = vmul.f32 %v2914, %v1725
        %v2916 = vmul.f32 %v2914, %v1726
        %v2917 = vmul.f32 %v2914, %v1727
        %v2918 = vmul.f32 %v2914, %v1728
        %v2919 = vadd.f32 %v2909, %v2915
        %v2920 = vadd.f32 %v2910, %v2916
        %v2921 = vadd.f32 %v2911, %v2917
        %v2922 = vadd.f32 %v2912, %v2918
        %2923 = vst [vmem:[#allocation6] sm:$0xff] %v2919
        %2924 = vst [vmem:[#allocation6 + $0x8] sm:$0xff] %v2920
        %2925 = vst [vmem:[#allocation6 + $0x10] sm:$0xff] %v2921
        %2926 = vst [vmem:[#allocation6 + $0x18] sm:$0xff] %v2922
        %v2927 = vld [vmem:[#allocation6] ss:$2 sm:$0xff]
        %v2928 = vld [vmem:[%s1232] ss:$2 sm:$0xff]
        %v2929 = vld [vmem:[%s739] ss:$2 sm:$0xff]
        %v2930 = vld [vmem:[%s741] ss:$2 sm:$0xff]
        %v2931 = vmax.f32 %v2927, %v2929
        %v2932 = vmax.f32 %v2928, %v2930
        %vm2933 = vcmp.gt.f32.partialorder %v2931, 20.0
        %vm2934 = vcmp.gt.f32.partialorder %v2932, 20.0
        %v2935 = vmin.f32 %v2931, 20.0
        %v2936 = vmin.f32 %v2932, 20.0
        %v2937 = vmul.f32 %v2935, 1.442695
        %v2938 = vpow.pop %v2937
        %v2939 = vmul.f32 %v2936, 1.442695
        %v2940 = vpow.pop %v2939
        %v2941 = vadd.f32 %v2938, 1.0
        %v2942 = vlog2.pop %v2941
        %v2943 = vmul.f32 %v2942, 0.6931472
        %v2944 = vmul.f32 -0.5, %v2938
        %v2945 = vadd.f32 %v2944, 1.0
        %v2946 = vmul.f32 %v2945, %v2938
        %v2947 = vand.u32 2147483647, %v2938
        %vm2948 = vcmp.lt.f32.partialorder %v2947, 0.0004427343
        %v2949 = vsel %vm2948, %v2946, %v2943
        %v2950 = vadd.f32 %v2940, 1.0
        %v2951 = vlog2.pop %v2950
        %v2952 = vmul.f32 %v2951, 0.6931472
        %v2953 = vmul.f32 -0.5, %v2940
        %v2954 = vadd.f32 %v2953, 1.0
        %v2955 = vmul.f32 %v2954, %v2940
        %v2956 = vand.u32 2147483647, %v2940
        %vm2957 = vcmp.lt.f32.partialorder %v2956, 0.0004427343
        %v2958 = vsel %vm2957, %v2955, %v2952
        %v2959 = vsel %vm2933, %v2931, %v2949
        %v2960 = vsel %vm2934, %v2932, %v2958
        %2961 = vxpose.xlu0.b32.start [1/16] %v1881, 128
        %2962 = vxpose.xlu0.b32.cont [2/16] %v1882, 128
        %2963 = vxpose.xlu0.b32.cont [3/16] %v2035, 128
        %2964 = vxpose.xlu0.b32.cont [4/16] %v2036, 128
        %2965 = vxpose.xlu0.b32.cont [5/16] %v2189, 128
        %2966 = vxpose.xlu0.b32.cont [6/16] %v2190, 128
        %2967 = vxpose.xlu0.b32.cont [7/16] %v2343, 128
        %2968 = vxpose.xlu0.b32.cont [8/16] %v2344, 128
        %2969 = vxpose.xlu0.b32.cont [9/16] %v2497, 128
        %2970 = vxpose.xlu0.b32.cont [10/16] %v2498, 128
        %2971 = vxpose.xlu0.b32.cont [11/16] %v2651, 128
        %2972 = vxpose.xlu0.b32.cont [12/16] %v2652, 128
        %2973 = vxpose.xlu0.b32.cont [13/16] %v2805, 128
        %2974 = vxpose.xlu0.b32.cont [14/16] %v2806, 128
        %2975 = vxpose.xlu0.b32.cont [15/16] %v2959, 128
        %2976 = vxpose.xlu0.b32.end [16/16] %v2960, 128
        %v2977 = vpop.trf.xlu0
        %v2978 = vpop.trf.xlu0
        %v2979 = vpop.trf.xlu0
        %v2980 = vpop.trf.xlu0
        %v2981 = vpop.trf.xlu0
        %v2982 = vpop.trf.xlu0
        %v2983 = vpop.trf.xlu0
        %v2984 = vpop.trf.xlu0
        %v2985 = vpop.trf.xlu0
        %v2986 = vpop.trf.xlu0
        %v2987 = vpop.trf.xlu0
        %v2988 = vpop.trf.xlu0
        %v2989 = vpop.trf.xlu0
        %v2990 = vpop.trf.xlu0
        %v2991 = vpop.trf.xlu0
        %v2992 = vpop.trf.xlu0
        %2993 = vst [vmem:[%s254] sm:$0xff] %v2977
        %2994 = vst [vmem:[%s254 + $0x8] sm:$0xff] %v2978
        %2995 = vst [vmem:[%s254 + $0x10] sm:$0xff] %v2979
        %2996 = vst [vmem:[%s254 + $0x18] sm:$0xff] %v2980
        %2997 = vst [vmem:[%s254 + $0x20] sm:$0xff] %v2981
        %2998 = vst [vmem:[%s254 + $0x28] sm:$0xff] %v2982
        %2999 = vst [vmem:[%s254 + $0x30] sm:$0xff] %v2983
        %3000 = vst [vmem:[%s254 + $0x38] sm:$0xff] %v2984
        %3001 = vst [vmem:[%s254 + $0x40] sm:$0xff] %v2985
        %3002 = vst [vmem:[%s254 + $0x48] sm:$0xff] %v2986
        %3003 = vst [vmem:[%s254 + $0x50] sm:$0xff] %v2987
        %3004 = vst [vmem:[%s254 + $0x58] sm:$0xff] %v2988
        %3005 = vst [vmem:[%s254 + $0x60] sm:$0xff] %v2989
        %3006 = vst [vmem:[%s254 + $0x68] sm:$0xff] %v2990
        %3007 = vst [vmem:[%s254 + $0x70] sm:$0xff] %v2991
        %3008 = vst [vmem:[%s254 + $0x78] sm:$0xff] %v2992
        %s3009 = sand.u32 %s120, 1
        %s3010 = scalar_lea.sflag [#allocation9], %s3009
        %s3011 = sand.u32 %s120, 1
        %s3012 = smul.addr %s3011, 128
        %s3013 = scalar_lea.vmem [#allocation15], %s3012
        // Predicated region
        $region53: #{tpu_custom_call.1} parent=35 // pred_check
          %p3014 = pneg %p130
        $region54: #{tpu_custom_call.1} parent=35 // pred_check_branch
          %3016 = sbr.rel (%p3014) target = $region56
        $region55: #{tpu_custom_call.1} parent=35 // pred_region
          %s3018 = ssub.s32 2048, 2048
          %3019 = vsyncadd %s3010, %s3018
          %s3020 = smul.addr %s23, 16
          %s3021 = smul.addr %s3020, 128
          %s3022 = scalar_lea.hbm %s4, %s3021
          %s3023 = sshll.u32 %s3013, 4
          %s3024 = int_to_ptr.vmem [resolvable:$true] %s3023
          %3029 = dma.vmem_to_hbm [thread:$0]  %s3024, 2048, %s3022, %s3010, 128, 128, 8
        $region56: #{tpu_custom_call.1} parent=35 // pred_fallthru
          _
      $region36: #{tpu_custom_call.1} parent=5 // pred_fallthru
        _
      %p3030 = scmp.le.s32.totalorder 2, %s18
      // Predicated region
      $region57: #{tpu_custom_call.1} parent=5 // pred_check
        %p3031 = pneg %p3030
      $region58: #{tpu_custom_call.1} parent=5 // pred_check_branch
        %3033 = sbr.rel (%p3031) target = $region60
      $region59: #{tpu_custom_call.1} parent=5 // pred_region
        %s3034 = ssub.s32 %s18, 2
        // Predicated region
        $region61: #{tpu_custom_call.1} parent=59 // pred_check
          %p3035 = pneg %p136
        $region62: #{tpu_custom_call.1} parent=59 // pred_check_branch
          %3037 = sbr.rel (%p3035) target = $region64
        $region63: #{tpu_custom_call.1} parent=59 // pred_region
          %s3038 = sand.u32 %s121, 1
          %s3039 = scalar_lea.sflag [#allocation9], %s3038
          %s3040 = sand.u32 %s121, 1
          %s3041 = smul.addr %s3040, 128
          %s3042 = scalar_lea.vmem [#allocation15], %s3041
          %3043 = dma.done %s3039, 2048
        $region64: #{tpu_custom_call.1} parent=59 // pred_fallthru
          _
      $region60: #{tpu_custom_call.1} parent=5 // pred_fallthru
        _
    $region6: #{tpu_custom_call.1} parent=1 // loop_footer
      %s22 = sadd.s32 1, %s18
    $region7: #{tpu_custom_call.1} parent=1 // loop_footer_branch
      %17 = sbr.rel target = $region3
    $region8: #{tpu_custom_call.1} parent=1 // loop_exit
      _
    %3044 = vsyncpa [#allocation8], 1
    %s3045 = scalar_lea.sflag [#allocation8], 1
    %3046 = vsyncpa %s3045, 1
    %3047 = vsyncpa [#allocation9], 1
    %s3048 = scalar_lea.sflag [#allocation9], 1
    %3049 = vsyncpa %s3048, 1
    %3050 = vsyncpa [#allocation10], 1
    %s3051 = scalar_lea.sflag [#allocation10], 1
    %3052 = vsyncpa %s3051, 1
    %3053 = vsyncpa [#allocation13], 1

</llo_original>
